<compile_context>
chip_gen: v7x
topology: tpu7x:2x2x1
jax: 0.10.0
libtpu: 0.0.40
codegen_flags: <defaults>
</compile_context>

<pallas_src>
import jax
import jax.numpy as jnp
from jax import lax
from jax.experimental import pallas as pl
from jax.experimental.pallas import tpu as pltpu
import numpy as np


# ----------------------------------------------------------------------------
# In-kernel LSTM cell (packed gate order i, f, o, g)
# ----------------------------------------------------------------------------
def _lstm_cell(gates, c_prev, H):
    """gates: (B, 4H) with lane-aligned blocks [i | f | o | g]."""
    ifo = 0.5 * jnp.tanh(0.5 * gates[:, :3 * H]) + 0.5     # sigmoid, one EUP push
    i = ifo[:, 0 * H:1 * H]
    f = ifo[:, 1 * H:2 * H]
    o = ifo[:, 2 * H:3 * H]
    g = jnp.tanh(gates[:, 3 * H:4 * H])
    c = f * c_prev + i * g
    h = o * jnp.tanh(c)
    return h, c


# ----------------------------------------------------------------------------
# Pallas kernels
# ----------------------------------------------------------------------------
def lstm2_enc_kernel(x_ref, wih0_ref, b0_ref, whh0_ref, w1_ref, b1_ref,
                     hT_ref, cT_ref, state_sc, gx_sc):
    """Time-chunked fused 2-layer LSTM (encoder: only final states).

    x_ref  : (Tc, Bp, I)   current input chunk (f32)
    wih0   : (I, 4Hp)      layer-0 input weights (bf16, transposed)
    b0     : (1, 4Hp)      layer-0 bias (f32)
    whh0   : (Hp, 4Hp)     layer-0 recurrent weights (bf16)
    w1     : (2Hp, 4Hp)    fused layer-1 [wih1; whh1] (bf16)
    b1     : (1, 4Hp)      layer-1 bias (f32)
    hT/cT  : (2, Bp, Hp)   final states per layer (written on last chunk)
    state_sc : (4, Bp, Hp) persistent carry h0,c0,h1,c1 (f32)
    gx_sc    : (Tc, Bp, 4Hp) chunk gate slab
    """
    chunk = pl.program_id(0)
    Tc, Bp, I = x_ref.shape
    Hp = whh0_ref.shape[0]

    @pl.when(chunk == 0)
    def _():
        state_sc[...] = jnp.zeros_like(state_sc)

    # Fused layer-0 input projection for the whole chunk (one MXU matmul).
    x2d = x_ref[...].reshape(Tc * Bp, I).astype(wih0_ref.dtype)
    gx = (jnp.dot(x2d, wih0_ref[...], preferred_element_type=jnp.float32)
          + b0_ref[...])
    gx_sc[...] = gx.reshape(Tc, Bp, 4 * Hp)

    whh0 = whh0_ref[...]
    w1 = w1_ref[...]
    b1 = b1_ref[...]
    wdt = whh0.dtype

    def step(t, carry):
        h0, c0, h1, c1 = carry
        g0 = gx_sc[t] + jnp.dot(h0.astype(wdt), whh0,
                                preferred_element_type=jnp.float32)
        h0, c0 = _lstm_cell(g0, c0, Hp)
        h01 = jnp.concatenate([h0, h1], axis=-1).astype(wdt)
        g1 = jnp.dot(h01, w1, preferred_element_type=jnp.float32) + b1
        h1, c1 = _lstm_cell(g1, c1, Hp)
        return h0, c0, h1, c1

    init = (state_sc[0], state_sc[1], state_sc[2], state_sc[3])
    unroll = True if Tc <= 16 else 4
    h0, c0, h1, c1 = lax.fori_loop(0, Tc, step, init, unroll=unroll)
    state_sc[0] = h0
    state_sc[1] = c0
    state_sc[2] = h1
    state_sc[3] = c1

    @pl.when(chunk == pl.num_programs(0) - 1)
    def _():
        hT_ref[0] = h0
        hT_ref[1] = h1
        cT_ref[0] = c0
        cT_ref[1] = c1


def lstm2_dec_fc_kernel(x_ref, wih0_ref, b0_ref, whh0_ref, w1_ref, b1_ref,
                        h_init_ref, c_init_ref, fcw_ref, fcb_ref,
                        y_ref, state_sc, gx_sc, ys_sc):
    """Time-chunked fused 2-layer LSTM + fc (decoder), seeded from encoder states.

    Per-step layer-1 hidden states for the chunk are staged in ys_sc (Tc, Bp, Hp);
    the fc projection is one (Tc*Bp, Hp) @ (Hp, Op) matmul per chunk, written
    lane-dense to y_ref (Tc, Bp, Op).
    """
    chunk = pl.program_id(0)
    Tc, Bp, I = x_ref.shape
    Hp = whh0_ref.shape[0]
    Op = y_ref.shape[-1]

    @pl.when(chunk == 0)
    def _():
        state_sc[0] = h_init_ref[0]
        state_sc[1] = c_init_ref[0]
        state_sc[2] = h_init_ref[1]
        state_sc[3] = c_init_ref[1]

    x2d = x_ref[...].reshape(Tc * Bp, I).astype(wih0_ref.dtype)
    gx = (jnp.dot(x2d, wih0_ref[...], preferred_element_type=jnp.float32)
          + b0_ref[...])
    gx_sc[...] = gx.reshape(Tc, Bp, 4 * Hp)

    whh0 = whh0_ref[...]
    w1 = w1_ref[...]
    b1 = b1_ref[...]
    wdt = whh0.dtype

    def step(t, carry):
        h0, c0, h1, c1 = carry
        g0 = gx_sc[t] + jnp.dot(h0.astype(wdt), whh0,
                                preferred_element_type=jnp.float32)
        h0, c0 = _lstm_cell(g0, c0, Hp)
        h01 = jnp.concatenate([h0, h1], axis=-1).astype(wdt)
        g1 = jnp.dot(h01, w1, preferred_element_type=jnp.float32) + b1
        h1, c1 = _lstm_cell(g1, c1, Hp)
        ys_sc[t] = h1
        return h0, c0, h1, c1

    init = (state_sc[0], state_sc[1], state_sc[2], state_sc[3])
    unroll = True if Tc <= 16 else 4
    h0, c0, h1, c1 = lax.fori_loop(0, Tc, step, init, unroll=unroll)
    state_sc[0] = h0
    state_sc[1] = c0
    state_sc[2] = h1
    state_sc[3] = c1

    # Chunked fc projection (lane-dense output, MXU rows = Tc*Bp).
    ys = ys_sc[...].reshape(Tc * Bp, Hp).astype(fcw_ref.dtype)
    preds = (jnp.dot(ys, fcw_ref[...], preferred_element_type=jnp.float32)
             + fcb_ref[...])
    y_ref[...] = preds.reshape(Tc, Bp, Op)


# ----------------------------------------------------------------------------
# Pallas wrappers
# ----------------------------------------------------------------------------
def _round_up(x, m):
    return ((x + m - 1) // m) * m


def _pick_time_chunk(T, max_chunk=32):
    tc = min(T, max_chunk)
    while T % tc:
        tc -= 1
    return tc


def _nbytes(shape, dtype):
    return int(np.prod(shape)) * jnp.dtype(dtype).itemsize


def _vmem_budget(raw_bytes):
    return int(min(max(raw_bytes + (4 << 20), 16 << 20), 100 << 20))


def lstm2_encoder_pallas(x_tm, wih0, b0, whh0, w1, b1):
    T, Bp, I = x_tm.shape
    Hp = whh0.shape[0]
    Tc = _pick_time_chunk(T)
    grid = (T // Tc,)

    raw = (2 * _nbytes((Tc, Bp, I), jnp.float32)
           + _nbytes(wih0.shape, wih0.dtype) + _nbytes(whh0.shape, whh0.dtype)
           + _nbytes(w1.shape, w1.dtype) + 2 * _nbytes((1, 4 * Hp), jnp.float32)
           + _nbytes((4, Bp, Hp), jnp.float32)
           + _nbytes((Tc, Bp, 4 * Hp), jnp.float32)
           + 4 * _nbytes((2, Bp, Hp), jnp.float32))

    return pl.pallas_call(
        lstm2_enc_kernel,
        out_shape=(jax.ShapeDtypeStruct((2, Bp, Hp), jnp.float32),
                   jax.ShapeDtypeStruct((2, Bp, Hp), jnp.float32)),
        grid_spec=pltpu.PrefetchScalarGridSpec(
            num_scalar_prefetch=0,
            grid=grid,
            in_specs=[pl.BlockSpec((Tc, Bp, I), lambda c: (c, 0, 0)),
                      pl.BlockSpec((I, 4 * Hp), lambda c: (0, 0)),
                      pl.BlockSpec((1, 4 * Hp), lambda c: (0, 0)),
                      pl.BlockSpec((Hp, 4 * Hp), lambda c: (0, 0)),
                      pl.BlockSpec((2 * Hp, 4 * Hp), lambda c: (0, 0)),
                      pl.BlockSpec((1, 4 * Hp), lambda c: (0, 0))],
            out_specs=(pl.BlockSpec((2, Bp, Hp), lambda c: (0, 0, 0)),
                       pl.BlockSpec((2, Bp, Hp), lambda c: (0, 0, 0))),
            scratch_shapes=[pltpu.VMEM((4, Bp, Hp), jnp.float32),
                            pltpu.VMEM((Tc, Bp, 4 * Hp), jnp.float32)]),
        compiler_params=pltpu.CompilerParams(
            dimension_semantics=("arbitrary",),
            vmem_limit_bytes=_vmem_budget(raw)),
    )(x_tm, wih0, b0, whh0, w1, b1)


def lstm2_decoder_fc_pallas(x_tm, wih0, b0, whh0, w1, b1, h_init, c_init, fcw, fcb):
    T, Bp, I = x_tm.shape
    Hp = whh0.shape[0]
    Op = fcw.shape[1]
    Tc = _pick_time_chunk(T)
    grid = (T // Tc,)

    raw = (2 * _nbytes((Tc, Bp, I), jnp.float32)
           + _nbytes(wih0.shape, wih0.dtype) + _nbytes(whh0.shape, whh0.dtype)
           + _nbytes(w1.shape, w1.dtype) + 2 * _nbytes((1, 4 * Hp), jnp.float32)
           + 2 * _nbytes((2, Bp, Hp), jnp.float32)
           + _nbytes(fcw.shape, fcw.dtype) + _nbytes((1, Op), jnp.float32)
           + _nbytes((4, Bp, Hp), jnp.float32)
           + _nbytes((Tc, Bp, 4 * Hp), jnp.float32)
           + _nbytes((Tc, Bp, Hp), jnp.float32)
           + 2 * _nbytes((Tc, Bp, Op), jnp.float32))

    return pl.pallas_call(
        lstm2_dec_fc_kernel,
        out_shape=jax.ShapeDtypeStruct((T, Bp, Op), jnp.float32),
        grid_spec=pltpu.PrefetchScalarGridSpec(
            num_scalar_prefetch=0,
            grid=grid,
            in_specs=[pl.BlockSpec((Tc, Bp, I), lambda c: (c, 0, 0)),
                      pl.BlockSpec((I, 4 * Hp), lambda c: (0, 0)),
                      pl.BlockSpec((1, 4 * Hp), lambda c: (0, 0)),
                      pl.BlockSpec((Hp, 4 * Hp), lambda c: (0, 0)),
                      pl.BlockSpec((2 * Hp, 4 * Hp), lambda c: (0, 0)),
                      pl.BlockSpec((1, 4 * Hp), lambda c: (0, 0)),
                      pl.BlockSpec((2, Bp, Hp), lambda c: (0, 0, 0)),
                      pl.BlockSpec((2, Bp, Hp), lambda c: (0, 0, 0)),
                      pl.BlockSpec((Hp, Op), lambda c: (0, 0)),
                      pl.BlockSpec((1, Op), lambda c: (0, 0))],
            out_specs=pl.BlockSpec((Tc, Bp, Op), lambda c: (c, 0, 0)),
            scratch_shapes=[pltpu.VMEM((4, Bp, Hp), jnp.float32),
                            pltpu.VMEM((Tc, Bp, 4 * Hp), jnp.float32),
                            pltpu.VMEM((Tc, Bp, Hp), jnp.float32)]),
        compiler_params=pltpu.CompilerParams(
            dimension_semantics=("arbitrary",),
            vmem_limit_bytes=_vmem_budget(raw)),
    )(x_tm, wih0, b0, whh0, w1, b1, h_init, c_init, fcw, fcb)


# ----------------------------------------------------------------------------
# Parameter preparation (gate reorder, padding, fused layer-1, bf16 weights)
# ----------------------------------------------------------------------------
_GATE_PERM = [0, 1, 3, 2]          # torch (i,f,g,o) -> packed (i,f,o,g)


def _reorder_pad_rows(w, H, Hp):
    """(4H, X) -> (4Hp, X): reorder gate blocks to i,f,o,g; zero-pad H -> Hp."""
    w = jnp.asarray(w, jnp.float32).reshape(4, H, -1)
    w = w[jnp.array(_GATE_PERM)]
    w = jnp.pad(w, ((0, 0), (0, Hp - H), (0, 0)))
    return w.reshape(4 * Hp, -1)


def _reorder_pad_bias(b, H, Hp):
    b = jnp.asarray(b, jnp.float32).reshape(4, H)
    b = b[jnp.array(_GATE_PERM)]
    b = jnp.pad(b, ((0, 0), (0, Hp - H)))
    return b.reshape(1, 4 * Hp)


def _prep_stack(params, H, Hp, wdtype=jnp.bfloat16):
    """2-layer LSTM stack -> (wih0_T, b0, whh0_T, w1_fused_T, b1)."""
    (w_ih0, w_hh0, b_ih0, b_hh0), (w_ih1, w_hh1, b_ih1, b_hh1) = params

    wih0 = _reorder_pad_rows(w_ih0, H, Hp)                       # (4Hp, I)
    whh0 = jnp.pad(_reorder_pad_rows(w_hh0, H, Hp),
                   ((0, 0), (0, Hp - H)))                        # (4Hp, Hp)
    b0 = _reorder_pad_bias(b_ih0, H, Hp) + _reorder_pad_bias(b_hh0, H, Hp)

    wih1 = jnp.pad(_reorder_pad_rows(w_ih1, H, Hp),
                   ((0, 0), (0, Hp - H)))                        # (4Hp, Hp)
    whh1 = jnp.pad(_reorder_pad_rows(w_hh1, H, Hp),
                   ((0, 0), (0, Hp - H)))                        # (4Hp, Hp)
    w1 = jnp.concatenate([wih1, whh1], axis=1)                   # (4Hp, 2Hp)
    b1 = _reorder_pad_bias(b_ih1, H, Hp) + _reorder_pad_bias(b_hh1, H, Hp)

    return (wih0.T.astype(wdtype), b0,
            whh0.T.astype(wdtype),
            w1.T.astype(wdtype), b1)


# ----------------------------------------------------------------------------
# Full forward (matches Seq2Seq.forward semantics, batch_first)
# ----------------------------------------------------------------------------
def seq2seq_forward(source, target, enc_params, dec_params, fc_w, fc_b,
                    num_layers, hidden_dim):
    assert num_layers == 2, "kernel is specialized to the module's num_layers=2"
    B, T_src, I = source.shape
    _, T_tgt, O = target.shape
    H = hidden_dim
    Bp = _round_up(B, 8)             # sublane alignment
    Hp = _round_up(H, 128)           # lane alignment for gate slices
    Op = _round_up(O, 128)           # lane-dense fc output

    e_wih0, e_b0, e_whh0, e_w1, e_b1 = _prep_stack(enc_params, H, Hp)
    d_wih0, d_b0, d_whh0, d_w1, d_b1 = _prep_stack(dec_params, H, Hp)
    fcw = (jnp.zeros((Hp, Op), jnp.float32)
           .at[:H, :O].set(jnp.asarray(fc_w, jnp.float32).T)).astype(jnp.bfloat16)
    fcb = jnp.zeros((1, Op), jnp.float32).at[0, :O].set(
        jnp.asarray(fc_b, jnp.float32))

    # Time-major + batch padding.
    src_tm = jnp.pad(jnp.transpose(source, (1, 0, 2)).astype(jnp.float32),
                     ((0, 0), (0, Bp - B), (0, 0)))
    tgt_tm = jnp.pad(jnp.transpose(target, (1, 0, 2)).astype(jnp.float32),
                     ((0, 0), (0, Bp - B), (0, 0)))

    # Encoder: time-chunked fused 2-layer recurrence, only final (hidden, cell).
    hT, cT = lstm2_encoder_pallas(src_tm, e_wih0, e_b0, e_whh0, e_w1, e_b1)

    # Decoder: time-chunked fused 2-layer recurrence + chunked fc projection.
    y_pad = lstm2_decoder_fc_pallas(tgt_tm, d_wih0, d_b0, d_whh0, d_w1, d_b1,
                                    hT, cT, fcw, fcb)

    y = y_pad[:, :B, :O]                         # strip batch / lane padding
    return jnp.transpose(y, (1, 0, 2))           # back to batch_first


# ----------------------------------------------------------------------------
# Pure-JAX f32 reference (for correctness check)
# ----------------------------------------------------------------------------
def lstm_layer_ref(x_btf, w_ih, w_hh, b_ih, b_hh, h0, c0):
    def step(carry, x_t):
        h, c = carry
        g = x_t @ w_ih.T + h @ w_hh.T + b_ih + b_hh
        i, f, gg, o = jnp.split(g, 4, axis=-1)
        i, f, o = jax.nn.sigmoid(i), jax.nn.sigmoid(f), jax.nn.sigmoid(o)
        gg = jnp.tanh(gg)
        c = f * c + i * gg
        h = o * jnp.tanh(c)
        return (h, c), h
    (hT, cT), ys = jax.lax.scan(step, (h0, c0), jnp.transpose(x_btf, (1, 0, 2)))
    return jnp.transpose(ys, (1, 0, 2)), hT, cT


def seq2seq_ref(source, target, enc_params, dec_params, fc_w, fc_b,
                num_layers, hidden_dim):
    B = source.shape[0]
    h = [jnp.zeros((B, hidden_dim), jnp.float32) for _ in range(num_layers)]
    c = [jnp.zeros((B, hidden_dim), jnp.float32) for _ in range(num_layers)]
    x = source
    for l, p in enumerate(enc_params):
        x, h[l], c[l] = lstm_layer_ref(x, *p, h[l], c[l])
    x = target
    for l, p in enumerate(dec_params):
        x, h[l], c[l] = lstm_layer_ref(x, *p, h[l], c[l])
    return x @ fc_w.T + fc_b


# ----------------------------------------------------------------------------
# Deterministic parameter init (PyTorch-style uniform(-1/sqrt(H), 1/sqrt(H)))
# ----------------------------------------------------------------------------
def init_lstm_params(key, input_dim, hidden_dim, num_layers):
    k = 1.0 / np.sqrt(hidden_dim)
    params = []
    for layer in range(num_layers):
        in_dim = input_dim if layer == 0 else hidden_dim
        key, k1, k2, k3, k4 = jax.random.split(key, 5)
        params.append((
            jax.random.uniform(k1, (4 * hidden_dim, in_dim), jnp.float32, -k, k),
            jax.random.uniform(k2, (4 * hidden_dim, hidden_dim), jnp.float32, -k, k),
            jax.random.uniform(k3, (4 * hidden_dim,), jnp.float32, -k, k),
            jax.random.uniform(k4, (4 * hidden_dim,), jnp.float32, -k, k),
        ))
    return key, params


# ----------------------------------------------------------------------------
# Main
# ----------------------------------------------------------------------------
if __name__ == "__main__":
    B = 2               # batch
    S_SRC = 8           # source (speech) sequence length
    S_TGT = 8           # target (joint) sequence length
    INPUT_DIM = 16      # speech feature dim
    OUTPUT_DIM = 8      # joint feature dim
    HIDDEN = 32         # hidden_dim (128 in the original module; small here)
    NUM_LAYERS = 2

    key = jax.random.PRNGKey(0)
    key, enc_params = init_lstm_params(key, INPUT_DIM, HIDDEN, NUM_LAYERS)
    key, dec_params = init_lstm_params(key, OUTPUT_DIM, HIDDEN, NUM_LAYERS)
    kf = 1.0 / np.sqrt(HIDDEN)
    key, kw, kb, kx, ky = jax.random.split(key, 5)
    fc_w = jax.random.uniform(kw, (OUTPUT_DIM, HIDDEN), jnp.float32, -kf, kf)
    fc_b = jax.random.uniform(kb, (OUTPUT_DIM,), jnp.float32, -kf, kf)

    source = jax.random.normal(kx, (B, S_SRC, INPUT_DIM), jnp.float32)
    target = jax.random.normal(ky, (B, S_TGT, OUTPUT_DIM), jnp.float32)

    out = seq2seq_forward(source, target, enc_params, dec_params, fc_w, fc_b,
                          NUM_LAYERS, HIDDEN)
    out = jax.block_until_ready(out)

    ref = seq2seq_ref(source, target, enc_params, dec_params, fc_w, fc_b,
                      NUM_LAYERS, HIDDEN)

    assert out.shape == (B, S_TGT, OUTPUT_DIM), out.shape
    # bf16 weights (f32 accumulation / f32 carries) -> loosened tolerance vs f32 ref.
    np.testing.assert_allclose(np.asarray(out), np.asarray(ref),
                               rtol=5e-2, atol=2e-2)
    print("KERNEL_OK")
</pallas_src>

<mosaic_0001>
module attributes {stable_mosaic.version = 11 : i64} {
  func.func @lstm2_enc_kernel(%arg0: i32, %arg1: memref<8x8x16xf32, #tpu.memory_space<vmem>>, %arg2: memref<16x512xbf16, #tpu.memory_space<vmem>>, %arg3: memref<1x512xf32, #tpu.memory_space<vmem>>, %arg4: memref<128x512xbf16, #tpu.memory_space<vmem>>, %arg5: memref<256x512xbf16, #tpu.memory_space<vmem>>, %arg6: memref<1x512xf32, #tpu.memory_space<vmem>>, %arg7: memref<2x8x128xf32, #tpu.memory_space<vmem>>, %arg8: memref<2x8x128xf32, #tpu.memory_space<vmem>>, %arg9: memref<4x8x128xf32, #tpu.memory_space<vmem>>, %arg10: memref<8x8x512xf32, #tpu.memory_space<vmem>>) attributes {dimension_semantics = [#tpu.dimension_semantics<arbitrary>], iteration_bounds = array<i64: 1>, scalar_prefetch = 0 : i64, scratch_operands = 2 : i64, tpu.core_type = #tpu.core_type<tc>, window_params = [{transform_indices = @transform_0, window_bounds = array<i64: 8, 8, 16>}, {pipeline_mode = #tpu.pipeline_mode<synchronous>, transform_indices = @transform_1, window_bounds = array<i64: 16, 512>}, {pipeline_mode = #tpu.pipeline_mode<synchronous>, transform_indices = @transform_2, window_bounds = array<i64: 1, 512>}, {pipeline_mode = #tpu.pipeline_mode<synchronous>, transform_indices = @transform_3, window_bounds = array<i64: 128, 512>}, {pipeline_mode = #tpu.pipeline_mode<synchronous>, transform_indices = @transform_4, window_bounds = array<i64: 256, 512>}, {pipeline_mode = #tpu.pipeline_mode<synchronous>, transform_indices = @transform_5, window_bounds = array<i64: 1, 512>}, {pipeline_mode = #tpu.pipeline_mode<synchronous>, transform_indices = @transform_6, window_bounds = array<i64: 2, 8, 128>}, {pipeline_mode = #tpu.pipeline_mode<synchronous>, transform_indices = @transform_7, window_bounds = array<i64: 2, 8, 128>}]} {
    %c0_i32 = arith.constant 0 : i32
    %0 = arith.cmpi eq, %arg0, %c0_i32 : i32
    %1 = arith.extui %0 : i1 to i32
    %c0_i32_0 = arith.constant 0 : i32
    %2 = arith.cmpi ne, %1, %c0_i32_0 : i32
    scf.if %2 {
      %cst_120 = arith.constant 0.000000e+00 : f32
      %415 = vector.broadcast %cst_120 : f32 to vector<4x8x128xf32>
      %c0_121 = arith.constant 0 : index
      %c0_122 = arith.constant 0 : index
      %c0_123 = arith.constant 0 : index
      %416 = vector.load %arg9[%c0_121, %c0_122, %c0_123] : memref<4x8x128xf32, #tpu.memory_space<vmem>>, vector<4x8x128xf32>
      tpu.vector_store %arg9[%c0_121, %c0_122, %c0_123], %415 {strides = array<i32>} : memref<4x8x128xf32, #tpu.memory_space<vmem>>, vector<4x8x128xf32>,
    } else {
    }
    %c0 = arith.constant 0 : index
    %c0_1 = arith.constant 0 : index
    %c0_2 = arith.constant 0 : index
    %3 = vector.load %arg1[%c0, %c0_1, %c0_2] : memref<8x8x16xf32, #tpu.memory_space<vmem>>, vector<8x8x16xf32>
    %4 = vector.shape_cast %3 : vector<8x8x16xf32> to vector<64x16xf32>
    %5 = arith.truncf %4 : vector<64x16xf32> to vector<64x16xbf16>
    %c0_3 = arith.constant 0 : index
    %c0_4 = arith.constant 0 : index
    %6 = vector.load %arg2[%c0_3, %c0_4] : memref<16x512xbf16, #tpu.memory_space<vmem>>, vector<16x512xbf16>
    %cst = arith.constant dense<0.000000e+00> : vector<64x512xf32>
    %7 = tpu.matmul %5, %6, %cst {dimension_numbers = #tpu.dot_dimension_numbers<[1], [0], [0], [1], [0, 0, 1, 1], [], []>} : vector<64x16xbf16>, vector<16x512xbf16>, vector<64x512xf32> -> vector<64x512xf32>
    %c0_5 = arith.constant 0 : index
    %c0_6 = arith.constant 0 : index
    %8 = vector.load %arg3[%c0_5, %c0_6] : memref<1x512xf32, #tpu.memory_space<vmem>>, vector<1x512xf32>
    %9 = vector.broadcast %8 : vector<1x512xf32> to vector<64x512xf32>
    %10 = arith.addf %7, %9 : vector<64x512xf32>
    %11 = vector.shape_cast %10 : vector<64x512xf32> to vector<8x8x512xf32>
    %c0_7 = arith.constant 0 : index
    %c0_8 = arith.constant 0 : index
    %c0_9 = arith.constant 0 : index
    %12 = vector.load %arg10[%c0_7, %c0_8, %c0_9] : memref<8x8x512xf32, #tpu.memory_space<vmem>>, vector<8x8x512xf32>
    tpu.vector_store %arg10[%c0_7, %c0_8, %c0_9], %11 {strides = array<i32>} : memref<8x8x512xf32, #tpu.memory_space<vmem>>, vector<8x8x512xf32>,
    %c0_10 = arith.constant 0 : index
    %c0_11 = arith.constant 0 : index
    %13 = vector.load %arg4[%c0_10, %c0_11] : memref<128x512xbf16, #tpu.memory_space<vmem>>, vector<128x512xbf16>
    %c0_12 = arith.constant 0 : index
    %c0_13 = arith.constant 0 : index
    %14 = vector.load %arg5[%c0_12, %c0_13] : memref<256x512xbf16, #tpu.memory_space<vmem>>, vector<256x512xbf16>
    %c0_14 = arith.constant 0 : index
    %c0_15 = arith.constant 0 : index
    %15 = vector.load %arg6[%c0_14, %c0_15] : memref<1x512xf32, #tpu.memory_space<vmem>>, vector<1x512xf32>
    %c0_16 = arith.constant 0 : index
    %c0_17 = arith.constant 0 : index
    %c0_18 = arith.constant 0 : index
    %16 = vector.load %arg9[%c0_16, %c0_17, %c0_18] : memref<4x8x128xf32, #tpu.memory_space<vmem>>, vector<1x8x128xf32>
    %17 = vector.shape_cast %16 : vector<1x8x128xf32> to vector<8x128xf32>
    %c1 = arith.constant 1 : index
    %c0_19 = arith.constant 0 : index
    %c0_20 = arith.constant 0 : index
    %18 = vector.load %arg9[%c1, %c0_19, %c0_20] : memref<4x8x128xf32, #tpu.memory_space<vmem>>, vector<1x8x128xf32>
    %19 = vector.shape_cast %18 : vector<1x8x128xf32> to vector<8x128xf32>
    %c2 = arith.constant 2 : index
    %c0_21 = arith.constant 0 : index
    %c0_22 = arith.constant 0 : index
    %20 = vector.load %arg9[%c2, %c0_21, %c0_22] : memref<4x8x128xf32, #tpu.memory_space<vmem>>, vector<1x8x128xf32>
    %21 = vector.shape_cast %20 : vector<1x8x128xf32> to vector<8x128xf32>
    %c3 = arith.constant 3 : index
    %c0_23 = arith.constant 0 : index
    %c0_24 = arith.constant 0 : index
    %22 = vector.load %arg9[%c3, %c0_23, %c0_24] : memref<4x8x128xf32, #tpu.memory_space<vmem>>, vector<1x8x128xf32>
    %23 = vector.shape_cast %22 : vector<1x8x128xf32> to vector<8x128xf32>
    %c0_i32_25 = arith.constant 0 : i32
    %24 = arith.index_cast %c0_i32_25 : i32 to index
    %c0_26 = arith.constant 0 : index
    %c0_27 = arith.constant 0 : index
    %25 = vector.load %arg10[%24, %c0_26, %c0_27] : memref<8x8x512xf32, #tpu.memory_space<vmem>>, vector<1x8x512xf32>
    %26 = vector.shape_cast %25 : vector<1x8x512xf32> to vector<8x512xf32>
    %27 = arith.truncf %17 : vector<8x128xf32> to vector<8x128xbf16>
    %cst_28 = arith.constant dense<0.000000e+00> : vector<8x512xf32>
    %28 = tpu.matmul %27, %13, %cst_28 {dimension_numbers = #tpu.dot_dimension_numbers<[1], [0], [0], [1], [0, 0, 1, 1], [], []>} : vector<8x128xbf16>, vector<128x512xbf16>, vector<8x512xf32> -> vector<8x512xf32>
    %29 = arith.addf %26, %28 : vector<8x512xf32>
    %30 = vector.extract_strided_slice %29 {offsets = [0, 0], sizes = [8, 384], strides = [1, 1]} : vector<8x512xf32> to vector<8x384xf32>
    %cst_29 = arith.constant 5.000000e-01 : f32
    %31 = vector.broadcast %cst_29 : f32 to vector<8x384xf32>
    %32 = arith.mulf %31, %30 : vector<8x384xf32>
    %33 = math.tanh %32 : vector<8x384xf32>
    %cst_30 = arith.constant 5.000000e-01 : f32
    %34 = vector.broadcast %cst_30 : f32 to vector<8x384xf32>
    %35 = arith.mulf %34, %33 : vector<8x384xf32>
    %cst_31 = arith.constant 5.000000e-01 : f32
    %36 = vector.broadcast %cst_31 : f32 to vector<8x384xf32>
    %37 = arith.addf %35, %36 : vector<8x384xf32>
    %38 = vector.extract_strided_slice %37 {offsets = [0, 0], sizes = [8, 128], strides = [1, 1]} : vector<8x384xf32> to vector<8x128xf32>
    %39 = vector.extract_strided_slice %37 {offsets = [0, 128], sizes = [8, 128], strides = [1, 1]} : vector<8x384xf32> to vector<8x128xf32>
    %40 = vector.extract_strided_slice %37 {offsets = [0, 256], sizes = [8, 128], strides = [1, 1]} : vector<8x384xf32> to vector<8x128xf32>
    %41 = vector.extract_strided_slice %29 {offsets = [0, 384], sizes = [8, 128], strides = [1, 1]} : vector<8x512xf32> to vector<8x128xf32>
    %42 = math.tanh %41 : vector<8x128xf32>
    %43 = arith.mulf %39, %19 : vector<8x128xf32>
    %44 = arith.mulf %38, %42 : vector<8x128xf32>
    %45 = arith.addf %43, %44 : vector<8x128xf32>
    %46 = math.tanh %45 : vector<8x128xf32>
    %47 = arith.mulf %40, %46 : vector<8x128xf32>
    %48 = tpu.concatenate %47, %21 in 1 : vector<8x128xf32>, vector<8x128xf32> -> vector<8x256xf32>
    %49 = arith.truncf %48 : vector<8x256xf32> to vector<8x256xbf16>
    %cst_32 = arith.constant dense<0.000000e+00> : vector<8x512xf32>
    %50 = tpu.matmul %49, %14, %cst_32 {dimension_numbers = #tpu.dot_dimension_numbers<[1], [0], [0], [1], [0, 0, 1, 1], [], []>} : vector<8x256xbf16>, vector<256x512xbf16>, vector<8x512xf32> -> vector<8x512xf32>
    %51 = vector.broadcast %15 : vector<1x512xf32> to vector<8x512xf32>
    %52 = arith.addf %50, %51 : vector<8x512xf32>
    %53 = vector.extract_strided_slice %52 {offsets = [0, 0], sizes = [8, 384], strides = [1, 1]} : vector<8x512xf32> to vector<8x384xf32>
    %cst_33 = arith.constant 5.000000e-01 : f32
    %54 = vector.broadcast %cst_33 : f32 to vector<8x384xf32>
    %55 = arith.mulf %54, %53 : vector<8x384xf32>
    %56 = math.tanh %55 : vector<8x384xf32>
    %cst_34 = arith.constant 5.000000e-01 : f32
    %57 = vector.broadcast %cst_34 : f32 to vector<8x384xf32>
    %58 = arith.mulf %57, %56 : vector<8x384xf32>
    %cst_35 = arith.constant 5.000000e-01 : f32
    %59 = vector.broadcast %cst_35 : f32 to vector<8x384xf32>
    %60 = arith.addf %58, %59 : vector<8x384xf32>
    %61 = vector.extract_strided_slice %60 {offsets = [0, 0], sizes = [8, 128], strides = [1, 1]} : vector<8x384xf32> to vector<8x128xf32>
    %62 = vector.extract_strided_slice %60 {offsets = [0, 128], sizes = [8, 128], strides = [1, 1]} : vector<8x384xf32> to vector<8x128xf32>
    %63 = vector.extract_strided_slice %60 {offsets = [0, 256], sizes = [8, 128], strides = [1, 1]} : vector<8x384xf32> to vector<8x128xf32>
    %64 = vector.extract_strided_slice %52 {offsets = [0, 384], sizes = [8, 128], strides = [1, 1]} : vector<8x512xf32> to vector<8x128xf32>
    %65 = math.tanh %64 : vector<8x128xf32>
    %66 = arith.mulf %62, %23 : vector<8x128xf32>
    %67 = arith.mulf %61, %65 : vector<8x128xf32>
    %68 = arith.addf %66, %67 : vector<8x128xf32>
    %69 = math.tanh %68 : vector<8x128xf32>
    %70 = arith.mulf %63, %69 : vector<8x128xf32>
    %c1_i32 = arith.constant 1 : i32
    %71 = arith.index_cast %c1_i32 : i32 to index
    %c0_36 = arith.constant 0 : index
    %c0_37 = arith.constant 0 : index
    %72 = vector.load %arg10[%71, %c0_36, %c0_37] : memref<8x8x512xf32, #tpu.memory_space<vmem>>, vector<1x8x512xf32>
    %73 = vector.shape_cast %72 : vector<1x8x512xf32> to vector<8x512xf32>
    %74 = arith.truncf %47 : vector<8x128xf32> to vector<8x128xbf16>
    %cst_38 = arith.constant dense<0.000000e+00> : vector<8x512xf32>
    %75 = tpu.matmul %74, %13, %cst_38 {dimension_numbers = #tpu.dot_dimension_numbers<[1], [0], [0], [1], [0, 0, 1, 1], [], []>} : vector<8x128xbf16>, vector<128x512xbf16>, vector<8x512xf32> -> vector<8x512xf32>
    %76 = arith.addf %73, %75 : vector<8x512xf32>
    %77 = vector.extract_strided_slice %76 {offsets = [0, 0], sizes = [8, 384], strides = [1, 1]} : vector<8x512xf32> to vector<8x384xf32>
    %cst_39 = arith.constant 5.000000e-01 : f32
    %78 = vector.broadcast %cst_39 : f32 to vector<8x384xf32>
    %79 = arith.mulf %78, %77 : vector<8x384xf32>
    %80 = math.tanh %79 : vector<8x384xf32>
    %cst_40 = arith.constant 5.000000e-01 : f32
    %81 = vector.broadcast %cst_40 : f32 to vector<8x384xf32>
    %82 = arith.mulf %81, %80 : vector<8x384xf32>
    %cst_41 = arith.constant 5.000000e-01 : f32
    %83 = vector.broadcast %cst_41 : f32 to vector<8x384xf32>
    %84 = arith.addf %82, %83 : vector<8x384xf32>
    %85 = vector.extract_strided_slice %84 {offsets = [0, 0], sizes = [8, 128], strides = [1, 1]} : vector<8x384xf32> to vector<8x128xf32>
    %86 = vector.extract_strided_slice %84 {offsets = [0, 128], sizes = [8, 128], strides = [1, 1]} : vector<8x384xf32> to vector<8x128xf32>
    %87 = vector.extract_strided_slice %84 {offsets = [0, 256], sizes = [8, 128], strides = [1, 1]} : vector<8x384xf32> to vector<8x128xf32>
    %88 = vector.extract_strided_slice %76 {offsets = [0, 384], sizes = [8, 128], strides = [1, 1]} : vector<8x512xf32> to vector<8x128xf32>
    %89 = math.tanh %88 : vector<8x128xf32>
    %90 = arith.mulf %86, %45 : vector<8x128xf32>
    %91 = arith.mulf %85, %89 : vector<8x128xf32>
    %92 = arith.addf %90, %91 : vector<8x128xf32>
    %93 = math.tanh %92 : vector<8x128xf32>
    %94 = arith.mulf %87, %93 : vector<8x128xf32>
    %95 = tpu.concatenate %94, %70 in 1 : vector<8x128xf32>, vector<8x128xf32> -> vector<8x256xf32>
    %96 = arith.truncf %95 : vector<8x256xf32> to vector<8x256xbf16>
    %cst_42 = arith.constant dense<0.000000e+00> : vector<8x512xf32>
    %97 = tpu.matmul %96, %14, %cst_42 {dimension_numbers = #tpu.dot_dimension_numbers<[1], [0], [0], [1], [0, 0, 1, 1], [], []>} : vector<8x256xbf16>, vector<256x512xbf16>, vector<8x512xf32> -> vector<8x512xf32>
    %98 = vector.broadcast %15 : vector<1x512xf32> to vector<8x512xf32>
    %99 = arith.addf %97, %98 : vector<8x512xf32>
    %100 = vector.extract_strided_slice %99 {offsets = [0, 0], sizes = [8, 384], strides = [1, 1]} : vector<8x512xf32> to vector<8x384xf32>
    %cst_43 = arith.constant 5.000000e-01 : f32
    %101 = vector.broadcast %cst_43 : f32 to vector<8x384xf32>
    %102 = arith.mulf %101, %100 : vector<8x384xf32>
    %103 = math.tanh %102 : vector<8x384xf32>
    %cst_44 = arith.constant 5.000000e-01 : f32
    %104 = vector.broadcast %cst_44 : f32 to vector<8x384xf32>
    %105 = arith.mulf %104, %103 : vector<8x384xf32>
    %cst_45 = arith.constant 5.000000e-01 : f32
    %106 = vector.broadcast %cst_45 : f32 to vector<8x384xf32>
    %107 = arith.addf %105, %106 : vector<8x384xf32>
    %108 = vector.extract_strided_slice %107 {offsets = [0, 0], sizes = [8, 128], strides = [1, 1]} : vector<8x384xf32> to vector<8x128xf32>
    %109 = vector.extract_strided_slice %107 {offsets = [0, 128], sizes = [8, 128], strides = [1, 1]} : vector<8x384xf32> to vector<8x128xf32>
    %110 = vector.extract_strided_slice %107 {offsets = [0, 256], sizes = [8, 128], strides = [1, 1]} : vector<8x384xf32> to vector<8x128xf32>
    %111 = vector.extract_strided_slice %99 {offsets = [0, 384], sizes = [8, 128], strides = [1, 1]} : vector<8x512xf32> to vector<8x128xf32>
    %112 = math.tanh %111 : vector<8x128xf32>
    %113 = arith.mulf %109, %68 : vector<8x128xf32>
    %114 = arith.mulf %108, %112 : vector<8x128xf32>
    %115 = arith.addf %113, %114 : vector<8x128xf32>
    %116 = math.tanh %115 : vector<8x128xf32>
    %117 = arith.mulf %110, %116 : vector<8x128xf32>
    %c2_i32 = arith.constant 2 : i32
    %118 = arith.index_cast %c2_i32 : i32 to index
    %c0_46 = arith.constant 0 : index
    %c0_47 = arith.constant 0 : index
    %119 = vector.load %arg10[%118, %c0_46, %c0_47] : memref<8x8x512xf32, #tpu.memory_space<vmem>>, vector<1x8x512xf32>
    %120 = vector.shape_cast %119 : vector<1x8x512xf32> to vector<8x512xf32>
    %121 = arith.truncf %94 : vector<8x128xf32> to vector<8x128xbf16>
    %cst_48 = arith.constant dense<0.000000e+00> : vector<8x512xf32>
    %122 = tpu.matmul %121, %13, %cst_48 {dimension_numbers = #tpu.dot_dimension_numbers<[1], [0], [0], [1], [0, 0, 1, 1], [], []>} : vector<8x128xbf16>, vector<128x512xbf16>, vector<8x512xf32> -> vector<8x512xf32>
    %123 = arith.addf %120, %122 : vector<8x512xf32>
    %124 = vector.extract_strided_slice %123 {offsets = [0, 0], sizes = [8, 384], strides = [1, 1]} : vector<8x512xf32> to vector<8x384xf32>
    %cst_49 = arith.constant 5.000000e-01 : f32
    %125 = vector.broadcast %cst_49 : f32 to vector<8x384xf32>
    %126 = arith.mulf %125, %124 : vector<8x384xf32>
    %127 = math.tanh %126 : vector<8x384xf32>
    %cst_50 = arith.constant 5.000000e-01 : f32
    %128 = vector.broadcast %cst_50 : f32 to vector<8x384xf32>
    %129 = arith.mulf %128, %127 : vector<8x384xf32>
    %cst_51 = arith.constant 5.000000e-01 : f32
    %130 = vector.broadcast %cst_51 : f32 to vector<8x384xf32>
    %131 = arith.addf %129, %130 : vector<8x384xf32>
    %132 = vector.extract_strided_slice %131 {offsets = [0, 0], sizes = [8, 128], strides = [1, 1]} : vector<8x384xf32> to vector<8x128xf32>
    %133 = vector.extract_strided_slice %131 {offsets = [0, 128], sizes = [8, 128], strides = [1, 1]} : vector<8x384xf32> to vector<8x128xf32>
    %134 = vector.extract_strided_slice %131 {offsets = [0, 256], sizes = [8, 128], strides = [1, 1]} : vector<8x384xf32> to vector<8x128xf32>
    %135 = vector.extract_strided_slice %123 {offsets = [0, 384], sizes = [8, 128], strides = [1, 1]} : vector<8x512xf32> to vector<8x128xf32>
    %136 = math.tanh %135 : vector<8x128xf32>
    %137 = arith.mulf %133, %92 : vector<8x128xf32>
    %138 = arith.mulf %132, %136 : vector<8x128xf32>
    %139 = arith.addf %137, %138 : vector<8x128xf32>
    %140 = math.tanh %139 : vector<8x128xf32>
    %141 = arith.mulf %134, %140 : vector<8x128xf32>
    %142 = tpu.concatenate %141, %117 in 1 : vector<8x128xf32>, vector<8x128xf32> -> vector<8x256xf32>
    %143 = arith.truncf %142 : vector<8x256xf32> to vector<8x256xbf16>
    %cst_52 = arith.constant dense<0.000000e+00> : vector<8x512xf32>
    %144 = tpu.matmul %143, %14, %cst_52 {dimension_numbers = #tpu.dot_dimension_numbers<[1], [0], [0], [1], [0, 0, 1, 1], [], []>} : vector<8x256xbf16>, vector<256x512xbf16>, vector<8x512xf32> -> vector<8x512xf32>
    %145 = vector.broadcast %15 : vector<1x512xf32> to vector<8x512xf32>
    %146 = arith.addf %144, %145 : vector<8x512xf32>
    %147 = vector.extract_strided_slice %146 {offsets = [0, 0], sizes = [8, 384], strides = [1, 1]} : vector<8x512xf32> to vector<8x384xf32>
    %cst_53 = arith.constant 5.000000e-01 : f32
    %148 = vector.broadcast %cst_53 : f32 to vector<8x384xf32>
    %149 = arith.mulf %148, %147 : vector<8x384xf32>
    %150 = math.tanh %149 : vector<8x384xf32>
    %cst_54 = arith.constant 5.000000e-01 : f32
    %151 = vector.broadcast %cst_54 : f32 to vector<8x384xf32>
    %152 = arith.mulf %151, %150 : vector<8x384xf32>
    %cst_55 = arith.constant 5.000000e-01 : f32
    %153 = vector.broadcast %cst_55 : f32 to vector<8x384xf32>
    %154 = arith.addf %152, %153 : vector<8x384xf32>
    %155 = vector.extract_strided_slice %154 {offsets = [0, 0], sizes = [8, 128], strides = [1, 1]} : vector<8x384xf32> to vector<8x128xf32>
    %156 = vector.extract_strided_slice %154 {offsets = [0, 128], sizes = [8, 128], strides = [1, 1]} : vector<8x384xf32> to vector<8x128xf32>
    %157 = vector.extract_strided_slice %154 {offsets = [0, 256], sizes = [8, 128], strides = [1, 1]} : vector<8x384xf32> to vector<8x128xf32>
    %158 = vector.extract_strided_slice %146 {offsets = [0, 384], sizes = [8, 128], strides = [1, 1]} : vector<8x512xf32> to vector<8x128xf32>
    %159 = math.tanh %158 : vector<8x128xf32>
    %160 = arith.mulf %156, %115 : vector<8x128xf32>
    %161 = arith.mulf %155, %159 : vector<8x128xf32>
    %162 = arith.addf %160, %161 : vector<8x128xf32>
    %163 = math.tanh %162 : vector<8x128xf32>
    %164 = arith.mulf %157, %163 : vector<8x128xf32>
    %c3_i32 = arith.constant 3 : i32
    %165 = arith.index_cast %c3_i32 : i32 to index
    %c0_56 = arith.constant 0 : index
    %c0_57 = arith.constant 0 : index
    %166 = vector.load %arg10[%165, %c0_56, %c0_57] : memref<8x8x512xf32, #tpu.memory_space<vmem>>, vector<1x8x512xf32>
    %167 = vector.shape_cast %166 : vector<1x8x512xf32> to vector<8x512xf32>
    %168 = arith.truncf %141 : vector<8x128xf32> to vector<8x128xbf16>
    %cst_58 = arith.constant dense<0.000000e+00> : vector<8x512xf32>
    %169 = tpu.matmul %168, %13, %cst_58 {dimension_numbers = #tpu.dot_dimension_numbers<[1], [0], [0], [1], [0, 0, 1, 1], [], []>} : vector<8x128xbf16>, vector<128x512xbf16>, vector<8x512xf32> -> vector<8x512xf32>
    %170 = arith.addf %167, %169 : vector<8x512xf32>
    %171 = vector.extract_strided_slice %170 {offsets = [0, 0], sizes = [8, 384], strides = [1, 1]} : vector<8x512xf32> to vector<8x384xf32>
    %cst_59 = arith.constant 5.000000e-01 : f32
    %172 = vector.broadcast %cst_59 : f32 to vector<8x384xf32>
    %173 = arith.mulf %172, %171 : vector<8x384xf32>
    %174 = math.tanh %173 : vector<8x384xf32>
    %cst_60 = arith.constant 5.000000e-01 : f32
    %175 = vector.broadcast %cst_60 : f32 to vector<8x384xf32>
    %176 = arith.mulf %175, %174 : vector<8x384xf32>
    %cst_61 = arith.constant 5.000000e-01 : f32
    %177 = vector.broadcast %cst_61 : f32 to vector<8x384xf32>
    %178 = arith.addf %176, %177 : vector<8x384xf32>
    %179 = vector.extract_strided_slice %178 {offsets = [0, 0], sizes = [8, 128], strides = [1, 1]} : vector<8x384xf32> to vector<8x128xf32>
    %180 = vector.extract_strided_slice %178 {offsets = [0, 128], sizes = [8, 128], strides = [1, 1]} : vector<8x384xf32> to vector<8x128xf32>
    %181 = vector.extract_strided_slice %178 {offsets = [0, 256], sizes = [8, 128], strides = [1, 1]} : vector<8x384xf32> to vector<8x128xf32>
    %182 = vector.extract_strided_slice %170 {offsets = [0, 384], sizes = [8, 128], strides = [1, 1]} : vector<8x512xf32> to vector<8x128xf32>
    %183 = math.tanh %182 : vector<8x128xf32>
    %184 = arith.mulf %180, %139 : vector<8x128xf32>
    %185 = arith.mulf %179, %183 : vector<8x128xf32>
    %186 = arith.addf %184, %185 : vector<8x128xf32>
    %187 = math.tanh %186 : vector<8x128xf32>
    %188 = arith.mulf %181, %187 : vector<8x128xf32>
    %189 = tpu.concatenate %188, %164 in 1 : vector<8x128xf32>, vector<8x128xf32> -> vector<8x256xf32>
    %190 = arith.truncf %189 : vector<8x256xf32> to vector<8x256xbf16>
    %cst_62 = arith.constant dense<0.000000e+00> : vector<8x512xf32>
    %191 = tpu.matmul %190, %14, %cst_62 {dimension_numbers = #tpu.dot_dimension_numbers<[1], [0], [0], [1], [0, 0, 1, 1], [], []>} : vector<8x256xbf16>, vector<256x512xbf16>, vector<8x512xf32> -> vector<8x512xf32>
    %192 = vector.broadcast %15 : vector<1x512xf32> to vector<8x512xf32>
    %193 = arith.addf %191, %192 : vector<8x512xf32>
    %194 = vector.extract_strided_slice %193 {offsets = [0, 0], sizes = [8, 384], strides = [1, 1]} : vector<8x512xf32> to vector<8x384xf32>
    %cst_63 = arith.constant 5.000000e-01 : f32
    %195 = vector.broadcast %cst_63 : f32 to vector<8x384xf32>
    %196 = arith.mulf %195, %194 : vector<8x384xf32>
    %197 = math.tanh %196 : vector<8x384xf32>
    %cst_64 = arith.constant 5.000000e-01 : f32
    %198 = vector.broadcast %cst_64 : f32 to vector<8x384xf32>
    %199 = arith.mulf %198, %197 : vector<8x384xf32>
    %cst_65 = arith.constant 5.000000e-01 : f32
    %200 = vector.broadcast %cst_65 : f32 to vector<8x384xf32>
    %201 = arith.addf %199, %200 : vector<8x384xf32>
    %202 = vector.extract_strided_slice %201 {offsets = [0, 0], sizes = [8, 128], strides = [1, 1]} : vector<8x384xf32> to vector<8x128xf32>
    %203 = vector.extract_strided_slice %201 {offsets = [0, 128], sizes = [8, 128], strides = [1, 1]} : vector<8x384xf32> to vector<8x128xf32>
    %204 = vector.extract_strided_slice %201 {offsets = [0, 256], sizes = [8, 128], strides = [1, 1]} : vector<8x384xf32> to vector<8x128xf32>
    %205 = vector.extract_strided_slice %193 {offsets = [0, 384], sizes = [8, 128], strides = [1, 1]} : vector<8x512xf32> to vector<8x128xf32>
    %206 = math.tanh %205 : vector<8x128xf32>
    %207 = arith.mulf %203, %162 : vector<8x128xf32>
    %208 = arith.mulf %202, %206 : vector<8x128xf32>
    %209 = arith.addf %207, %208 : vector<8x128xf32>
    %210 = math.tanh %209 : vector<8x128xf32>
    %211 = arith.mulf %204, %210 : vector<8x128xf32>
    %c4_i32 = arith.constant 4 : i32
    %212 = arith.index_cast %c4_i32 : i32 to index
    %c0_66 = arith.constant 0 : index
    %c0_67 = arith.constant 0 : index
    %213 = vector.load %arg10[%212, %c0_66, %c0_67] : memref<8x8x512xf32, #tpu.memory_space<vmem>>, vector<1x8x512xf32>
    %214 = vector.shape_cast %213 : vector<1x8x512xf32> to vector<8x512xf32>
    %215 = arith.truncf %188 : vector<8x128xf32> to vector<8x128xbf16>
    %cst_68 = arith.constant dense<0.000000e+00> : vector<8x512xf32>
    %216 = tpu.matmul %215, %13, %cst_68 {dimension_numbers = #tpu.dot_dimension_numbers<[1], [0], [0], [1], [0, 0, 1, 1], [], []>} : vector<8x128xbf16>, vector<128x512xbf16>, vector<8x512xf32> -> vector<8x512xf32>
    %217 = arith.addf %214, %216 : vector<8x512xf32>
    %218 = vector.extract_strided_slice %217 {offsets = [0, 0], sizes = [8, 384], strides = [1, 1]} : vector<8x512xf32> to vector<8x384xf32>
    %cst_69 = arith.constant 5.000000e-01 : f32
    %219 = vector.broadcast %cst_69 : f32 to vector<8x384xf32>
    %220 = arith.mulf %219, %218 : vector<8x384xf32>
    %221 = math.tanh %220 : vector<8x384xf32>
    %cst_70 = arith.constant 5.000000e-01 : f32
    %222 = vector.broadcast %cst_70 : f32 to vector<8x384xf32>
    %223 = arith.mulf %222, %221 : vector<8x384xf32>
    %cst_71 = arith.constant 5.000000e-01 : f32
    %224 = vector.broadcast %cst_71 : f32 to vector<8x384xf32>
    %225 = arith.addf %223, %224 : vector<8x384xf32>
    %226 = vector.extract_strided_slice %225 {offsets = [0, 0], sizes = [8, 128], strides = [1, 1]} : vector<8x384xf32> to vector<8x128xf32>
    %227 = vector.extract_strided_slice %225 {offsets = [0, 128], sizes = [8, 128], strides = [1, 1]} : vector<8x384xf32> to vector<8x128xf32>
    %228 = vector.extract_strided_slice %225 {offsets = [0, 256], sizes = [8, 128], strides = [1, 1]} : vector<8x384xf32> to vector<8x128xf32>
    %229 = vector.extract_strided_slice %217 {offsets = [0, 384], sizes = [8, 128], strides = [1, 1]} : vector<8x512xf32> to vector<8x128xf32>
    %230 = math.tanh %229 : vector<8x128xf32>
    %231 = arith.mulf %227, %186 : vector<8x128xf32>
    %232 = arith.mulf %226, %230 : vector<8x128xf32>
    %233 = arith.addf %231, %232 : vector<8x128xf32>
    %234 = math.tanh %233 : vector<8x128xf32>
    %235 = arith.mulf %228, %234 : vector<8x128xf32>
    %236 = tpu.concatenate %235, %211 in 1 : vector<8x128xf32>, vector<8x128xf32> -> vector<8x256xf32>
    %237 = arith.truncf %236 : vector<8x256xf32> to vector<8x256xbf16>
    %cst_72 = arith.constant dense<0.000000e+00> : vector<8x512xf32>
    %238 = tpu.matmul %237, %14, %cst_72 {dimension_numbers = #tpu.dot_dimension_numbers<[1], [0], [0], [1], [0, 0, 1, 1], [], []>} : vector<8x256xbf16>, vector<256x512xbf16>, vector<8x512xf32> -> vector<8x512xf32>
    %239 = vector.broadcast %15 : vector<1x512xf32> to vector<8x512xf32>
    %240 = arith.addf %238, %239 : vector<8x512xf32>
    %241 = vector.extract_strided_slice %240 {offsets = [0, 0], sizes = [8, 384], strides = [1, 1]} : vector<8x512xf32> to vector<8x384xf32>
    %cst_73 = arith.constant 5.000000e-01 : f32
    %242 = vector.broadcast %cst_73 : f32 to vector<8x384xf32>
    %243 = arith.mulf %242, %241 : vector<8x384xf32>
    %244 = math.tanh %243 : vector<8x384xf32>
    %cst_74 = arith.constant 5.000000e-01 : f32
    %245 = vector.broadcast %cst_74 : f32 to vector<8x384xf32>
    %246 = arith.mulf %245, %244 : vector<8x384xf32>
    %cst_75 = arith.constant 5.000000e-01 : f32
    %247 = vector.broadcast %cst_75 : f32 to vector<8x384xf32>
    %248 = arith.addf %246, %247 : vector<8x384xf32>
    %249 = vector.extract_strided_slice %248 {offsets = [0, 0], sizes = [8, 128], strides = [1, 1]} : vector<8x384xf32> to vector<8x128xf32>
    %250 = vector.extract_strided_slice %248 {offsets = [0, 128], sizes = [8, 128], strides = [1, 1]} : vector<8x384xf32> to vector<8x128xf32>
    %251 = vector.extract_strided_slice %248 {offsets = [0, 256], sizes = [8, 128], strides = [1, 1]} : vector<8x384xf32> to vector<8x128xf32>
    %252 = vector.extract_strided_slice %240 {offsets = [0, 384], sizes = [8, 128], strides = [1, 1]} : vector<8x512xf32> to vector<8x128xf32>
    %253 = math.tanh %252 : vector<8x128xf32>
    %254 = arith.mulf %250, %209 : vector<8x128xf32>
    %255 = arith.mulf %249, %253 : vector<8x128xf32>
    %256 = arith.addf %254, %255 : vector<8x128xf32>
    %257 = math.tanh %256 : vector<8x128xf32>
    %258 = arith.mulf %251, %257 : vector<8x128xf32>
    %c5_i32 = arith.constant 5 : i32
    %259 = arith.index_cast %c5_i32 : i32 to index
    %c0_76 = arith.constant 0 : index
    %c0_77 = arith.constant 0 : index
    %260 = vector.load %arg10[%259, %c0_76, %c0_77] : memref<8x8x512xf32, #tpu.memory_space<vmem>>, vector<1x8x512xf32>
    %261 = vector.shape_cast %260 : vector<1x8x512xf32> to vector<8x512xf32>
    %262 = arith.truncf %235 : vector<8x128xf32> to vector<8x128xbf16>
    %cst_78 = arith.constant dense<0.000000e+00> : vector<8x512xf32>
    %263 = tpu.matmul %262, %13, %cst_78 {dimension_numbers = #tpu.dot_dimension_numbers<[1], [0], [0], [1], [0, 0, 1, 1], [], []>} : vector<8x128xbf16>, vector<128x512xbf16>, vector<8x512xf32> -> vector<8x512xf32>
    %264 = arith.addf %261, %263 : vector<8x512xf32>
    %265 = vector.extract_strided_slice %264 {offsets = [0, 0], sizes = [8, 384], strides = [1, 1]} : vector<8x512xf32> to vector<8x384xf32>
    %cst_79 = arith.constant 5.000000e-01 : f32
    %266 = vector.broadcast %cst_79 : f32 to vector<8x384xf32>
    %267 = arith.mulf %266, %265 : vector<8x384xf32>
    %268 = math.tanh %267 : vector<8x384xf32>
    %cst_80 = arith.constant 5.000000e-01 : f32
    %269 = vector.broadcast %cst_80 : f32 to vector<8x384xf32>
    %270 = arith.mulf %269, %268 : vector<8x384xf32>
    %cst_81 = arith.constant 5.000000e-01 : f32
    %271 = vector.broadcast %cst_81 : f32 to vector<8x384xf32>
    %272 = arith.addf %270, %271 : vector<8x384xf32>
    %273 = vector.extract_strided_slice %272 {offsets = [0, 0], sizes = [8, 128], strides = [1, 1]} : vector<8x384xf32> to vector<8x128xf32>
    %274 = vector.extract_strided_slice %272 {offsets = [0, 128], sizes = [8, 128], strides = [1, 1]} : vector<8x384xf32> to vector<8x128xf32>
    %275 = vector.extract_strided_slice %272 {offsets = [0, 256], sizes = [8, 128], strides = [1, 1]} : vector<8x384xf32> to vector<8x128xf32>
    %276 = vector.extract_strided_slice %264 {offsets = [0, 384], sizes = [8, 128], strides = [1, 1]} : vector<8x512xf32> to vector<8x128xf32>
    %277 = math.tanh %276 : vector<8x128xf32>
    %278 = arith.mulf %274, %233 : vector<8x128xf32>
    %279 = arith.mulf %273, %277 : vector<8x128xf32>
    %280 = arith.addf %278, %279 : vector<8x128xf32>
    %281 = math.tanh %280 : vector<8x128xf32>
    %282 = arith.mulf %275, %281 : vector<8x128xf32>
    %283 = tpu.concatenate %282, %258 in 1 : vector<8x128xf32>, vector<8x128xf32> -> vector<8x256xf32>
    %284 = arith.truncf %283 : vector<8x256xf32> to vector<8x256xbf16>
    %cst_82 = arith.constant dense<0.000000e+00> : vector<8x512xf32>
    %285 = tpu.matmul %284, %14, %cst_82 {dimension_numbers = #tpu.dot_dimension_numbers<[1], [0], [0], [1], [0, 0, 1, 1], [], []>} : vector<8x256xbf16>, vector<256x512xbf16>, vector<8x512xf32> -> vector<8x512xf32>
    %286 = vector.broadcast %15 : vector<1x512xf32> to vector<8x512xf32>
    %287 = arith.addf %285, %286 : vector<8x512xf32>
    %288 = vector.extract_strided_slice %287 {offsets = [0, 0], sizes = [8, 384], strides = [1, 1]} : vector<8x512xf32> to vector<8x384xf32>
    %cst_83 = arith.constant 5.000000e-01 : f32
    %289 = vector.broadcast %cst_83 : f32 to vector<8x384xf32>
    %290 = arith.mulf %289, %288 : vector<8x384xf32>
    %291 = math.tanh %290 : vector<8x384xf32>
    %cst_84 = arith.constant 5.000000e-01 : f32
    %292 = vector.broadcast %cst_84 : f32 to vector<8x384xf32>
    %293 = arith.mulf %292, %291 : vector<8x384xf32>
    %cst_85 = arith.constant 5.000000e-01 : f32
    %294 = vector.broadcast %cst_85 : f32 to vector<8x384xf32>
    %295 = arith.addf %293, %294 : vector<8x384xf32>
    %296 = vector.extract_strided_slice %295 {offsets = [0, 0], sizes = [8, 128], strides = [1, 1]} : vector<8x384xf32> to vector<8x128xf32>
    %297 = vector.extract_strided_slice %295 {offsets = [0, 128], sizes = [8, 128], strides = [1, 1]} : vector<8x384xf32> to vector<8x128xf32>
    %298 = vector.extract_strided_slice %295 {offsets = [0, 256], sizes = [8, 128], strides = [1, 1]} : vector<8x384xf32> to vector<8x128xf32>
    %299 = vector.extract_strided_slice %287 {offsets = [0, 384], sizes = [8, 128], strides = [1, 1]} : vector<8x512xf32> to vector<8x128xf32>
    %300 = math.tanh %299 : vector<8x128xf32>
    %301 = arith.mulf %297, %256 : vector<8x128xf32>
    %302 = arith.mulf %296, %300 : vector<8x128xf32>
    %303 = arith.addf %301, %302 : vector<8x128xf32>
    %304 = math.tanh %303 : vector<8x128xf32>
    %305 = arith.mulf %298, %304 : vector<8x128xf32>
    %c6_i32 = arith.constant 6 : i32
    %306 = arith.index_cast %c6_i32 : i32 to index
    %c0_86 = arith.constant 0 : index
    %c0_87 = arith.constant 0 : index
    %307 = vector.load %arg10[%306, %c0_86, %c0_87] : memref<8x8x512xf32, #tpu.memory_space<vmem>>, vector<1x8x512xf32>
    %308 = vector.shape_cast %307 : vector<1x8x512xf32> to vector<8x512xf32>
    %309 = arith.truncf %282 : vector<8x128xf32> to vector<8x128xbf16>
    %cst_88 = arith.constant dense<0.000000e+00> : vector<8x512xf32>
    %310 = tpu.matmul %309, %13, %cst_88 {dimension_numbers = #tpu.dot_dimension_numbers<[1], [0], [0], [1], [0, 0, 1, 1], [], []>} : vector<8x128xbf16>, vector<128x512xbf16>, vector<8x512xf32> -> vector<8x512xf32>
    %311 = arith.addf %308, %310 : vector<8x512xf32>
    %312 = vector.extract_strided_slice %311 {offsets = [0, 0], sizes = [8, 384], strides = [1, 1]} : vector<8x512xf32> to vector<8x384xf32>
    %cst_89 = arith.constant 5.000000e-01 : f32
    %313 = vector.broadcast %cst_89 : f32 to vector<8x384xf32>
    %314 = arith.mulf %313, %312 : vector<8x384xf32>
    %315 = math.tanh %314 : vector<8x384xf32>
    %cst_90 = arith.constant 5.000000e-01 : f32
    %316 = vector.broadcast %cst_90 : f32 to vector<8x384xf32>
    %317 = arith.mulf %316, %315 : vector<8x384xf32>
    %cst_91 = arith.constant 5.000000e-01 : f32
    %318 = vector.broadcast %cst_91 : f32 to vector<8x384xf32>
    %319 = arith.addf %317, %318 : vector<8x384xf32>
    %320 = vector.extract_strided_slice %319 {offsets = [0, 0], sizes = [8, 128], strides = [1, 1]} : vector<8x384xf32> to vector<8x128xf32>
    %321 = vector.extract_strided_slice %319 {offsets = [0, 128], sizes = [8, 128], strides = [1, 1]} : vector<8x384xf32> to vector<8x128xf32>
    %322 = vector.extract_strided_slice %319 {offsets = [0, 256], sizes = [8, 128], strides = [1, 1]} : vector<8x384xf32> to vector<8x128xf32>
    %323 = vector.extract_strided_slice %311 {offsets = [0, 384], sizes = [8, 128], strides = [1, 1]} : vector<8x512xf32> to vector<8x128xf32>
    %324 = math.tanh %323 : vector<8x128xf32>
    %325 = arith.mulf %321, %280 : vector<8x128xf32>
    %326 = arith.mulf %320, %324 : vector<8x128xf32>
    %327 = arith.addf %325, %326 : vector<8x128xf32>
    %328 = math.tanh %327 : vector<8x128xf32>
    %329 = arith.mulf %322, %328 : vector<8x128xf32>
    %330 = tpu.concatenate %329, %305 in 1 : vector<8x128xf32>, vector<8x128xf32> -> vector<8x256xf32>
    %331 = arith.truncf %330 : vector<8x256xf32> to vector<8x256xbf16>
    %cst_92 = arith.constant dense<0.000000e+00> : vector<8x512xf32>
    %332 = tpu.matmul %331, %14, %cst_92 {dimension_numbers = #tpu.dot_dimension_numbers<[1], [0], [0], [1], [0, 0, 1, 1], [], []>} : vector<8x256xbf16>, vector<256x512xbf16>, vector<8x512xf32> -> vector<8x512xf32>
    %333 = vector.broadcast %15 : vector<1x512xf32> to vector<8x512xf32>
    %334 = arith.addf %332, %333 : vector<8x512xf32>
    %335 = vector.extract_strided_slice %334 {offsets = [0, 0], sizes = [8, 384], strides = [1, 1]} : vector<8x512xf32> to vector<8x384xf32>
    %cst_93 = arith.constant 5.000000e-01 : f32
    %336 = vector.broadcast %cst_93 : f32 to vector<8x384xf32>
    %337 = arith.mulf %336, %335 : vector<8x384xf32>
    %338 = math.tanh %337 : vector<8x384xf32>
    %cst_94 = arith.constant 5.000000e-01 : f32
    %339 = vector.broadcast %cst_94 : f32 to vector<8x384xf32>
    %340 = arith.mulf %339, %338 : vector<8x384xf32>
    %cst_95 = arith.constant 5.000000e-01 : f32
    %341 = vector.broadcast %cst_95 : f32 to vector<8x384xf32>
    %342 = arith.addf %340, %341 : vector<8x384xf32>
    %343 = vector.extract_strided_slice %342 {offsets = [0, 0], sizes = [8, 128], strides = [1, 1]} : vector<8x384xf32> to vector<8x128xf32>
    %344 = vector.extract_strided_slice %342 {offsets = [0, 128], sizes = [8, 128], strides = [1, 1]} : vector<8x384xf32> to vector<8x128xf32>
    %345 = vector.extract_strided_slice %342 {offsets = [0, 256], sizes = [8, 128], strides = [1, 1]} : vector<8x384xf32> to vector<8x128xf32>
    %346 = vector.extract_strided_slice %334 {offsets = [0, 384], sizes = [8, 128], strides = [1, 1]} : vector<8x512xf32> to vector<8x128xf32>
    %347 = math.tanh %346 : vector<8x128xf32>
    %348 = arith.mulf %344, %303 : vector<8x128xf32>
    %349 = arith.mulf %343, %347 : vector<8x128xf32>
    %350 = arith.addf %348, %349 : vector<8x128xf32>
    %351 = math.tanh %350 : vector<8x128xf32>
    %352 = arith.mulf %345, %351 : vector<8x128xf32>
    %c7_i32 = arith.constant 7 : i32
    %353 = arith.index_cast %c7_i32 : i32 to index
    %c0_96 = arith.constant 0 : index
    %c0_97 = arith.constant 0 : index
    %354 = vector.load %arg10[%353, %c0_96, %c0_97] : memref<8x8x512xf32, #tpu.memory_space<vmem>>, vector<1x8x512xf32>
    %355 = vector.shape_cast %354 : vector<1x8x512xf32> to vector<8x512xf32>
    %356 = arith.truncf %329 : vector<8x128xf32> to vector<8x128xbf16>
    %cst_98 = arith.constant dense<0.000000e+00> : vector<8x512xf32>
    %357 = tpu.matmul %356, %13, %cst_98 {dimension_numbers = #tpu.dot_dimension_numbers<[1], [0], [0], [1], [0, 0, 1, 1], [], []>} : vector<8x128xbf16>, vector<128x512xbf16>, vector<8x512xf32> -> vector<8x512xf32>
    %358 = arith.addf %355, %357 : vector<8x512xf32>
    %359 = vector.extract_strided_slice %358 {offsets = [0, 0], sizes = [8, 384], strides = [1, 1]} : vector<8x512xf32> to vector<8x384xf32>
    %cst_99 = arith.constant 5.000000e-01 : f32
    %360 = vector.broadcast %cst_99 : f32 to vector<8x384xf32>
    %361 = arith.mulf %360, %359 : vector<8x384xf32>
    %362 = math.tanh %361 : vector<8x384xf32>
    %cst_100 = arith.constant 5.000000e-01 : f32
    %363 = vector.broadcast %cst_100 : f32 to vector<8x384xf32>
    %364 = arith.mulf %363, %362 : vector<8x384xf32>
    %cst_101 = arith.constant 5.000000e-01 : f32
    %365 = vector.broadcast %cst_101 : f32 to vector<8x384xf32>
    %366 = arith.addf %364, %365 : vector<8x384xf32>
    %367 = vector.extract_strided_slice %366 {offsets = [0, 0], sizes = [8, 128], strides = [1, 1]} : vector<8x384xf32> to vector<8x128xf32>
    %368 = vector.extract_strided_slice %366 {offsets = [0, 128], sizes = [8, 128], strides = [1, 1]} : vector<8x384xf32> to vector<8x128xf32>
    %369 = vector.extract_strided_slice %366 {offsets = [0, 256], sizes = [8, 128], strides = [1, 1]} : vector<8x384xf32> to vector<8x128xf32>
    %370 = vector.extract_strided_slice %358 {offsets = [0, 384], sizes = [8, 128], strides = [1, 1]} : vector<8x512xf32> to vector<8x128xf32>
    %371 = math.tanh %370 : vector<8x128xf32>
    %372 = arith.mulf %368, %327 : vector<8x128xf32>
    %373 = arith.mulf %367, %371 : vector<8x128xf32>
    %374 = arith.addf %372, %373 : vector<8x128xf32>
    %375 = math.tanh %374 : vector<8x128xf32>
    %376 = arith.mulf %369, %375 : vector<8x128xf32>
    %377 = tpu.concatenate %376, %352 in 1 : vector<8x128xf32>, vector<8x128xf32> -> vector<8x256xf32>
    %378 = arith.truncf %377 : vector<8x256xf32> to vector<8x256xbf16>
    %cst_102 = arith.constant dense<0.000000e+00> : vector<8x512xf32>
    %379 = tpu.matmul %378, %14, %cst_102 {dimension_numbers = #tpu.dot_dimension_numbers<[1], [0], [0], [1], [0, 0, 1, 1], [], []>} : vector<8x256xbf16>, vector<256x512xbf16>, vector<8x512xf32> -> vector<8x512xf32>
    %380 = vector.broadcast %15 : vector<1x512xf32> to vector<8x512xf32>
    %381 = arith.addf %379, %380 : vector<8x512xf32>
    %382 = vector.extract_strided_slice %381 {offsets = [0, 0], sizes = [8, 384], strides = [1, 1]} : vector<8x512xf32> to vector<8x384xf32>
    %cst_103 = arith.constant 5.000000e-01 : f32
    %383 = vector.broadcast %cst_103 : f32 to vector<8x384xf32>
    %384 = arith.mulf %383, %382 : vector<8x384xf32>
    %385 = math.tanh %384 : vector<8x384xf32>
    %cst_104 = arith.constant 5.000000e-01 : f32
    %386 = vector.broadcast %cst_104 : f32 to vector<8x384xf32>
    %387 = arith.mulf %386, %385 : vector<8x384xf32>
    %cst_105 = arith.constant 5.000000e-01 : f32
    %388 = vector.broadcast %cst_105 : f32 to vector<8x384xf32>
    %389 = arith.addf %387, %388 : vector<8x384xf32>
    %390 = vector.extract_strided_slice %389 {offsets = [0, 0], sizes = [8, 128], strides = [1, 1]} : vector<8x384xf32> to vector<8x128xf32>
    %391 = vector.extract_strided_slice %389 {offsets = [0, 128], sizes = [8, 128], strides = [1, 1]} : vector<8x384xf32> to vector<8x128xf32>
    %392 = vector.extract_strided_slice %389 {offsets = [0, 256], sizes = [8, 128], strides = [1, 1]} : vector<8x384xf32> to vector<8x128xf32>
    %393 = vector.extract_strided_slice %381 {offsets = [0, 384], sizes = [8, 128], strides = [1, 1]} : vector<8x512xf32> to vector<8x128xf32>
    %394 = math.tanh %393 : vector<8x128xf32>
    %395 = arith.mulf %391, %350 : vector<8x128xf32>
    %396 = arith.mulf %390, %394 : vector<8x128xf32>
    %397 = arith.addf %395, %396 : vector<8x128xf32>
    %398 = math.tanh %397 : vector<8x128xf32>
    %399 = arith.mulf %392, %398 : vector<8x128xf32>
    %c8_i32 = arith.constant 8 : i32
    %c0_106 = arith.constant 0 : index
    %c0_107 = arith.constant 0 : index
    %c0_108 = arith.constant 0 : index
    %400 = vector.load %arg9[%c0_106, %c0_107, %c0_108] : memref<4x8x128xf32, #tpu.memory_space<vmem>>, vector<1x8x128xf32>
    %401 = vector.shape_cast %400 : vector<1x8x128xf32> to vector<8x128xf32>
    %402 = vector.shape_cast %376 : vector<8x128xf32> to vector<1x8x128xf32>
    tpu.vector_store %arg9[%c0_106, %c0_107, %c0_108], %402 {strides = array<i32>} : memref<4x8x128xf32, #tpu.memory_space<vmem>>, vector<1x8x128xf32>,
    %c1_109 = arith.constant 1 : index
    %c0_110 = arith.constant 0 : index
    %c0_111 = arith.constant 0 : index
    %403 = vector.load %arg9[%c1_109, %c0_110, %c0_111] : memref<4x8x128xf32, #tpu.memory_space<vmem>>, vector<1x8x128xf32>
    %404 = vector.shape_cast %403 : vector<1x8x128xf32> to vector<8x128xf32>
    %405 = vector.shape_cast %374 : vector<8x128xf32> to vector<1x8x128xf32>
    tpu.vector_store %arg9[%c1_109, %c0_110, %c0_111], %405 {strides = array<i32>} : memref<4x8x128xf32, #tpu.memory_space<vmem>>, vector<1x8x128xf32>,
    %c2_112 = arith.constant 2 : index
    %c0_113 = arith.constant 0 : index
    %c0_114 = arith.constant 0 : index
    %406 = vector.load %arg9[%c2_112, %c0_113, %c0_114] : memref<4x8x128xf32, #tpu.memory_space<vmem>>, vector<1x8x128xf32>
    %407 = vector.shape_cast %406 : vector<1x8x128xf32> to vector<8x128xf32>
    %408 = vector.shape_cast %399 : vector<8x128xf32> to vector<1x8x128xf32>
    tpu.vector_store %arg9[%c2_112, %c0_113, %c0_114], %408 {strides = array<i32>} : memref<4x8x128xf32, #tpu.memory_space<vmem>>, vector<1x8x128xf32>,
    %c3_115 = arith.constant 3 : index
    %c0_116 = arith.constant 0 : index
    %c0_117 = arith.constant 0 : index
    %409 = vector.load %arg9[%c3_115, %c0_116, %c0_117] : memref<4x8x128xf32, #tpu.memory_space<vmem>>, vector<1x8x128xf32>
    %410 = vector.shape_cast %409 : vector<1x8x128xf32> to vector<8x128xf32>
    %411 = vector.shape_cast %397 : vector<8x128xf32> to vector<1x8x128xf32>
    tpu.vector_store %arg9[%c3_115, %c0_116, %c0_117], %411 {strides = array<i32>} : memref<4x8x128xf32, #tpu.memory_space<vmem>>, vector<1x8x128xf32>,
    %c0_i32_118 = arith.constant 0 : i32
    %412 = arith.cmpi eq, %arg0, %c0_i32_118 : i32
    %413 = arith.extui %412 : i1 to i32
    %c0_i32_119 = arith.constant 0 : i32
    %414 = arith.cmpi ne, %413, %c0_i32_119 : i32
    scf.if %414 {
      %c0_120 = arith.constant 0 : index
      %c0_121 = arith.constant 0 : index
      %c0_122 = arith.constant 0 : index
      %415 = vector.load %arg7[%c0_120, %c0_121, %c0_122] : memref<2x8x128xf32, #tpu.memory_space<vmem>>, vector<1x8x128xf32>
      %416 = vector.shape_cast %415 : vector<1x8x128xf32> to vector<8x128xf32>
      %417 = vector.shape_cast %376 : vector<8x128xf32> to vector<1x8x128xf32>
      tpu.vector_store %arg7[%c0_120, %c0_121, %c0_122], %417 {strides = array<i32>} : memref<2x8x128xf32, #tpu.memory_space<vmem>>, vector<1x8x128xf32>,
      %c1_123 = arith.constant 1 : index
      %c0_124 = arith.constant 0 : index
      %c0_125 = arith.constant 0 : index
      %418 = vector.load %arg7[%c1_123, %c0_124, %c0_125] : memref<2x8x128xf32, #tpu.memory_space<vmem>>, vector<1x8x128xf32>
      %419 = vector.shape_cast %418 : vector<1x8x128xf32> to vector<8x128xf32>
      %420 = vector.shape_cast %399 : vector<8x128xf32> to vector<1x8x128xf32>
      tpu.vector_store %arg7[%c1_123, %c0_124, %c0_125], %420 {strides = array<i32>} : memref<2x8x128xf32, #tpu.memory_space<vmem>>, vector<1x8x128xf32>,
      %c0_126 = arith.constant 0 : index
      %c0_127 = arith.constant 0 : index
      %c0_128 = arith.constant 0 : index
      %421 = vector.load %arg8[%c0_126, %c0_127, %c0_128] : memref<2x8x128xf32, #tpu.memory_space<vmem>>, vector<1x8x128xf32>
      %422 = vector.shape_cast %421 : vector<1x8x128xf32> to vector<8x128xf32>
      %423 = vector.shape_cast %374 : vector<8x128xf32> to vector<1x8x128xf32>
      tpu.vector_store %arg8[%c0_126, %c0_127, %c0_128], %423 {strides = array<i32>} : memref<2x8x128xf32, #tpu.memory_space<vmem>>, vector<1x8x128xf32>,
      %c1_129 = arith.constant 1 : index
      %c0_130 = arith.constant 0 : index
      %c0_131 = arith.constant 0 : index
      %424 = vector.load %arg8[%c1_129, %c0_130, %c0_131] : memref<2x8x128xf32, #tpu.memory_space<vmem>>, vector<1x8x128xf32>
      %425 = vector.shape_cast %424 : vector<1x8x128xf32> to vector<8x128xf32>
      %426 = vector.shape_cast %397 : vector<8x128xf32> to vector<1x8x128xf32>
      tpu.vector_store %arg8[%c1_129, %c0_130, %c0_131], %426 {strides = array<i32>} : memref<2x8x128xf32, #tpu.memory_space<vmem>>, vector<1x8x128xf32>,
    } else {
    }
    return
  }
  func.func @transform_0(%arg0: i32) -> (i32, i32, i32) {
    %c0_i32 = arith.constant 0 : i32
    %c0_i32_0 = arith.constant 0 : i32
    %c0_i32_1 = arith.constant 0 : i32
    return %arg0, %c0_i32, %c0_i32_0 : i32, i32, i32
  }
  func.func @transform_1(%arg0: i32) -> (i32, i32) {
    %c0_i32 = arith.constant 0 : i32
    %c0_i32_0 = arith.constant 0 : i32
    %c0_i32_1 = arith.constant 0 : i32
    return %c0_i32, %c0_i32_0 : i32, i32
  }
  func.func @transform_2(%arg0: i32) -> (i32, i32) {
    %c0_i32 = arith.constant 0 : i32
    %c0_i32_0 = arith.constant 0 : i32
    %c0_i32_1 = arith.constant 0 : i32
    return %c0_i32, %c0_i32_0 : i32, i32
  }
  func.func @transform_3(%arg0: i32) -> (i32, i32) {
    %c0_i32 = arith.constant 0 : i32
    %c0_i32_0 = arith.constant 0 : i32
    %c0_i32_1 = arith.constant 0 : i32
    return %c0_i32, %c0_i32_0 : i32, i32
  }
  func.func @transform_4(%arg0: i32) -> (i32, i32) {
    %c0_i32 = arith.constant 0 : i32
    %c0_i32_0 = arith.constant 0 : i32
    %c0_i32_1 = arith.constant 0 : i32
    return %c0_i32, %c0_i32_0 : i32, i32
  }
  func.func @transform_5(%arg0: i32) -> (i32, i32) {
    %c0_i32 = arith.constant 0 : i32
    %c0_i32_0 = arith.constant 0 : i32
    %c0_i32_1 = arith.constant 0 : i32
    return %c0_i32, %c0_i32_0 : i32, i32
  }
  func.func @transform_6(%arg0: i32) -> (i32, i32, i32) {
    %c0_i32 = arith.constant 0 : i32
    %c0_i32_0 = arith.constant 0 : i32
    %c0_i32_1 = arith.constant 0 : i32
    %c0_i32_2 = arith.constant 0 : i32
    return %c0_i32, %c0_i32_0, %c0_i32_1 : i32, i32, i32
  }
  func.func @transform_7(%arg0: i32) -> (i32, i32, i32) {
    %c0_i32 = arith.constant 0 : i32
    %c0_i32_0 = arith.constant 0 : i32
    %c0_i32_1 = arith.constant 0 : i32
    %c0_i32_2 = arith.constant 0 : i32
    return %c0_i32, %c0_i32_0, %c0_i32_1 : i32, i32, i32
  }
}

</mosaic_0001>

<llo_original>
// kernel: tpu_custom_call.1
$region0: #{tpu_custom_call.1}
  #allocation0 [shape = 'u32[]', space=smem, size = 0x4, offset = 0x4, fixed_abs, tag = 'smem constant byte address 0x4 - core index']
  #allocation1 [shape = 'u32[144,128]{1,0:T(1,128)}', space=vmem, size = 0x12000, scoped, tag = 'internal scratch']
  #allocation2 [shape = 'f32[4,8,128]{2,1,0:T(8,128)}', space=vmem, size = 0x4000, scoped, tag = 'scratch operand']
  #allocation3 [shape = 'f32[8,8,512]{2,1,0:T(8,128)}', space=vmem, size = 0x20000, scoped, tag = 'scratch operand']
  %s0 = inlined_call_operand.hbm [shape: f32[8,8,16], index: 0, kind: input, shape index: {}]
  %s1 = inlined_call_operand.hbm [shape: bf16[16,512], index: 1, kind: input, shape index: {}]
  %s2 = inlined_call_operand.vmem [shape: f32[1,512], index: 2, kind: input, shape index: {}]
  %s3 = inlined_call_operand.hbm [shape: bf16[128,512], index: 3, kind: input, shape index: {}]
  %s4 = inlined_call_operand.hbm [shape: bf16[256,512], index: 4, kind: input, shape index: {}]
  %s5 = inlined_call_operand.vmem [shape: f32[1,512], index: 5, kind: input, shape index: {}]
  %s6 = inlined_call_operand.hbm [shape: f32[2,8,128], index: 6, kind: output, shape index: {0}]
  %s7 = inlined_call_operand.hbm [shape: f32[2,8,128], index: 7, kind: output, shape index: {1}]
  %8 = xla_tuple %s6, %s7
  %s9 = sld [smem:[#allocation0]]
  $region66: #{tpu_custom_call.1} parent=0
    _
  %s11 = ssub.s32 1, %s9
  %s12 = scalar_select 0, %s11, %s9
  $region1: #{tpu_custom_call.1} parent=0
    #allocation4 [shape = 'u8[32768]{0}', space=vmem, size = 0x8000, scoped, tag = 'input window, operand 0, single buffered']
    #allocation5 [shape = 's32[1]{0}', space=sflag, size = 0x4, scoped, tag = 'scoped memory for tpu_custom_call.1']
    #allocation6 [shape = 's32[1]{0}', space=sflag, size = 0x4, scoped, tag = 'scoped memory for tpu_custom_call.1']
    #allocation7 [shape = 'u8[16384]{0}', space=vmem, size = 0x4000, scoped, tag = 'input window, operand 1, single buffered']
    #allocation8 [shape = 's32[1]{0}', space=sflag, size = 0x4, scoped, tag = 'scoped memory for tpu_custom_call.1']
    #allocation9 [shape = 'u8[131072]{0}', space=vmem, size = 0x20000, scoped, tag = 'input window, operand 3, single buffered']
    #allocation10 [shape = 'u8[262144]{0}', space=vmem, size = 0x40000, scoped, tag = 'input window, operand 4, single buffered']
    #allocation11 [shape = 's32[1]{0}', space=sflag, size = 0x4, scoped, tag = 'scoped memory for tpu_custom_call.1']
    #allocation12 [shape = 'u8[8192]{0}', space=vmem, size = 0x2000, scoped, tag = 'output window, operand 0, single buffered']
    #allocation13 [shape = 'u8[8192]{0}', space=vmem, size = 0x2000, scoped, tag = 'output window, operand 1, single buffered']
    #allocation14 [shape = 's32[1]{0}', space=sflag, size = 0x4, scoped, tag = 'scoped memory for tpu_custom_call.1']
    %13 = vsyncpa [#allocation5], 0
    %14 = vsyncpa [#allocation8], 0
    %15 = vsyncpa [#allocation11], 0
    %16 = vsyncpa [#allocation6], 0
    %17 = vsyncpa [#allocation14], 0
    // Predicated region
    $region2: #{tpu_custom_call.1} parent=1 // pred_check
      _
    $region3: #{tpu_custom_call.1} parent=1 // pred_check_branch
      %19 = sbr.rel (0) target = $region5
    $region4: #{tpu_custom_call.1} parent=1 // pred_region
      %s21 = ssub.s32 1024, 1024
      %22 = vsyncadd [#allocation5], %s21
      %s23 = sshll.u32 [#allocation4], 4
      %s24 = int_to_ptr.vmem [resolvable:$true] %s23
      %29 = dma.hbm_to_vmem [thread:$0]  %s0, 1024, %s24, [#allocation5], 128, 128, 8
    $region5: #{tpu_custom_call.1} parent=1 // pred_fallthru
      _
    // Predicated region
    $region6: #{tpu_custom_call.1} parent=1 // pred_check
      _
    $region7: #{tpu_custom_call.1} parent=1 // pred_check_branch
      %31 = sbr.rel (0) target = $region9
    $region8: #{tpu_custom_call.1} parent=1 // pred_region
      %s33 = ssub.s32 512, 512
      %34 = vsyncadd [#allocation8], %s33
      %s35 = sshll.u32 [#allocation7], 4
      %s36 = int_to_ptr.vmem [resolvable:$true] %s35
      %41 = dma.hbm_to_vmem [thread:$0]  %s1, 512, %s36, [#allocation8], 256, 256, 16
    $region9: #{tpu_custom_call.1} parent=1 // pred_fallthru
      _
    // Predicated region
    $region10: #{tpu_custom_call.1} parent=1 // pred_check
      _
    $region11: #{tpu_custom_call.1} parent=1 // pred_check_branch
      %43 = sbr.rel (0) target = $region13
    $region12: #{tpu_custom_call.1} parent=1 // pred_region
      _
    $region13: #{tpu_custom_call.1} parent=1 // pred_fallthru
      _
    // Predicated region
    $region14: #{tpu_custom_call.1} parent=1 // pred_check
      _
    $region15: #{tpu_custom_call.1} parent=1 // pred_check_branch
      %45 = sbr.rel (0) target = $region17
    $region16: #{tpu_custom_call.1} parent=1 // pred_region
      %s47 = ssub.s32 4096, 4096
      %48 = vsyncadd [#allocation8], %s47
      %s49 = sshll.u32 [#allocation9], 4
      %s50 = int_to_ptr.vmem [resolvable:$true] %s49
      %55 = dma.hbm_to_vmem [thread:$0]  %s3, 4096, %s50, [#allocation8], 256, 256, 16
    $region17: #{tpu_custom_call.1} parent=1 // pred_fallthru
      _
    // Predicated region
    $region18: #{tpu_custom_call.1} parent=1 // pred_check
      _
    $region19: #{tpu_custom_call.1} parent=1 // pred_check_branch
      %57 = sbr.rel (0) target = $region21
    $region20: #{tpu_custom_call.1} parent=1 // pred_region
      %s59 = ssub.s32 8192, 8192
      %60 = vsyncadd [#allocation11], %s59
      %s61 = sshll.u32 [#allocation10], 4
      %s62 = int_to_ptr.vmem [resolvable:$true] %s61
      %67 = dma.hbm_to_vmem [thread:$0]  %s4, 8192, %s62, [#allocation11], 256, 256, 16
    $region21: #{tpu_custom_call.1} parent=1 // pred_fallthru
      _
    // Predicated region
    $region22: #{tpu_custom_call.1} parent=1 // pred_check
      _
    $region23: #{tpu_custom_call.1} parent=1 // pred_check_branch
      %69 = sbr.rel (0) target = $region25
    $region24: #{tpu_custom_call.1} parent=1 // pred_region
      _
    $region25: #{tpu_custom_call.1} parent=1 // pred_fallthru
      _
    // Predicated region
    $region26: #{tpu_custom_call.1} parent=1 // pred_check
      _
    $region27: #{tpu_custom_call.1} parent=1 // pred_check_branch
      %71 = sbr.rel (0) target = $region29
    $region28: #{tpu_custom_call.1} parent=1 // pred_region
      %72 = dma.done [#allocation5], 1024
    $region29: #{tpu_custom_call.1} parent=1 // pred_fallthru
      _
    // Predicated region
    $region30: #{tpu_custom_call.1} parent=1 // pred_check
      _
    $region31: #{tpu_custom_call.1} parent=1 // pred_check_branch
      %74 = sbr.rel (0) target = $region33
    $region32: #{tpu_custom_call.1} parent=1 // pred_region
      %75 = dma.done [#allocation8], 512
    $region33: #{tpu_custom_call.1} parent=1 // pred_fallthru
      _
    // Predicated region
    $region34: #{tpu_custom_call.1} parent=1 // pred_check
      _
    $region35: #{tpu_custom_call.1} parent=1 // pred_check_branch
      %77 = sbr.rel (0) target = $region37
    $region36: #{tpu_custom_call.1} parent=1 // pred_region
      %78 = dma.done [#allocation8], 4096
    $region37: #{tpu_custom_call.1} parent=1 // pred_fallthru
      _
    // Predicated region
    $region38: #{tpu_custom_call.1} parent=1 // pred_check
      _
    $region39: #{tpu_custom_call.1} parent=1 // pred_check_branch
      %80 = sbr.rel (0) target = $region41
    $region40: #{tpu_custom_call.1} parent=1 // pred_region
      %81 = dma.done [#allocation11], 8192
    $region41: #{tpu_custom_call.1} parent=1 // pred_fallthru
      _
    %p83 = scmp.eq.s32.totalorder 0, 0
    // Predicated region
    $region42: #{tpu_custom_call.1} parent=1 // pred_check
      %p84 = pneg %p83
    $region43: #{tpu_custom_call.1} parent=1 // pred_check_branch
      %86 = sbr.rel (%p84) target = $region45
    $region44: #{tpu_custom_call.1} parent=1 // pred_region
      %87 = vst [vmem:[#allocation2] sm:$0xff] 0.0
      %88 = vst [vmem:[#allocation2 + $0x8] sm:$0xff] 0.0
      %89 = vst [vmem:[#allocation2 + $0x10] sm:$0xff] 0.0
      %90 = vst [vmem:[#allocation2 + $0x18] sm:$0xff] 0.0
    $region45: #{tpu_custom_call.1} parent=1 // pred_fallthru
      _
    %v91 = vld [vmem:[#allocation4] sm:$0xff]
    %v92 = vld [vmem:[#allocation4 + $0x8] sm:$0xff]
    %v93 = vld [vmem:[#allocation4 + $0x10] sm:$0xff]
    %v94 = vld [vmem:[#allocation4 + $0x18] sm:$0xff]
    %v95 = vld [vmem:[#allocation4 + $0x20] sm:$0xff]
    %v96 = vld [vmem:[#allocation4 + $0x28] sm:$0xff]
    %v97 = vld [vmem:[#allocation4 + $0x30] sm:$0xff]
    %v98 = vld [vmem:[#allocation4 + $0x38] sm:$0xff]
    %v99 = vpack.c.bf16 %v92, %v91
    %v100 = vpack.c.bf16 %v94, %v93
    %v101 = vpack.c.bf16 %v96, %v95
    %v102 = vpack.c.bf16 %v98, %v97
    %v103 = vld [vmem:[#allocation7] sm:$0xff]
    %v104 = vld [vmem:[#allocation7 + $0x8] sm:$0xff]
    %v105 = vld [vmem:[#allocation7 + $0x10] sm:$0xff]
    %v106 = vld [vmem:[#allocation7 + $0x18] sm:$0xff]
    %v107 = vld [vmem:[%s2] sm:$0xf]
    %v109 = vlaneseq
    %v110 = vshrl.u32 %v109, 7
    %v111 = vsub.s32 0, %v110
    %v112 = vrot.slane %v107, %v111
    %v113 = vlaneseq
    %v114 = vshrl.u32 %v113, 7
    %v115 = vsub.s32 1, %v114
    %v116 = vrot.slane %v107, %v115
    %v117 = vlaneseq
    %v118 = vshrl.u32 %v117, 7
    %v119 = vsub.s32 2, %v118
    %v120 = vrot.slane %v107, %v119
    %v121 = vlaneseq
    %v122 = vshrl.u32 %v121, 7
    %v123 = vsub.s32 3, %v122
    %v124 = vrot.slane %v107, %v123
    %v133 = vunpack.c.l.b16 %v103
    %v134 = vunpack.c.h.b16 %v103
    %v135 = vunpack.c.l.b16 %v104
    %v136 = vunpack.c.h.b16 %v104
    %v137 = vunpack.c.l.b16 %v105
    %v138 = vunpack.c.h.b16 %v105
    %v139 = vunpack.c.l.b16 %v106
    %v140 = vunpack.c.h.b16 %v106
    %v141 = vpack.c.b16 %v137, %v133
    %v142 = vpack.c.b16 %v138, %v134
    %v143 = vpack.c.b16 %v139, %v135
    %v144 = vpack.c.b16 %v140, %v136
    %vm149 = vcmask 130048
    %v151 = vsel %vm149, %v99, 0
    %v154 = vsel %vm149, %v100, 0
    %v157 = vsel %vm149, %v101, 0
    %v160 = vsel %vm149, %v102, 0
    %162 = vmatprep.subr.bf16.mxu0 %v142
    %163 = vmatpush1.bf16.msra.mxu0 %v141
    %164 = vmatprep.subr.bf16.mxu0 0
    %165 = vmatpush1.bf16.msra.mxu0 0
    %166 = vmatprep.subr.bf16.mxu0 0
    %167 = vmatpush1.bf16.msra.mxu0 0
    %168 = vmatprep.subr.bf16.mxu0 0
    %169 = vmatpush1.bf16.msra.mxu0 0
    %170 = vmatprep.subr.bf16.mxu0 0
    %171 = vmatpush1.bf16.msra.mxu0 0
    %172 = vmatprep.subr.bf16.mxu0 0
    %173 = vmatpush1.bf16.msra.mxu0 0
    %174 = vmatprep.subr.bf16.mxu0 0
    %175 = vmatpush1.bf16.msra.mxu0 0
    %176 = vmatprep.subr.bf16.mxu0 0
    %177 = vmatpush1.bf16.msra.mxu0 0
    %178 = vmatprep.subr.bf16.mxu0 0
    %179 = vmatpush1.bf16.msra.mxu0 0
    %180 = vmatprep.subr.bf16.mxu0 0
    %181 = vmatpush1.bf16.msra.mxu0 0
    %182 = vmatprep.subr.bf16.mxu0 0
    %183 = vmatpush1.bf16.msra.mxu0 0
    %184 = vmatprep.subr.bf16.mxu0 0
    %185 = vmatpush1.bf16.msra.mxu0 0
    %186 = vmatprep.subr.bf16.mxu0 0
    %187 = vmatpush1.bf16.msra.mxu0 0
    %188 = vmatprep.subr.bf16.mxu0 0
    %189 = vmatpush1.bf16.msra.mxu0 0
    %190 = vmatprep.subr.bf16.mxu0 0
    %191 = vmatpush1.bf16.msra.mxu0 0
    %192 = vmatprep.subr.bf16.mxu0 0
    %193 = vmatpush1.bf16.msra.mxu0 0
    %194 = vmatprep.mubr.bf16.mxu0 0
    %195 = vmatmul.mubr.bf16.gmra.mrb[0].mxu0 %v151
    %v196 = vpop.f32.mrb[0].mxu0
    %v197 = vadd.f32 %v112, %v196
    %v198 = vpop.f32.mrb[0].mxu0
    %v199 = vadd.f32 %v116, %v198
    %v200 = vpop.f32.mrb[0].mxu0
    %v201 = vadd.f32 %v112, %v200
    %v202 = vpop.f32.mrb[0].mxu0
    %v203 = vadd.f32 %v116, %v202
    %204 = vmatprep.mubr.bf16.mxu0 0
    %205 = vmatmul.mubr.bf16.gmra.mrb[0].mxu0 %v154
    %v206 = vpop.f32.mrb[0].mxu0
    %v207 = vadd.f32 %v112, %v206
    %v208 = vpop.f32.mrb[0].mxu0
    %v209 = vadd.f32 %v116, %v208
    %v210 = vpop.f32.mrb[0].mxu0
    %v211 = vadd.f32 %v112, %v210
    %v212 = vpop.f32.mrb[0].mxu0
    %v213 = vadd.f32 %v116, %v212
    %214 = vmatprep.mubr.bf16.mxu0 0
    %215 = vmatmul.mubr.bf16.gmra.mrb[0].mxu0 %v157
    %v216 = vpop.f32.mrb[0].mxu0
    %v217 = vadd.f32 %v112, %v216
    %v218 = vpop.f32.mrb[0].mxu0
    %v219 = vadd.f32 %v116, %v218
    %v220 = vpop.f32.mrb[0].mxu0
    %v221 = vadd.f32 %v112, %v220
    %v222 = vpop.f32.mrb[0].mxu0
    %v223 = vadd.f32 %v116, %v222
    %224 = vmatprep.mubr.bf16.mxu0 0
    %225 = vmatmul.mubr.bf16.gmra.mrb[0].mxu0 %v160
    %v226 = vpop.f32.mrb[0].mxu0
    %v227 = vadd.f32 %v112, %v226
    %v228 = vpop.f32.mrb[0].mxu0
    %v229 = vadd.f32 %v116, %v228
    %v230 = vpop.f32.mrb[0].mxu0
    %v231 = vadd.f32 %v112, %v230
    %v232 = vpop.f32.mrb[0].mxu0
    %v233 = vadd.f32 %v116, %v232
    %234 = vdwg.mxu0
    %235 = vmatprep.subr.bf16.mxu0 %v144
    %236 = vmatpush1.bf16.msra.mxu0 %v143
    %237 = vmatprep.subr.bf16.mxu0 0
    %238 = vmatpush1.bf16.msra.mxu0 0
    %239 = vmatprep.subr.bf16.mxu0 0
    %240 = vmatpush1.bf16.msra.mxu0 0
    %241 = vmatprep.subr.bf16.mxu0 0
    %242 = vmatpush1.bf16.msra.mxu0 0
    %243 = vmatprep.subr.bf16.mxu0 0
    %244 = vmatpush1.bf16.msra.mxu0 0
    %245 = vmatprep.subr.bf16.mxu0 0
    %246 = vmatpush1.bf16.msra.mxu0 0
    %247 = vmatprep.subr.bf16.mxu0 0
    %248 = vmatpush1.bf16.msra.mxu0 0
    %249 = vmatprep.subr.bf16.mxu0 0
    %250 = vmatpush1.bf16.msra.mxu0 0
    %251 = vmatprep.subr.bf16.mxu0 0
    %252 = vmatpush1.bf16.msra.mxu0 0
    %253 = vmatprep.subr.bf16.mxu0 0
    %254 = vmatpush1.bf16.msra.mxu0 0
    %255 = vmatprep.subr.bf16.mxu0 0
    %256 = vmatpush1.bf16.msra.mxu0 0
    %257 = vmatprep.subr.bf16.mxu0 0
    %258 = vmatpush1.bf16.msra.mxu0 0
    %259 = vmatprep.subr.bf16.mxu0 0
    %260 = vmatpush1.bf16.msra.mxu0 0
    %261 = vmatprep.subr.bf16.mxu0 0
    %262 = vmatpush1.bf16.msra.mxu0 0
    %263 = vmatprep.subr.bf16.mxu0 0
    %264 = vmatpush1.bf16.msra.mxu0 0
    %265 = vmatprep.subr.bf16.mxu0 0
    %266 = vmatpush1.bf16.msra.mxu0 0
    %267 = vmatprep.mubr.bf16.mxu0 0
    %268 = vmatmul.mubr.bf16.gmra.mrb[0].mxu0 %v151
    %v269 = vpop.f32.mrb[0].mxu0
    %v270 = vadd.f32 %v120, %v269
    %v271 = vpop.f32.mrb[0].mxu0
    %v272 = vadd.f32 %v124, %v271
    %v273 = vpop.f32.mrb[0].mxu0
    %v274 = vadd.f32 %v120, %v273
    %v275 = vpop.f32.mrb[0].mxu0
    %v276 = vadd.f32 %v124, %v275
    %277 = vmatprep.mubr.bf16.mxu0 0
    %278 = vmatmul.mubr.bf16.gmra.mrb[0].mxu0 %v154
    %v279 = vpop.f32.mrb[0].mxu0
    %v280 = vadd.f32 %v120, %v279
    %v281 = vpop.f32.mrb[0].mxu0
    %v282 = vadd.f32 %v124, %v281
    %v283 = vpop.f32.mrb[0].mxu0
    %v284 = vadd.f32 %v120, %v283
    %v285 = vpop.f32.mrb[0].mxu0
    %v286 = vadd.f32 %v124, %v285
    %287 = vmatprep.mubr.bf16.mxu0 0
    %288 = vmatmul.mubr.bf16.gmra.mrb[0].mxu0 %v157
    %v289 = vpop.f32.mrb[0].mxu0
    %v290 = vadd.f32 %v120, %v289
    %v291 = vpop.f32.mrb[0].mxu0
    %v292 = vadd.f32 %v124, %v291
    %v293 = vpop.f32.mrb[0].mxu0
    %v294 = vadd.f32 %v120, %v293
    %v295 = vpop.f32.mrb[0].mxu0
    %v296 = vadd.f32 %v124, %v295
    %297 = vmatprep.mubr.bf16.mxu0 0
    %298 = vmatmul.mubr.bf16.gmra.mrb[0].mxu0 %v160
    %v299 = vpop.f32.mrb[0].mxu0
    %v300 = vadd.f32 %v120, %v299
    %v301 = vpop.f32.mrb[0].mxu0
    %v302 = vadd.f32 %v124, %v301
    %v303 = vpop.f32.mrb[0].mxu0
    %v304 = vadd.f32 %v120, %v303
    %v305 = vpop.f32.mrb[0].mxu0
    %v306 = vadd.f32 %v124, %v305
    %307 = vdwg.mxu0
    %308 = vst [vmem:[#allocation3] sm:$0xff] %v197
    %309 = vst [vmem:[#allocation3 + $0x8] sm:$0xff] %v199
    %310 = vst [vmem:[#allocation3 + $0x10] sm:$0xff] %v270
    %311 = vst [vmem:[#allocation3 + $0x18] sm:$0xff] %v272
    %312 = vst [vmem:[#allocation3 + $0x20] sm:$0xff] %v201
    %313 = vst [vmem:[#allocation3 + $0x28] sm:$0xff] %v203
    %314 = vst [vmem:[#allocation3 + $0x30] sm:$0xff] %v274
    %315 = vst [vmem:[#allocation3 + $0x38] sm:$0xff] %v276
    %316 = vst [vmem:[#allocation3 + $0x40] sm:$0xff] %v207
    %317 = vst [vmem:[#allocation3 + $0x48] sm:$0xff] %v209
    %318 = vst [vmem:[#allocation3 + $0x50] sm:$0xff] %v280
    %319 = vst [vmem:[#allocation3 + $0x58] sm:$0xff] %v282
    %320 = vst [vmem:[#allocation3 + $0x60] sm:$0xff] %v211
    %321 = vst [vmem:[#allocation3 + $0x68] sm:$0xff] %v213
    %322 = vst [vmem:[#allocation3 + $0x70] sm:$0xff] %v284
    %323 = vst [vmem:[#allocation3 + $0x78] sm:$0xff] %v286
    %324 = vst [vmem:[#allocation3 + $0x80] sm:$0xff] %v217
    %325 = vst [vmem:[#allocation3 + $0x88] sm:$0xff] %v219
    %326 = vst [vmem:[#allocation3 + $0x90] sm:$0xff] %v290
    %327 = vst [vmem:[#allocation3 + $0x98] sm:$0xff] %v292
    %328 = vst [vmem:[#allocation3 + $0xa0] sm:$0xff] %v221
    %329 = vst [vmem:[#allocation3 + $0xa8] sm:$0xff] %v223
    %330 = vst [vmem:[#allocation3 + $0xb0] sm:$0xff] %v294
    %331 = vst [vmem:[#allocation3 + $0xb8] sm:$0xff] %v296
    %332 = vst [vmem:[#allocation3 + $0xc0] sm:$0xff] %v227
    %333 = vst [vmem:[#allocation3 + $0xc8] sm:$0xff] %v229
    %334 = vst [vmem:[#allocation3 + $0xd0] sm:$0xff] %v300
    %335 = vst [vmem:[#allocation3 + $0xd8] sm:$0xff] %v302
    %336 = vst [vmem:[#allocation3 + $0xe0] sm:$0xff] %v231
    %337 = vst [vmem:[#allocation3 + $0xe8] sm:$0xff] %v233
    %338 = vst [vmem:[#allocation3 + $0xf0] sm:$0xff] %v304
    %339 = vst [vmem:[#allocation3 + $0xf8] sm:$0xff] %v306
    %v340 = vld [vmem:[#allocation9] sm:$0xff]
    %v341 = vld [vmem:[#allocation9 + $0x8] sm:$0xff]
    %v342 = vld [vmem:[#allocation9 + $0x10] sm:$0xff]
    %v343 = vld [vmem:[#allocation9 + $0x18] sm:$0xff]
    %v344 = vld [vmem:[#allocation9 + $0x20] sm:$0xff]
    %v345 = vld [vmem:[#allocation9 + $0x28] sm:$0xff]
    %v346 = vld [vmem:[#allocation9 + $0x30] sm:$0xff]
    %v347 = vld [vmem:[#allocation9 + $0x38] sm:$0xff]
    %v348 = vld [vmem:[#allocation9 + $0x40] sm:$0xff]
    %v349 = vld [vmem:[#allocation9 + $0x48] sm:$0xff]
    %v350 = vld [vmem:[#allocation9 + $0x50] sm:$0xff]
    %v351 = vld [vmem:[#allocation9 + $0x58] sm:$0xff]
    %v352 = vld [vmem:[#allocation9 + $0x60] sm:$0xff]
    %v353 = vld [vmem:[#allocation9 + $0x68] sm:$0xff]
    %v354 = vld [vmem:[#allocation9 + $0x70] sm:$0xff]
    %v355 = vld [vmem:[#allocation9 + $0x78] sm:$0xff]
    %v356 = vld [vmem:[#allocation9 + $0x80] sm:$0xff]
    %v357 = vld [vmem:[#allocation9 + $0x88] sm:$0xff]
    %v358 = vld [vmem:[#allocation9 + $0x90] sm:$0xff]
    %v359 = vld [vmem:[#allocation9 + $0x98] sm:$0xff]
    %v360 = vld [vmem:[#allocation9 + $0xa0] sm:$0xff]
    %v361 = vld [vmem:[#allocation9 + $0xa8] sm:$0xff]
    %v362 = vld [vmem:[#allocation9 + $0xb0] sm:$0xff]
    %v363 = vld [vmem:[#allocation9 + $0xb8] sm:$0xff]
    %v364 = vld [vmem:[#allocation9 + $0xc0] sm:$0xff]
    %v365 = vld [vmem:[#allocation9 + $0xc8] sm:$0xff]
    %v366 = vld [vmem:[#allocation9 + $0xd0] sm:$0xff]
    %v367 = vld [vmem:[#allocation9 + $0xd8] sm:$0xff]
    %v368 = vld [vmem:[#allocation9 + $0xe0] sm:$0xff]
    %v369 = vld [vmem:[#allocation9 + $0xe8] sm:$0xff]
    %v370 = vld [vmem:[#allocation9 + $0xf0] sm:$0xff]
    %v371 = vld [vmem:[#allocation9 + $0xf8] sm:$0xff]
    %v372 = vld [vmem:[#allocation10] sm:$0xff]
    %v373 = vld [vmem:[#allocation10 + $0x8] sm:$0xff]
    %v374 = vld [vmem:[#allocation10 + $0x10] sm:$0xff]
    %v375 = vld [vmem:[#allocation10 + $0x18] sm:$0xff]
    %v376 = vld [vmem:[#allocation10 + $0x20] sm:$0xff]
    %v377 = vld [vmem:[#allocation10 + $0x28] sm:$0xff]
    %v378 = vld [vmem:[#allocation10 + $0x30] sm:$0xff]
    %v379 = vld [vmem:[#allocation10 + $0x38] sm:$0xff]
    %v380 = vld [vmem:[#allocation10 + $0x40] sm:$0xff]
    %v381 = vld [vmem:[#allocation10 + $0x48] sm:$0xff]
    %v382 = vld [vmem:[#allocation10 + $0x50] sm:$0xff]
    %v383 = vld [vmem:[#allocation10 + $0x58] sm:$0xff]
    %v384 = vld [vmem:[#allocation10 + $0x60] sm:$0xff]
    %v385 = vld [vmem:[#allocation10 + $0x68] sm:$0xff]
    %v386 = vld [vmem:[#allocation10 + $0x70] sm:$0xff]
    %v387 = vld [vmem:[#allocation10 + $0x78] sm:$0xff]
    %v388 = vld [vmem:[#allocation10 + $0x80] sm:$0xff]
    %v389 = vld [vmem:[#allocation10 + $0x88] sm:$0xff]
    %v390 = vld [vmem:[#allocation10 + $0x90] sm:$0xff]
    %v391 = vld [vmem:[#allocation10 + $0x98] sm:$0xff]
    %v392 = vld [vmem:[#allocation10 + $0xa0] sm:$0xff]
    %v393 = vld [vmem:[#allocation10 + $0xa8] sm:$0xff]
    %v394 = vld [vmem:[#allocation10 + $0xb0] sm:$0xff]
    %v395 = vld [vmem:[#allocation10 + $0xb8] sm:$0xff]
    %v396 = vld [vmem:[#allocation10 + $0xc0] sm:$0xff]
    %v397 = vld [vmem:[#allocation10 + $0xc8] sm:$0xff]
    %v398 = vld [vmem:[#allocation10 + $0xd0] sm:$0xff]
    %v399 = vld [vmem:[#allocation10 + $0xd8] sm:$0xff]
    %v400 = vld [vmem:[#allocation10 + $0xe0] sm:$0xff]
    %v401 = vld [vmem:[#allocation10 + $0xe8] sm:$0xff]
    %v402 = vld [vmem:[#allocation10 + $0xf0] sm:$0xff]
    %v403 = vld [vmem:[#allocation10 + $0xf8] sm:$0xff]
    %v404 = vld [vmem:[#allocation10 + $0x100] sm:$0xff]
    %v405 = vld [vmem:[#allocation10 + $0x108] sm:$0xff]
    %v406 = vld [vmem:[#allocation10 + $0x110] sm:$0xff]
    %v407 = vld [vmem:[#allocation10 + $0x118] sm:$0xff]
    %v408 = vld [vmem:[#allocation10 + $0x120] sm:$0xff]
    %v409 = vld [vmem:[#allocation10 + $0x128] sm:$0xff]
    %v410 = vld [vmem:[#allocation10 + $0x130] sm:$0xff]
    %v411 = vld [vmem:[#allocation10 + $0x138] sm:$0xff]
    %v412 = vld [vmem:[#allocation10 + $0x140] sm:$0xff]
    %v413 = vld [vmem:[#allocation10 + $0x148] sm:$0xff]
    %v414 = vld [vmem:[#allocation10 + $0x150] sm:$0xff]
    %v415 = vld [vmem:[#allocation10 + $0x158] sm:$0xff]
    %v416 = vld [vmem:[#allocation10 + $0x160] sm:$0xff]
    %v417 = vld [vmem:[#allocation10 + $0x168] sm:$0xff]
    %v418 = vld [vmem:[#allocation10 + $0x170] sm:$0xff]
    %v419 = vld [vmem:[#allocation10 + $0x178] sm:$0xff]
    %v420 = vld [vmem:[#allocation10 + $0x180] sm:$0xff]
    %v421 = vld [vmem:[#allocation10 + $0x188] sm:$0xff]
    %v422 = vld [vmem:[#allocation10 + $0x190] sm:$0xff]
    %v423 = vld [vmem:[#allocation10 + $0x198] sm:$0xff]
    %v424 = vld [vmem:[#allocation10 + $0x1a0] sm:$0xff]
    %v425 = vld [vmem:[#allocation10 + $0x1a8] sm:$0xff]
    %v426 = vld [vmem:[#allocation10 + $0x1b0] sm:$0xff]
    %v427 = vld [vmem:[#allocation10 + $0x1b8] sm:$0xff]
    %v428 = vld [vmem:[#allocation10 + $0x1c0] sm:$0xff]
    %v429 = vld [vmem:[#allocation10 + $0x1c8] sm:$0xff]
    %v430 = vld [vmem:[#allocation10 + $0x1d0] sm:$0xff]
    %v431 = vld [vmem:[#allocation10 + $0x1d8] sm:$0xff]
    %v432 = vld [vmem:[#allocation10 + $0x1e0] sm:$0xff]
    %v433 = vld [vmem:[#allocation10 + $0x1e8] sm:$0xff]
    %v434 = vld [vmem:[#allocation10 + $0x1f0] sm:$0xff]
    %v435 = vld [vmem:[#allocation10 + $0x1f8] sm:$0xff]
    %v436 = vld [vmem:[%s5] sm:$0xf]
    %v437 = vld [vmem:[#allocation2] sm:$0xff]
    %s438 = scalar_lea.vmem [#allocation2], 8
    %v439 = vld [vmem:[%s438] sm:$0xff]
    %s440 = scalar_lea.vmem [#allocation2], 16
    %v441 = vld [vmem:[%s440] sm:$0xff]
    %s442 = scalar_lea.vmem [#allocation2], 24
    %v443 = vld [vmem:[%s442] sm:$0xff]
    %v444 = vld [vmem:[#allocation3] sm:$0xff]
    %v445 = vld [vmem:[#allocation3 + $0x8] sm:$0xff]
    %v446 = vld [vmem:[#allocation3 + $0x10] sm:$0xff]
    %v447 = vld [vmem:[#allocation3 + $0x18] sm:$0xff]
    %v448 = vpack.c.bf16 %v437, %v437
    %v481 = vunpack.c.l.b16 %v340
    %v482 = vunpack.c.h.b16 %v340
    %v483 = vunpack.c.l.b16 %v341
    %v484 = vunpack.c.h.b16 %v341
    %v485 = vunpack.c.l.b16 %v342
    %v486 = vunpack.c.h.b16 %v342
    %v487 = vunpack.c.l.b16 %v343
    %v488 = vunpack.c.h.b16 %v343
    %v489 = vunpack.c.l.b16 %v344
    %v490 = vunpack.c.h.b16 %v344
    %v491 = vunpack.c.l.b16 %v345
    %v492 = vunpack.c.h.b16 %v345
    %v493 = vunpack.c.l.b16 %v346
    %v494 = vunpack.c.h.b16 %v346
    %v495 = vunpack.c.l.b16 %v347
    %v496 = vunpack.c.h.b16 %v347
    %v497 = vunpack.c.l.b16 %v348
    %v498 = vunpack.c.h.b16 %v348
    %v499 = vunpack.c.l.b16 %v349
    %v500 = vunpack.c.h.b16 %v349
    %v501 = vunpack.c.l.b16 %v350
    %v502 = vunpack.c.h.b16 %v350
    %v503 = vunpack.c.l.b16 %v351
    %v504 = vunpack.c.h.b16 %v351
    %v505 = vunpack.c.l.b16 %v352
    %v506 = vunpack.c.h.b16 %v352
    %v507 = vunpack.c.l.b16 %v353
    %v508 = vunpack.c.h.b16 %v353
    %v509 = vunpack.c.l.b16 %v354
    %v510 = vunpack.c.h.b16 %v354
    %v511 = vunpack.c.l.b16 %v355
    %v512 = vunpack.c.h.b16 %v355
    %v513 = vunpack.c.l.b16 %v356
    %v514 = vunpack.c.h.b16 %v356
    %v515 = vunpack.c.l.b16 %v357
    %v516 = vunpack.c.h.b16 %v357
    %v517 = vunpack.c.l.b16 %v358
    %v518 = vunpack.c.h.b16 %v358
    %v519 = vunpack.c.l.b16 %v359
    %v520 = vunpack.c.h.b16 %v359
    %v521 = vunpack.c.l.b16 %v360
    %v522 = vunpack.c.h.b16 %v360
    %v523 = vunpack.c.l.b16 %v361
    %v524 = vunpack.c.h.b16 %v361
    %v525 = vunpack.c.l.b16 %v362
    %v526 = vunpack.c.h.b16 %v362
    %v527 = vunpack.c.l.b16 %v363
    %v528 = vunpack.c.h.b16 %v363
    %v529 = vunpack.c.l.b16 %v364
    %v530 = vunpack.c.h.b16 %v364
    %v531 = vunpack.c.l.b16 %v365
    %v532 = vunpack.c.h.b16 %v365
    %v533 = vunpack.c.l.b16 %v366
    %v534 = vunpack.c.h.b16 %v366
    %v535 = vunpack.c.l.b16 %v367
    %v536 = vunpack.c.h.b16 %v367
    %v537 = vunpack.c.l.b16 %v368
    %v538 = vunpack.c.h.b16 %v368
    %v539 = vunpack.c.l.b16 %v369
    %v540 = vunpack.c.h.b16 %v369
    %v541 = vunpack.c.l.b16 %v370
    %v542 = vunpack.c.h.b16 %v370
    %v543 = vunpack.c.l.b16 %v371
    %v544 = vunpack.c.h.b16 %v371
    %v545 = vpack.c.b16 %v485, %v481
    %v546 = vpack.c.b16 %v486, %v482
    %v547 = vpack.c.b16 %v487, %v483
    %v548 = vpack.c.b16 %v488, %v484
    %v549 = vpack.c.b16 %v493, %v489
    %v550 = vpack.c.b16 %v494, %v490
    %v551 = vpack.c.b16 %v495, %v491
    %v552 = vpack.c.b16 %v496, %v492
    %v553 = vpack.c.b16 %v501, %v497
    %v554 = vpack.c.b16 %v502, %v498
    %v555 = vpack.c.b16 %v503, %v499
    %v556 = vpack.c.b16 %v504, %v500
    %v557 = vpack.c.b16 %v509, %v505
    %v558 = vpack.c.b16 %v510, %v506
    %v559 = vpack.c.b16 %v511, %v507
    %v560 = vpack.c.b16 %v512, %v508
    %v561 = vpack.c.b16 %v517, %v513
    %v562 = vpack.c.b16 %v518, %v514
    %v563 = vpack.c.b16 %v519, %v515
    %v564 = vpack.c.b16 %v520, %v516
    %v565 = vpack.c.b16 %v525, %v521
    %v566 = vpack.c.b16 %v526, %v522
    %v567 = vpack.c.b16 %v527, %v523
    %v568 = vpack.c.b16 %v528, %v524
    %v569 = vpack.c.b16 %v533, %v529
    %v570 = vpack.c.b16 %v534, %v530
    %v571 = vpack.c.b16 %v535, %v531
    %v572 = vpack.c.b16 %v536, %v532
    %v573 = vpack.c.b16 %v541, %v537
    %v574 = vpack.c.b16 %v542, %v538
    %v575 = vpack.c.b16 %v543, %v539
    %v576 = vpack.c.b16 %v544, %v540
    %609 = vmatprep.subr.bf16.mxu0 %v546
    %610 = vmatpush1.bf16.msra.mxu0 %v545
    %611 = vmatprep.subr.bf16.mxu0 %v550
    %612 = vmatpush1.bf16.msra.mxu0 %v549
    %613 = vmatprep.subr.bf16.mxu0 %v554
    %614 = vmatpush1.bf16.msra.mxu0 %v553
    %615 = vmatprep.subr.bf16.mxu0 %v558
    %616 = vmatpush1.bf16.msra.mxu0 %v557
    %617 = vmatprep.subr.bf16.mxu0 %v562
    %618 = vmatpush1.bf16.msra.mxu0 %v561
    %619 = vmatprep.subr.bf16.mxu0 %v566
    %620 = vmatpush1.bf16.msra.mxu0 %v565
    %621 = vmatprep.subr.bf16.mxu0 %v570
    %622 = vmatpush1.bf16.msra.mxu0 %v569
    %623 = vmatprep.subr.bf16.mxu0 %v574
    %624 = vmatpush1.bf16.msra.mxu0 %v573
    %625 = vmatprep.subr.bf16.mxu0 0
    %626 = vmatpush1.bf16.msra.mxu0 0
    %627 = vmatprep.subr.bf16.mxu0 0
    %628 = vmatpush1.bf16.msra.mxu0 0
    %629 = vmatprep.subr.bf16.mxu0 0
    %630 = vmatpush1.bf16.msra.mxu0 0
    %631 = vmatprep.subr.bf16.mxu0 0
    %632 = vmatpush1.bf16.msra.mxu0 0
    %633 = vmatprep.subr.bf16.mxu0 0
    %634 = vmatpush1.bf16.msra.mxu0 0
    %635 = vmatprep.subr.bf16.mxu0 0
    %636 = vmatpush1.bf16.msra.mxu0 0
    %637 = vmatprep.subr.bf16.mxu0 0
    %638 = vmatpush1.bf16.msra.mxu0 0
    %639 = vmatprep.subr.bf16.mxu0 0
    %640 = vmatpush1.bf16.msra.mxu0 0
    %641 = vmatprep.mubr.bf16.mxu0 0
    %642 = vmatmul.mubr.bf16.gmra.mrb[0].mxu0 %v448
    %v643 = vpop.f32.mrb[0].mxu0
    %v644 = vadd.f32 0.0, %v643
    %v645 = vpop.f32.mrb[0].mxu0
    %v646 = vadd.f32 0.0, %v645
    %v647 = vpop.f32.mrb[0].mxu0
    %v648 = vpop.f32.mrb[0].mxu0
    %649 = vdwg.mxu0
    %650 = vmatprep.subr.bf16.mxu0 %v548
    %651 = vmatpush1.bf16.msra.mxu0 %v547
    %652 = vmatprep.subr.bf16.mxu0 %v552
    %653 = vmatpush1.bf16.msra.mxu0 %v551
    %654 = vmatprep.subr.bf16.mxu0 %v556
    %655 = vmatpush1.bf16.msra.mxu0 %v555
    %656 = vmatprep.subr.bf16.mxu0 %v560
    %657 = vmatpush1.bf16.msra.mxu0 %v559
    %658 = vmatprep.subr.bf16.mxu0 %v564
    %659 = vmatpush1.bf16.msra.mxu0 %v563
    %660 = vmatprep.subr.bf16.mxu0 %v568
    %661 = vmatpush1.bf16.msra.mxu0 %v567
    %662 = vmatprep.subr.bf16.mxu0 %v572
    %663 = vmatpush1.bf16.msra.mxu0 %v571
    %664 = vmatprep.subr.bf16.mxu0 %v576
    %665 = vmatpush1.bf16.msra.mxu0 %v575
    %666 = vmatprep.subr.bf16.mxu0 0
    %667 = vmatpush1.bf16.msra.mxu0 0
    %668 = vmatprep.subr.bf16.mxu0 0
    %669 = vmatpush1.bf16.msra.mxu0 0
    %670 = vmatprep.subr.bf16.mxu0 0
    %671 = vmatpush1.bf16.msra.mxu0 0
    %672 = vmatprep.subr.bf16.mxu0 0
    %673 = vmatpush1.bf16.msra.mxu0 0
    %674 = vmatprep.subr.bf16.mxu0 0
    %675 = vmatpush1.bf16.msra.mxu0 0
    %676 = vmatprep.subr.bf16.mxu0 0
    %677 = vmatpush1.bf16.msra.mxu0 0
    %678 = vmatprep.subr.bf16.mxu0 0
    %679 = vmatpush1.bf16.msra.mxu0 0
    %680 = vmatprep.subr.bf16.mxu0 0
    %681 = vmatpush1.bf16.msra.mxu0 0
    %682 = vmatprep.mubr.bf16.mxu0 0
    %683 = vmatmul.mubr.bf16.gmra.mrb[0].mxu0 %v448
    %v684 = vpop.f32.mrb[0].mxu0
    %v685 = vadd.f32 0.0, %v684
    %v686 = vpop.f32.mrb[0].mxu0
    %v687 = vadd.f32 0.0, %v686
    %v688 = vpop.f32.mrb[0].mxu0
    %v689 = vpop.f32.mrb[0].mxu0
    %690 = vdwg.mxu0
    %v691 = vadd.f32 %v444, %v644
    %v692 = vadd.f32 %v445, %v646
    %v693 = vadd.f32 %v446, %v685
    %v694 = vadd.f32 %v447, %v687
    %v695 = vmul.f32 %v691, 0.5
    %v696 = vmul.f32 %v692, 0.5
    %v697 = vmul.f32 %v693, 0.5
    %v698 = vtanh.pop %v695
    %v699 = vtanh.pop %v696
    %v700 = vtanh.pop %v697
    %v701 = vmul.f32 %v698, 0.5
    %v702 = vmul.f32 %v699, 0.5
    %v703 = vmul.f32 %v700, 0.5
    %v704 = vadd.f32 %v701, 0.5
    %v705 = vadd.f32 %v702, 0.5
    %v706 = vadd.f32 %v703, 0.5
    %v707 = vtanh.pop %v694
    %v708 = vmul.f32 %v705, %v439
    %v709 = vmul.f32 %v704, %v707
    %v710 = vadd.f32 %v708, %v709
    %v711 = vtanh.pop %v710
    %v712 = vmul.f32 %v706, %v711
    %v713 = vpack.c.bf16 %v712, %v712
    %v714 = vpack.c.bf16 %v441, %v441
    %v716 = vlaneseq
    %v717 = vshrl.u32 %v716, 7
    %v718 = vsub.s32 0, %v717
    %v719 = vrot.slane %v436, %v718
    %v720 = vlaneseq
    %v721 = vshrl.u32 %v720, 7
    %v722 = vsub.s32 1, %v721
    %v723 = vrot.slane %v436, %v722
    %v724 = vlaneseq
    %v725 = vshrl.u32 %v724, 7
    %v726 = vsub.s32 2, %v725
    %v727 = vrot.slane %v436, %v726
    %v728 = vlaneseq
    %v729 = vshrl.u32 %v728, 7
    %v730 = vsub.s32 3, %v729
    %v731 = vrot.slane %v436, %v730
    %v800 = vunpack.c.l.b16 %v372
    %v801 = vunpack.c.h.b16 %v372
    %v802 = vunpack.c.l.b16 %v373
    %v803 = vunpack.c.h.b16 %v373
    %v804 = vunpack.c.l.b16 %v374
    %v805 = vunpack.c.h.b16 %v374
    %v806 = vunpack.c.l.b16 %v375
    %v807 = vunpack.c.h.b16 %v375
    %v808 = vunpack.c.l.b16 %v376
    %v809 = vunpack.c.h.b16 %v376
    %v810 = vunpack.c.l.b16 %v377
    %v811 = vunpack.c.h.b16 %v377
    %v812 = vunpack.c.l.b16 %v378
    %v813 = vunpack.c.h.b16 %v378
    %v814 = vunpack.c.l.b16 %v379
    %v815 = vunpack.c.h.b16 %v379
    %v816 = vunpack.c.l.b16 %v380
    %v817 = vunpack.c.h.b16 %v380
    %v818 = vunpack.c.l.b16 %v381
    %v819 = vunpack.c.h.b16 %v381
    %v820 = vunpack.c.l.b16 %v382
    %v821 = vunpack.c.h.b16 %v382
    %v822 = vunpack.c.l.b16 %v383
    %v823 = vunpack.c.h.b16 %v383
    %v824 = vunpack.c.l.b16 %v384
    %v825 = vunpack.c.h.b16 %v384
    %v826 = vunpack.c.l.b16 %v385
    %v827 = vunpack.c.h.b16 %v385
    %v828 = vunpack.c.l.b16 %v386
    %v829 = vunpack.c.h.b16 %v386
    %v830 = vunpack.c.l.b16 %v387
    %v831 = vunpack.c.h.b16 %v387
    %v832 = vunpack.c.l.b16 %v388
    %v833 = vunpack.c.h.b16 %v388
    %v834 = vunpack.c.l.b16 %v389
    %v835 = vunpack.c.h.b16 %v389
    %v836 = vunpack.c.l.b16 %v390
    %v837 = vunpack.c.h.b16 %v390
    %v838 = vunpack.c.l.b16 %v391
    %v839 = vunpack.c.h.b16 %v391
    %v840 = vunpack.c.l.b16 %v392
    %v841 = vunpack.c.h.b16 %v392
    %v842 = vunpack.c.l.b16 %v393
    %v843 = vunpack.c.h.b16 %v393
    %v844 = vunpack.c.l.b16 %v394
    %v845 = vunpack.c.h.b16 %v394
    %v846 = vunpack.c.l.b16 %v395
    %v847 = vunpack.c.h.b16 %v395
    %v848 = vunpack.c.l.b16 %v396
    %v849 = vunpack.c.h.b16 %v396
    %v850 = vunpack.c.l.b16 %v397
    %v851 = vunpack.c.h.b16 %v397
    %v852 = vunpack.c.l.b16 %v398
    %v853 = vunpack.c.h.b16 %v398
    %v854 = vunpack.c.l.b16 %v399
    %v855 = vunpack.c.h.b16 %v399
    %v856 = vunpack.c.l.b16 %v400
    %v857 = vunpack.c.h.b16 %v400
    %v858 = vunpack.c.l.b16 %v401
    %v859 = vunpack.c.h.b16 %v401
    %v860 = vunpack.c.l.b16 %v402
    %v861 = vunpack.c.h.b16 %v402
    %v862 = vunpack.c.l.b16 %v403
    %v863 = vunpack.c.h.b16 %v403
    %v864 = vunpack.c.l.b16 %v404
    %v865 = vunpack.c.h.b16 %v404
    %v866 = vunpack.c.l.b16 %v405
    %v867 = vunpack.c.h.b16 %v405
    %v868 = vunpack.c.l.b16 %v406
    %v869 = vunpack.c.h.b16 %v406
    %v870 = vunpack.c.l.b16 %v407
    %v871 = vunpack.c.h.b16 %v407
    %v872 = vunpack.c.l.b16 %v408
    %v873 = vunpack.c.h.b16 %v408
    %v874 = vunpack.c.l.b16 %v409
    %v875 = vunpack.c.h.b16 %v409
    %v876 = vunpack.c.l.b16 %v410
    %v877 = vunpack.c.h.b16 %v410
    %v878 = vunpack.c.l.b16 %v411
    %v879 = vunpack.c.h.b16 %v411
    %v880 = vunpack.c.l.b16 %v412
    %v881 = vunpack.c.h.b16 %v412
    %v882 = vunpack.c.l.b16 %v413
    %v883 = vunpack.c.h.b16 %v413
    %v884 = vunpack.c.l.b16 %v414
    %v885 = vunpack.c.h.b16 %v414
    %v886 = vunpack.c.l.b16 %v415
    %v887 = vunpack.c.h.b16 %v415
    %v888 = vunpack.c.l.b16 %v416
    %v889 = vunpack.c.h.b16 %v416
    %v890 = vunpack.c.l.b16 %v417
    %v891 = vunpack.c.h.b16 %v417
    %v892 = vunpack.c.l.b16 %v418
    %v893 = vunpack.c.h.b16 %v418
    %v894 = vunpack.c.l.b16 %v419
    %v895 = vunpack.c.h.b16 %v419
    %v896 = vunpack.c.l.b16 %v420
    %v897 = vunpack.c.h.b16 %v420
    %v898 = vunpack.c.l.b16 %v421
    %v899 = vunpack.c.h.b16 %v421
    %v900 = vunpack.c.l.b16 %v422
    %v901 = vunpack.c.h.b16 %v422
    %v902 = vunpack.c.l.b16 %v423
    %v903 = vunpack.c.h.b16 %v423
    %v904 = vunpack.c.l.b16 %v424
    %v905 = vunpack.c.h.b16 %v424
    %v906 = vunpack.c.l.b16 %v425
    %v907 = vunpack.c.h.b16 %v425
    %v908 = vunpack.c.l.b16 %v426
    %v909 = vunpack.c.h.b16 %v426
    %v910 = vunpack.c.l.b16 %v427
    %v911 = vunpack.c.h.b16 %v427
    %v912 = vunpack.c.l.b16 %v428
    %v913 = vunpack.c.h.b16 %v428
    %v914 = vunpack.c.l.b16 %v429
    %v915 = vunpack.c.h.b16 %v429
    %v916 = vunpack.c.l.b16 %v430
    %v917 = vunpack.c.h.b16 %v430
    %v918 = vunpack.c.l.b16 %v431
    %v919 = vunpack.c.h.b16 %v431
    %v920 = vunpack.c.l.b16 %v432
    %v921 = vunpack.c.h.b16 %v432
    %v922 = vunpack.c.l.b16 %v433
    %v923 = vunpack.c.h.b16 %v433
    %v924 = vunpack.c.l.b16 %v434
    %v925 = vunpack.c.h.b16 %v434
    %v926 = vunpack.c.l.b16 %v435
    %v927 = vunpack.c.h.b16 %v435
    %v928 = vpack.c.b16 %v804, %v800
    %v929 = vpack.c.b16 %v805, %v801
    %v930 = vpack.c.b16 %v806, %v802
    %v931 = vpack.c.b16 %v807, %v803
    %v932 = vpack.c.b16 %v812, %v808
    %v933 = vpack.c.b16 %v813, %v809
    %v934 = vpack.c.b16 %v814, %v810
    %v935 = vpack.c.b16 %v815, %v811
    %v936 = vpack.c.b16 %v820, %v816
    %v937 = vpack.c.b16 %v821, %v817
    %v938 = vpack.c.b16 %v822, %v818
    %v939 = vpack.c.b16 %v823, %v819
    %v940 = vpack.c.b16 %v828, %v824
    %v941 = vpack.c.b16 %v829, %v825
    %v942 = vpack.c.b16 %v830, %v826
    %v943 = vpack.c.b16 %v831, %v827
    %v944 = vpack.c.b16 %v836, %v832
    %v945 = vpack.c.b16 %v837, %v833
    %v946 = vpack.c.b16 %v838, %v834
    %v947 = vpack.c.b16 %v839, %v835
    %v948 = vpack.c.b16 %v844, %v840
    %v949 = vpack.c.b16 %v845, %v841
    %v950 = vpack.c.b16 %v846, %v842
    %v951 = vpack.c.b16 %v847, %v843
    %v952 = vpack.c.b16 %v852, %v848
    %v953 = vpack.c.b16 %v853, %v849
    %v954 = vpack.c.b16 %v854, %v850
    %v955 = vpack.c.b16 %v855, %v851
    %v956 = vpack.c.b16 %v860, %v856
    %v957 = vpack.c.b16 %v861, %v857
    %v958 = vpack.c.b16 %v862, %v858
    %v959 = vpack.c.b16 %v863, %v859
    %v960 = vpack.c.b16 %v868, %v864
    %v961 = vpack.c.b16 %v869, %v865
    %v962 = vpack.c.b16 %v870, %v866
    %v963 = vpack.c.b16 %v871, %v867
    %v964 = vpack.c.b16 %v876, %v872
    %v965 = vpack.c.b16 %v877, %v873
    %v966 = vpack.c.b16 %v878, %v874
    %v967 = vpack.c.b16 %v879, %v875
    %v968 = vpack.c.b16 %v884, %v880
    %v969 = vpack.c.b16 %v885, %v881
    %v970 = vpack.c.b16 %v886, %v882
    %v971 = vpack.c.b16 %v887, %v883
    %v972 = vpack.c.b16 %v892, %v888
    %v973 = vpack.c.b16 %v893, %v889
    %v974 = vpack.c.b16 %v894, %v890
    %v975 = vpack.c.b16 %v895, %v891
    %v976 = vpack.c.b16 %v900, %v896
    %v977 = vpack.c.b16 %v901, %v897
    %v978 = vpack.c.b16 %v902, %v898
    %v979 = vpack.c.b16 %v903, %v899
    %v980 = vpack.c.b16 %v908, %v904
    %v981 = vpack.c.b16 %v909, %v905
    %v982 = vpack.c.b16 %v910, %v906
    %v983 = vpack.c.b16 %v911, %v907
    %v984 = vpack.c.b16 %v916, %v912
    %v985 = vpack.c.b16 %v917, %v913
    %v986 = vpack.c.b16 %v918, %v914
    %v987 = vpack.c.b16 %v919, %v915
    %v988 = vpack.c.b16 %v924, %v920
    %v989 = vpack.c.b16 %v925, %v921
    %v990 = vpack.c.b16 %v926, %v922
    %v991 = vpack.c.b16 %v927, %v923
    %1056 = vmatprep.subr.bf16.mxu0 %v929
    %1057 = vmatpush1.bf16.msra.mxu0 %v928
    %1058 = vmatprep.subr.bf16.mxu0 %v933
    %1059 = vmatpush1.bf16.msra.mxu0 %v932
    %1060 = vmatprep.subr.bf16.mxu0 %v937
    %1061 = vmatpush1.bf16.msra.mxu0 %v936
    %1062 = vmatprep.subr.bf16.mxu0 %v941
    %1063 = vmatpush1.bf16.msra.mxu0 %v940
    %1064 = vmatprep.subr.bf16.mxu0 %v945
    %1065 = vmatpush1.bf16.msra.mxu0 %v944
    %1066 = vmatprep.subr.bf16.mxu0 %v949
    %1067 = vmatpush1.bf16.msra.mxu0 %v948
    %1068 = vmatprep.subr.bf16.mxu0 %v953
    %1069 = vmatpush1.bf16.msra.mxu0 %v952
    %1070 = vmatprep.subr.bf16.mxu0 %v957
    %1071 = vmatpush1.bf16.msra.mxu0 %v956
    %1072 = vmatprep.subr.bf16.mxu0 %v961
    %1073 = vmatpush1.bf16.msra.mxu0 %v960
    %1074 = vmatprep.subr.bf16.mxu0 %v965
    %1075 = vmatpush1.bf16.msra.mxu0 %v964
    %1076 = vmatprep.subr.bf16.mxu0 %v969
    %1077 = vmatpush1.bf16.msra.mxu0 %v968
    %1078 = vmatprep.subr.bf16.mxu0 %v973
    %1079 = vmatpush1.bf16.msra.mxu0 %v972
    %1080 = vmatprep.subr.bf16.mxu0 %v977
    %1081 = vmatpush1.bf16.msra.mxu0 %v976
    %1082 = vmatprep.subr.bf16.mxu0 %v981
    %1083 = vmatpush1.bf16.msra.mxu0 %v980
    %1084 = vmatprep.subr.bf16.mxu0 %v985
    %1085 = vmatpush1.bf16.msra.mxu0 %v984
    %1086 = vmatprep.subr.bf16.mxu0 %v989
    %1087 = vmatpush1.bf16.msra.mxu0 %v988
    %1088 = vmatprep.mubr.bf16.mxu0 %v714
    %1089 = vmatmul.mubr.bf16.gmra.mrb[0].mxu0 %v713
    %v1090 = vpop.f32.mrb[0].mxu0
    %v1091 = vadd.f32 %v719, %v1090
    %v1092 = vpop.f32.mrb[0].mxu0
    %v1093 = vadd.f32 %v723, %v1092
    %v1094 = vpop.f32.mrb[0].mxu0
    %v1095 = vpop.f32.mrb[0].mxu0
    %1096 = vdwg.mxu0
    %1097 = vmatprep.subr.bf16.mxu0 %v931
    %1098 = vmatpush1.bf16.msra.mxu0 %v930
    %1099 = vmatprep.subr.bf16.mxu0 %v935
    %1100 = vmatpush1.bf16.msra.mxu0 %v934
    %1101 = vmatprep.subr.bf16.mxu0 %v939
    %1102 = vmatpush1.bf16.msra.mxu0 %v938
    %1103 = vmatprep.subr.bf16.mxu0 %v943
    %1104 = vmatpush1.bf16.msra.mxu0 %v942
    %1105 = vmatprep.subr.bf16.mxu0 %v947
    %1106 = vmatpush1.bf16.msra.mxu0 %v946
    %1107 = vmatprep.subr.bf16.mxu0 %v951
    %1108 = vmatpush1.bf16.msra.mxu0 %v950
    %1109 = vmatprep.subr.bf16.mxu0 %v955
    %1110 = vmatpush1.bf16.msra.mxu0 %v954
    %1111 = vmatprep.subr.bf16.mxu0 %v959
    %1112 = vmatpush1.bf16.msra.mxu0 %v958
    %1113 = vmatprep.subr.bf16.mxu0 %v963
    %1114 = vmatpush1.bf16.msra.mxu0 %v962
    %1115 = vmatprep.subr.bf16.mxu0 %v967
    %1116 = vmatpush1.bf16.msra.mxu0 %v966
    %1117 = vmatprep.subr.bf16.mxu0 %v971
    %1118 = vmatpush1.bf16.msra.mxu0 %v970
    %1119 = vmatprep.subr.bf16.mxu0 %v975
    %1120 = vmatpush1.bf16.msra.mxu0 %v974
    %1121 = vmatprep.subr.bf16.mxu0 %v979
    %1122 = vmatpush1.bf16.msra.mxu0 %v978
    %1123 = vmatprep.subr.bf16.mxu0 %v983
    %1124 = vmatpush1.bf16.msra.mxu0 %v982
    %1125 = vmatprep.subr.bf16.mxu0 %v987
    %1126 = vmatpush1.bf16.msra.mxu0 %v986
    %1127 = vmatprep.subr.bf16.mxu0 %v991
    %1128 = vmatpush1.bf16.msra.mxu0 %v990
    %1129 = vmatprep.mubr.bf16.mxu0 %v714
    %1130 = vmatmul.mubr.bf16.gmra.mrb[0].mxu0 %v713
    %v1131 = vpop.f32.mrb[0].mxu0
    %v1132 = vadd.f32 %v727, %v1131
    %v1133 = vpop.f32.mrb[0].mxu0
    %v1134 = vadd.f32 %v731, %v1133
    %v1135 = vpop.f32.mrb[0].mxu0
    %v1136 = vpop.f32.mrb[0].mxu0
    %1137 = vdwg.mxu0
    %v1138 = vmul.f32 %v1091, 0.5
    %v1139 = vmul.f32 %v1093, 0.5
    %v1140 = vmul.f32 %v1132, 0.5
    %v1141 = vtanh.pop %v1138
    %v1142 = vtanh.pop %v1139
    %v1143 = vtanh.pop %v1140
    %v1144 = vmul.f32 %v1141, 0.5
    %v1145 = vmul.f32 %v1142, 0.5
    %v1146 = vmul.f32 %v1143, 0.5
    %v1147 = vadd.f32 %v1144, 0.5
    %v1148 = vadd.f32 %v1145, 0.5
    %v1149 = vadd.f32 %v1146, 0.5
    %v1150 = vtanh.pop %v1134
    %v1151 = vmul.f32 %v1148, %v443
    %v1152 = vmul.f32 %v1147, %v1150
    %v1153 = vadd.f32 %v1151, %v1152
    %v1154 = vtanh.pop %v1153
    %v1155 = vmul.f32 %v1149, %v1154
    %s1156 = scalar_lea.vmem [#allocation3], 32
    %v1157 = vld [vmem:[%s1156] sm:$0xff]
    %v1158 = vld [vmem:[%s1156 + $0x8] sm:$0xff]
    %v1159 = vld [vmem:[%s1156 + $0x10] sm:$0xff]
    %v1160 = vld [vmem:[%s1156 + $0x18] sm:$0xff]
    %1161 = vmatprep.subr.bf16.mxu0 %v546
    %1162 = vmatpush1.bf16.msra.mxu0 %v545
    %1163 = vmatprep.subr.bf16.mxu0 %v550
    %1164 = vmatpush1.bf16.msra.mxu0 %v549
    %1165 = vmatprep.subr.bf16.mxu0 %v554
    %1166 = vmatpush1.bf16.msra.mxu0 %v553
    %1167 = vmatprep.subr.bf16.mxu0 %v558
    %1168 = vmatpush1.bf16.msra.mxu0 %v557
    %1169 = vmatprep.subr.bf16.mxu0 %v562
    %1170 = vmatpush1.bf16.msra.mxu0 %v561
    %1171 = vmatprep.subr.bf16.mxu0 %v566
    %1172 = vmatpush1.bf16.msra.mxu0 %v565
    %1173 = vmatprep.subr.bf16.mxu0 %v570
    %1174 = vmatpush1.bf16.msra.mxu0 %v569
    %1175 = vmatprep.subr.bf16.mxu0 %v574
    %1176 = vmatpush1.bf16.msra.mxu0 %v573
    %1177 = vmatprep.subr.bf16.mxu0 0
    %1178 = vmatpush1.bf16.msra.mxu0 0
    %1179 = vmatprep.subr.bf16.mxu0 0
    %1180 = vmatpush1.bf16.msra.mxu0 0
    %1181 = vmatprep.subr.bf16.mxu0 0
    %1182 = vmatpush1.bf16.msra.mxu0 0
    %1183 = vmatprep.subr.bf16.mxu0 0
    %1184 = vmatpush1.bf16.msra.mxu0 0
    %1185 = vmatprep.subr.bf16.mxu0 0
    %1186 = vmatpush1.bf16.msra.mxu0 0
    %1187 = vmatprep.subr.bf16.mxu0 0
    %1188 = vmatpush1.bf16.msra.mxu0 0
    %1189 = vmatprep.subr.bf16.mxu0 0
    %1190 = vmatpush1.bf16.msra.mxu0 0
    %1191 = vmatprep.subr.bf16.mxu0 0
    %1192 = vmatpush1.bf16.msra.mxu0 0
    %1193 = vmatprep.mubr.bf16.mxu0 0
    %1194 = vmatmul.mubr.bf16.gmra.mrb[0].mxu0 %v713
    %v1195 = vpop.f32.mrb[0].mxu0
    %v1196 = vadd.f32 0.0, %v1195
    %v1197 = vpop.f32.mrb[0].mxu0
    %v1198 = vadd.f32 0.0, %v1197
    %v1199 = vpop.f32.mrb[0].mxu0
    %v1200 = vpop.f32.mrb[0].mxu0
    %1201 = vdwg.mxu0
    %1202 = vmatprep.subr.bf16.mxu0 %v548
    %1203 = vmatpush1.bf16.msra.mxu0 %v547
    %1204 = vmatprep.subr.bf16.mxu0 %v552
    %1205 = vmatpush1.bf16.msra.mxu0 %v551
    %1206 = vmatprep.subr.bf16.mxu0 %v556
    %1207 = vmatpush1.bf16.msra.mxu0 %v555
    %1208 = vmatprep.subr.bf16.mxu0 %v560
    %1209 = vmatpush1.bf16.msra.mxu0 %v559
    %1210 = vmatprep.subr.bf16.mxu0 %v564
    %1211 = vmatpush1.bf16.msra.mxu0 %v563
    %1212 = vmatprep.subr.bf16.mxu0 %v568
    %1213 = vmatpush1.bf16.msra.mxu0 %v567
    %1214 = vmatprep.subr.bf16.mxu0 %v572
    %1215 = vmatpush1.bf16.msra.mxu0 %v571
    %1216 = vmatprep.subr.bf16.mxu0 %v576
    %1217 = vmatpush1.bf16.msra.mxu0 %v575
    %1218 = vmatprep.subr.bf16.mxu0 0
    %1219 = vmatpush1.bf16.msra.mxu0 0
    %1220 = vmatprep.subr.bf16.mxu0 0
    %1221 = vmatpush1.bf16.msra.mxu0 0
    %1222 = vmatprep.subr.bf16.mxu0 0
    %1223 = vmatpush1.bf16.msra.mxu0 0
    %1224 = vmatprep.subr.bf16.mxu0 0
    %1225 = vmatpush1.bf16.msra.mxu0 0
    %1226 = vmatprep.subr.bf16.mxu0 0
    %1227 = vmatpush1.bf16.msra.mxu0 0
    %1228 = vmatprep.subr.bf16.mxu0 0
    %1229 = vmatpush1.bf16.msra.mxu0 0
    %1230 = vmatprep.subr.bf16.mxu0 0
    %1231 = vmatpush1.bf16.msra.mxu0 0
    %1232 = vmatprep.subr.bf16.mxu0 0
    %1233 = vmatpush1.bf16.msra.mxu0 0
    %1234 = vmatprep.mubr.bf16.mxu0 0
    %1235 = vmatmul.mubr.bf16.gmra.mrb[0].mxu0 %v713
    %v1236 = vpop.f32.mrb[0].mxu0
    %v1237 = vadd.f32 0.0, %v1236
    %v1238 = vpop.f32.mrb[0].mxu0
    %v1239 = vadd.f32 0.0, %v1238
    %v1240 = vpop.f32.mrb[0].mxu0
    %v1241 = vpop.f32.mrb[0].mxu0
    %1242 = vdwg.mxu0
    %v1243 = vadd.f32 %v1157, %v1196
    %v1244 = vadd.f32 %v1158, %v1198
    %v1245 = vadd.f32 %v1159, %v1237
    %v1246 = vadd.f32 %v1160, %v1239
    %v1247 = vmul.f32 %v1243, 0.5
    %v1248 = vmul.f32 %v1244, 0.5
    %v1249 = vmul.f32 %v1245, 0.5
    %v1250 = vtanh.pop %v1247
    %v1251 = vtanh.pop %v1248
    %v1252 = vtanh.pop %v1249
    %v1253 = vmul.f32 %v1250, 0.5
    %v1254 = vmul.f32 %v1251, 0.5
    %v1255 = vmul.f32 %v1252, 0.5
    %v1256 = vadd.f32 %v1253, 0.5
    %v1257 = vadd.f32 %v1254, 0.5
    %v1258 = vadd.f32 %v1255, 0.5
    %v1259 = vtanh.pop %v1246
    %v1260 = vmul.f32 %v1257, %v710
    %v1261 = vmul.f32 %v1256, %v1259
    %v1262 = vadd.f32 %v1260, %v1261
    %v1263 = vtanh.pop %v1262
    %v1264 = vmul.f32 %v1258, %v1263
    %v1265 = vpack.c.bf16 %v1264, %v1264
    %v1266 = vpack.c.bf16 %v1155, %v1155
    %1267 = vmatprep.subr.bf16.mxu0 %v929
    %1268 = vmatpush1.bf16.msra.mxu0 %v928
    %1269 = vmatprep.subr.bf16.mxu0 %v933
    %1270 = vmatpush1.bf16.msra.mxu0 %v932
    %1271 = vmatprep.subr.bf16.mxu0 %v937
    %1272 = vmatpush1.bf16.msra.mxu0 %v936
    %1273 = vmatprep.subr.bf16.mxu0 %v941
    %1274 = vmatpush1.bf16.msra.mxu0 %v940
    %1275 = vmatprep.subr.bf16.mxu0 %v945
    %1276 = vmatpush1.bf16.msra.mxu0 %v944
    %1277 = vmatprep.subr.bf16.mxu0 %v949
    %1278 = vmatpush1.bf16.msra.mxu0 %v948
    %1279 = vmatprep.subr.bf16.mxu0 %v953
    %1280 = vmatpush1.bf16.msra.mxu0 %v952
    %1281 = vmatprep.subr.bf16.mxu0 %v957
    %1282 = vmatpush1.bf16.msra.mxu0 %v956
    %1283 = vmatprep.subr.bf16.mxu0 %v961
    %1284 = vmatpush1.bf16.msra.mxu0 %v960
    %1285 = vmatprep.subr.bf16.mxu0 %v965
    %1286 = vmatpush1.bf16.msra.mxu0 %v964
    %1287 = vmatprep.subr.bf16.mxu0 %v969
    %1288 = vmatpush1.bf16.msra.mxu0 %v968
    %1289 = vmatprep.subr.bf16.mxu0 %v973
    %1290 = vmatpush1.bf16.msra.mxu0 %v972
    %1291 = vmatprep.subr.bf16.mxu0 %v977
    %1292 = vmatpush1.bf16.msra.mxu0 %v976
    %1293 = vmatprep.subr.bf16.mxu0 %v981
    %1294 = vmatpush1.bf16.msra.mxu0 %v980
    %1295 = vmatprep.subr.bf16.mxu0 %v985
    %1296 = vmatpush1.bf16.msra.mxu0 %v984
    %1297 = vmatprep.subr.bf16.mxu0 %v989
    %1298 = vmatpush1.bf16.msra.mxu0 %v988
    %1299 = vmatprep.mubr.bf16.mxu0 %v1266
    %1300 = vmatmul.mubr.bf16.gmra.mrb[0].mxu0 %v1265
    %v1301 = vpop.f32.mrb[0].mxu0
    %v1302 = vadd.f32 %v719, %v1301
    %v1303 = vpop.f32.mrb[0].mxu0
    %v1304 = vadd.f32 %v723, %v1303
    %v1305 = vpop.f32.mrb[0].mxu0
    %v1306 = vpop.f32.mrb[0].mxu0
    %1307 = vdwg.mxu0
    %1308 = vmatprep.subr.bf16.mxu0 %v931
    %1309 = vmatpush1.bf16.msra.mxu0 %v930
    %1310 = vmatprep.subr.bf16.mxu0 %v935
    %1311 = vmatpush1.bf16.msra.mxu0 %v934
    %1312 = vmatprep.subr.bf16.mxu0 %v939
    %1313 = vmatpush1.bf16.msra.mxu0 %v938
    %1314 = vmatprep.subr.bf16.mxu0 %v943
    %1315 = vmatpush1.bf16.msra.mxu0 %v942
    %1316 = vmatprep.subr.bf16.mxu0 %v947
    %1317 = vmatpush1.bf16.msra.mxu0 %v946
    %1318 = vmatprep.subr.bf16.mxu0 %v951
    %1319 = vmatpush1.bf16.msra.mxu0 %v950
    %1320 = vmatprep.subr.bf16.mxu0 %v955
    %1321 = vmatpush1.bf16.msra.mxu0 %v954
    %1322 = vmatprep.subr.bf16.mxu0 %v959
    %1323 = vmatpush1.bf16.msra.mxu0 %v958
    %1324 = vmatprep.subr.bf16.mxu0 %v963
    %1325 = vmatpush1.bf16.msra.mxu0 %v962
    %1326 = vmatprep.subr.bf16.mxu0 %v967
    %1327 = vmatpush1.bf16.msra.mxu0 %v966
    %1328 = vmatprep.subr.bf16.mxu0 %v971
    %1329 = vmatpush1.bf16.msra.mxu0 %v970
    %1330 = vmatprep.subr.bf16.mxu0 %v975
    %1331 = vmatpush1.bf16.msra.mxu0 %v974
    %1332 = vmatprep.subr.bf16.mxu0 %v979
    %1333 = vmatpush1.bf16.msra.mxu0 %v978
    %1334 = vmatprep.subr.bf16.mxu0 %v983
    %1335 = vmatpush1.bf16.msra.mxu0 %v982
    %1336 = vmatprep.subr.bf16.mxu0 %v987
    %1337 = vmatpush1.bf16.msra.mxu0 %v986
    %1338 = vmatprep.subr.bf16.mxu0 %v991
    %1339 = vmatpush1.bf16.msra.mxu0 %v990
    %1340 = vmatprep.mubr.bf16.mxu0 %v1266
    %1341 = vmatmul.mubr.bf16.gmra.mrb[0].mxu0 %v1265
    %v1342 = vpop.f32.mrb[0].mxu0
    %v1343 = vadd.f32 %v727, %v1342
    %v1344 = vpop.f32.mrb[0].mxu0
    %v1345 = vadd.f32 %v731, %v1344
    %v1346 = vpop.f32.mrb[0].mxu0
    %v1347 = vpop.f32.mrb[0].mxu0
    %1348 = vdwg.mxu0
    %v1349 = vmul.f32 %v1302, 0.5
    %v1350 = vmul.f32 %v1304, 0.5
    %v1351 = vmul.f32 %v1343, 0.5
    %v1352 = vtanh.pop %v1349
    %v1353 = vtanh.pop %v1350
    %v1354 = vtanh.pop %v1351
    %v1355 = vmul.f32 %v1352, 0.5
    %v1356 = vmul.f32 %v1353, 0.5
    %v1357 = vmul.f32 %v1354, 0.5
    %v1358 = vadd.f32 %v1355, 0.5
    %v1359 = vadd.f32 %v1356, 0.5
    %v1360 = vadd.f32 %v1357, 0.5
    %v1361 = vtanh.pop %v1345
    %v1362 = vmul.f32 %v1359, %v1153
    %v1363 = vmul.f32 %v1358, %v1361
    %v1364 = vadd.f32 %v1362, %v1363
    %v1365 = vtanh.pop %v1364
    %v1366 = vmul.f32 %v1360, %v1365
    %s1367 = scalar_lea.vmem [#allocation3], 64
    %v1368 = vld [vmem:[%s1367] sm:$0xff]
    %v1369 = vld [vmem:[%s1367 + $0x8] sm:$0xff]
    %v1370 = vld [vmem:[%s1367 + $0x10] sm:$0xff]
    %v1371 = vld [vmem:[%s1367 + $0x18] sm:$0xff]
    %1372 = vmatprep.subr.bf16.mxu0 %v546
    %1373 = vmatpush1.bf16.msra.mxu0 %v545
    %1374 = vmatprep.subr.bf16.mxu0 %v550
    %1375 = vmatpush1.bf16.msra.mxu0 %v549
    %1376 = vmatprep.subr.bf16.mxu0 %v554
    %1377 = vmatpush1.bf16.msra.mxu0 %v553
    %1378 = vmatprep.subr.bf16.mxu0 %v558
    %1379 = vmatpush1.bf16.msra.mxu0 %v557
    %1380 = vmatprep.subr.bf16.mxu0 %v562
    %1381 = vmatpush1.bf16.msra.mxu0 %v561
    %1382 = vmatprep.subr.bf16.mxu0 %v566
    %1383 = vmatpush1.bf16.msra.mxu0 %v565
    %1384 = vmatprep.subr.bf16.mxu0 %v570
    %1385 = vmatpush1.bf16.msra.mxu0 %v569
    %1386 = vmatprep.subr.bf16.mxu0 %v574
    %1387 = vmatpush1.bf16.msra.mxu0 %v573
    %1388 = vmatprep.subr.bf16.mxu0 0
    %1389 = vmatpush1.bf16.msra.mxu0 0
    %1390 = vmatprep.subr.bf16.mxu0 0
    %1391 = vmatpush1.bf16.msra.mxu0 0
    %1392 = vmatprep.subr.bf16.mxu0 0
    %1393 = vmatpush1.bf16.msra.mxu0 0
    %1394 = vmatprep.subr.bf16.mxu0 0
    %1395 = vmatpush1.bf16.msra.mxu0 0
    %1396 = vmatprep.subr.bf16.mxu0 0
    %1397 = vmatpush1.bf16.msra.mxu0 0
    %1398 = vmatprep.subr.bf16.mxu0 0
    %1399 = vmatpush1.bf16.msra.mxu0 0
    %1400 = vmatprep.subr.bf16.mxu0 0
    %1401 = vmatpush1.bf16.msra.mxu0 0
    %1402 = vmatprep.subr.bf16.mxu0 0
    %1403 = vmatpush1.bf16.msra.mxu0 0
    %1404 = vmatprep.mubr.bf16.mxu0 0
    %1405 = vmatmul.mubr.bf16.gmra.mrb[0].mxu0 %v1265
    %v1406 = vpop.f32.mrb[0].mxu0
    %v1407 = vadd.f32 0.0, %v1406
    %v1408 = vpop.f32.mrb[0].mxu0
    %v1409 = vadd.f32 0.0, %v1408
    %v1410 = vpop.f32.mrb[0].mxu0
    %v1411 = vpop.f32.mrb[0].mxu0
    %1412 = vdwg.mxu0
    %1413 = vmatprep.subr.bf16.mxu0 %v548
    %1414 = vmatpush1.bf16.msra.mxu0 %v547
    %1415 = vmatprep.subr.bf16.mxu0 %v552
    %1416 = vmatpush1.bf16.msra.mxu0 %v551
    %1417 = vmatprep.subr.bf16.mxu0 %v556
    %1418 = vmatpush1.bf16.msra.mxu0 %v555
    %1419 = vmatprep.subr.bf16.mxu0 %v560
    %1420 = vmatpush1.bf16.msra.mxu0 %v559
    %1421 = vmatprep.subr.bf16.mxu0 %v564
    %1422 = vmatpush1.bf16.msra.mxu0 %v563
    %1423 = vmatprep.subr.bf16.mxu0 %v568
    %1424 = vmatpush1.bf16.msra.mxu0 %v567
    %1425 = vmatprep.subr.bf16.mxu0 %v572
    %1426 = vmatpush1.bf16.msra.mxu0 %v571
    %1427 = vmatprep.subr.bf16.mxu0 %v576
    %1428 = vmatpush1.bf16.msra.mxu0 %v575
    %1429 = vmatprep.subr.bf16.mxu0 0
    %1430 = vmatpush1.bf16.msra.mxu0 0
    %1431 = vmatprep.subr.bf16.mxu0 0
    %1432 = vmatpush1.bf16.msra.mxu0 0
    %1433 = vmatprep.subr.bf16.mxu0 0
    %1434 = vmatpush1.bf16.msra.mxu0 0
    %1435 = vmatprep.subr.bf16.mxu0 0
    %1436 = vmatpush1.bf16.msra.mxu0 0
    %1437 = vmatprep.subr.bf16.mxu0 0
    %1438 = vmatpush1.bf16.msra.mxu0 0
    %1439 = vmatprep.subr.bf16.mxu0 0
    %1440 = vmatpush1.bf16.msra.mxu0 0
    %1441 = vmatprep.subr.bf16.mxu0 0
    %1442 = vmatpush1.bf16.msra.mxu0 0
    %1443 = vmatprep.subr.bf16.mxu0 0
    %1444 = vmatpush1.bf16.msra.mxu0 0
    %1445 = vmatprep.mubr.bf16.mxu0 0
    %1446 = vmatmul.mubr.bf16.gmra.mrb[0].mxu0 %v1265
    %v1447 = vpop.f32.mrb[0].mxu0
    %v1448 = vadd.f32 0.0, %v1447
    %v1449 = vpop.f32.mrb[0].mxu0
    %v1450 = vadd.f32 0.0, %v1449
    %v1451 = vpop.f32.mrb[0].mxu0
    %v1452 = vpop.f32.mrb[0].mxu0
    %1453 = vdwg.mxu0
    %v1454 = vadd.f32 %v1368, %v1407
    %v1455 = vadd.f32 %v1369, %v1409
    %v1456 = vadd.f32 %v1370, %v1448
    %v1457 = vadd.f32 %v1371, %v1450
    %v1458 = vmul.f32 %v1454, 0.5
    %v1459 = vmul.f32 %v1455, 0.5
    %v1460 = vmul.f32 %v1456, 0.5
    %v1461 = vtanh.pop %v1458
    %v1462 = vtanh.pop %v1459
    %v1463 = vtanh.pop %v1460
    %v1464 = vmul.f32 %v1461, 0.5
    %v1465 = vmul.f32 %v1462, 0.5
    %v1466 = vmul.f32 %v1463, 0.5
    %v1467 = vadd.f32 %v1464, 0.5
    %v1468 = vadd.f32 %v1465, 0.5
    %v1469 = vadd.f32 %v1466, 0.5
    %v1470 = vtanh.pop %v1457
    %v1471 = vmul.f32 %v1468, %v1262
    %v1472 = vmul.f32 %v1467, %v1470
    %v1473 = vadd.f32 %v1471, %v1472
    %v1474 = vtanh.pop %v1473
    %v1475 = vmul.f32 %v1469, %v1474
    %v1476 = vpack.c.bf16 %v1475, %v1475
    %v1477 = vpack.c.bf16 %v1366, %v1366
    %1478 = vmatprep.subr.bf16.mxu0 %v929
    %1479 = vmatpush1.bf16.msra.mxu0 %v928
    %1480 = vmatprep.subr.bf16.mxu0 %v933
    %1481 = vmatpush1.bf16.msra.mxu0 %v932
    %1482 = vmatprep.subr.bf16.mxu0 %v937
    %1483 = vmatpush1.bf16.msra.mxu0 %v936
    %1484 = vmatprep.subr.bf16.mxu0 %v941
    %1485 = vmatpush1.bf16.msra.mxu0 %v940
    %1486 = vmatprep.subr.bf16.mxu0 %v945
    %1487 = vmatpush1.bf16.msra.mxu0 %v944
    %1488 = vmatprep.subr.bf16.mxu0 %v949
    %1489 = vmatpush1.bf16.msra.mxu0 %v948
    %1490 = vmatprep.subr.bf16.mxu0 %v953
    %1491 = vmatpush1.bf16.msra.mxu0 %v952
    %1492 = vmatprep.subr.bf16.mxu0 %v957
    %1493 = vmatpush1.bf16.msra.mxu0 %v956
    %1494 = vmatprep.subr.bf16.mxu0 %v961
    %1495 = vmatpush1.bf16.msra.mxu0 %v960
    %1496 = vmatprep.subr.bf16.mxu0 %v965
    %1497 = vmatpush1.bf16.msra.mxu0 %v964
    %1498 = vmatprep.subr.bf16.mxu0 %v969
    %1499 = vmatpush1.bf16.msra.mxu0 %v968
    %1500 = vmatprep.subr.bf16.mxu0 %v973
    %1501 = vmatpush1.bf16.msra.mxu0 %v972
    %1502 = vmatprep.subr.bf16.mxu0 %v977
    %1503 = vmatpush1.bf16.msra.mxu0 %v976
    %1504 = vmatprep.subr.bf16.mxu0 %v981
    %1505 = vmatpush1.bf16.msra.mxu0 %v980
    %1506 = vmatprep.subr.bf16.mxu0 %v985
    %1507 = vmatpush1.bf16.msra.mxu0 %v984
    %1508 = vmatprep.subr.bf16.mxu0 %v989
    %1509 = vmatpush1.bf16.msra.mxu0 %v988
    %1510 = vmatprep.mubr.bf16.mxu0 %v1477
    %1511 = vmatmul.mubr.bf16.gmra.mrb[0].mxu0 %v1476
    %v1512 = vpop.f32.mrb[0].mxu0
    %v1513 = vadd.f32 %v719, %v1512
    %v1514 = vpop.f32.mrb[0].mxu0
    %v1515 = vadd.f32 %v723, %v1514
    %v1516 = vpop.f32.mrb[0].mxu0
    %v1517 = vpop.f32.mrb[0].mxu0
    %1518 = vdwg.mxu0
    %1519 = vmatprep.subr.bf16.mxu0 %v931
    %1520 = vmatpush1.bf16.msra.mxu0 %v930
    %1521 = vmatprep.subr.bf16.mxu0 %v935
    %1522 = vmatpush1.bf16.msra.mxu0 %v934
    %1523 = vmatprep.subr.bf16.mxu0 %v939
    %1524 = vmatpush1.bf16.msra.mxu0 %v938
    %1525 = vmatprep.subr.bf16.mxu0 %v943
    %1526 = vmatpush1.bf16.msra.mxu0 %v942
    %1527 = vmatprep.subr.bf16.mxu0 %v947
    %1528 = vmatpush1.bf16.msra.mxu0 %v946
    %1529 = vmatprep.subr.bf16.mxu0 %v951
    %1530 = vmatpush1.bf16.msra.mxu0 %v950
    %1531 = vmatprep.subr.bf16.mxu0 %v955
    %1532 = vmatpush1.bf16.msra.mxu0 %v954
    %1533 = vmatprep.subr.bf16.mxu0 %v959
    %1534 = vmatpush1.bf16.msra.mxu0 %v958
    %1535 = vmatprep.subr.bf16.mxu0 %v963
    %1536 = vmatpush1.bf16.msra.mxu0 %v962
    %1537 = vmatprep.subr.bf16.mxu0 %v967
    %1538 = vmatpush1.bf16.msra.mxu0 %v966
    %1539 = vmatprep.subr.bf16.mxu0 %v971
    %1540 = vmatpush1.bf16.msra.mxu0 %v970
    %1541 = vmatprep.subr.bf16.mxu0 %v975
    %1542 = vmatpush1.bf16.msra.mxu0 %v974
    %1543 = vmatprep.subr.bf16.mxu0 %v979
    %1544 = vmatpush1.bf16.msra.mxu0 %v978
    %1545 = vmatprep.subr.bf16.mxu0 %v983
    %1546 = vmatpush1.bf16.msra.mxu0 %v982
    %1547 = vmatprep.subr.bf16.mxu0 %v987
    %1548 = vmatpush1.bf16.msra.mxu0 %v986
    %1549 = vmatprep.subr.bf16.mxu0 %v991
    %1550 = vmatpush1.bf16.msra.mxu0 %v990
    %1551 = vmatprep.mubr.bf16.mxu0 %v1477
    %1552 = vmatmul.mubr.bf16.gmra.mrb[0].mxu0 %v1476
    %v1553 = vpop.f32.mrb[0].mxu0
    %v1554 = vadd.f32 %v727, %v1553
    %v1555 = vpop.f32.mrb[0].mxu0
    %v1556 = vadd.f32 %v731, %v1555
    %v1557 = vpop.f32.mrb[0].mxu0
    %v1558 = vpop.f32.mrb[0].mxu0
    %1559 = vdwg.mxu0
    %v1560 = vmul.f32 %v1513, 0.5
    %v1561 = vmul.f32 %v1515, 0.5
    %v1562 = vmul.f32 %v1554, 0.5
    %v1563 = vtanh.pop %v1560
    %v1564 = vtanh.pop %v1561
    %v1565 = vtanh.pop %v1562
    %v1566 = vmul.f32 %v1563, 0.5
    %v1567 = vmul.f32 %v1564, 0.5
    %v1568 = vmul.f32 %v1565, 0.5
    %v1569 = vadd.f32 %v1566, 0.5
    %v1570 = vadd.f32 %v1567, 0.5
    %v1571 = vadd.f32 %v1568, 0.5
    %v1572 = vtanh.pop %v1556
    %v1573 = vmul.f32 %v1570, %v1364
    %v1574 = vmul.f32 %v1569, %v1572
    %v1575 = vadd.f32 %v1573, %v1574
    %v1576 = vtanh.pop %v1575
    %v1577 = vmul.f32 %v1571, %v1576
    %s1578 = scalar_lea.vmem [#allocation3], 96
    %v1579 = vld [vmem:[%s1578] sm:$0xff]
    %v1580 = vld [vmem:[%s1578 + $0x8] sm:$0xff]
    %v1581 = vld [vmem:[%s1578 + $0x10] sm:$0xff]
    %v1582 = vld [vmem:[%s1578 + $0x18] sm:$0xff]
    %1583 = vmatprep.subr.bf16.mxu0 %v546
    %1584 = vmatpush1.bf16.msra.mxu0 %v545
    %1585 = vmatprep.subr.bf16.mxu0 %v550
    %1586 = vmatpush1.bf16.msra.mxu0 %v549
    %1587 = vmatprep.subr.bf16.mxu0 %v554
    %1588 = vmatpush1.bf16.msra.mxu0 %v553
    %1589 = vmatprep.subr.bf16.mxu0 %v558
    %1590 = vmatpush1.bf16.msra.mxu0 %v557
    %1591 = vmatprep.subr.bf16.mxu0 %v562
    %1592 = vmatpush1.bf16.msra.mxu0 %v561
    %1593 = vmatprep.subr.bf16.mxu0 %v566
    %1594 = vmatpush1.bf16.msra.mxu0 %v565
    %1595 = vmatprep.subr.bf16.mxu0 %v570
    %1596 = vmatpush1.bf16.msra.mxu0 %v569
    %1597 = vmatprep.subr.bf16.mxu0 %v574
    %1598 = vmatpush1.bf16.msra.mxu0 %v573
    %1599 = vmatprep.subr.bf16.mxu0 0
    %1600 = vmatpush1.bf16.msra.mxu0 0
    %1601 = vmatprep.subr.bf16.mxu0 0
    %1602 = vmatpush1.bf16.msra.mxu0 0
    %1603 = vmatprep.subr.bf16.mxu0 0
    %1604 = vmatpush1.bf16.msra.mxu0 0
    %1605 = vmatprep.subr.bf16.mxu0 0
    %1606 = vmatpush1.bf16.msra.mxu0 0
    %1607 = vmatprep.subr.bf16.mxu0 0
    %1608 = vmatpush1.bf16.msra.mxu0 0
    %1609 = vmatprep.subr.bf16.mxu0 0
    %1610 = vmatpush1.bf16.msra.mxu0 0
    %1611 = vmatprep.subr.bf16.mxu0 0
    %1612 = vmatpush1.bf16.msra.mxu0 0
    %1613 = vmatprep.subr.bf16.mxu0 0
    %1614 = vmatpush1.bf16.msra.mxu0 0
    %1615 = vmatprep.mubr.bf16.mxu0 0
    %1616 = vmatmul.mubr.bf16.gmra.mrb[0].mxu0 %v1476
    %v1617 = vpop.f32.mrb[0].mxu0
    %v1618 = vadd.f32 0.0, %v1617
    %v1619 = vpop.f32.mrb[0].mxu0
    %v1620 = vadd.f32 0.0, %v1619
    %v1621 = vpop.f32.mrb[0].mxu0
    %v1622 = vpop.f32.mrb[0].mxu0
    %1623 = vdwg.mxu0
    %1624 = vmatprep.subr.bf16.mxu0 %v548
    %1625 = vmatpush1.bf16.msra.mxu0 %v547
    %1626 = vmatprep.subr.bf16.mxu0 %v552
    %1627 = vmatpush1.bf16.msra.mxu0 %v551
    %1628 = vmatprep.subr.bf16.mxu0 %v556
    %1629 = vmatpush1.bf16.msra.mxu0 %v555
    %1630 = vmatprep.subr.bf16.mxu0 %v560
    %1631 = vmatpush1.bf16.msra.mxu0 %v559
    %1632 = vmatprep.subr.bf16.mxu0 %v564
    %1633 = vmatpush1.bf16.msra.mxu0 %v563
    %1634 = vmatprep.subr.bf16.mxu0 %v568
    %1635 = vmatpush1.bf16.msra.mxu0 %v567
    %1636 = vmatprep.subr.bf16.mxu0 %v572
    %1637 = vmatpush1.bf16.msra.mxu0 %v571
    %1638 = vmatprep.subr.bf16.mxu0 %v576
    %1639 = vmatpush1.bf16.msra.mxu0 %v575
    %1640 = vmatprep.subr.bf16.mxu0 0
    %1641 = vmatpush1.bf16.msra.mxu0 0
    %1642 = vmatprep.subr.bf16.mxu0 0
    %1643 = vmatpush1.bf16.msra.mxu0 0
    %1644 = vmatprep.subr.bf16.mxu0 0
    %1645 = vmatpush1.bf16.msra.mxu0 0
    %1646 = vmatprep.subr.bf16.mxu0 0
    %1647 = vmatpush1.bf16.msra.mxu0 0
    %1648 = vmatprep.subr.bf16.mxu0 0
    %1649 = vmatpush1.bf16.msra.mxu0 0
    %1650 = vmatprep.subr.bf16.mxu0 0
    %1651 = vmatpush1.bf16.msra.mxu0 0
    %1652 = vmatprep.subr.bf16.mxu0 0
    %1653 = vmatpush1.bf16.msra.mxu0 0
    %1654 = vmatprep.subr.bf16.mxu0 0
    %1655 = vmatpush1.bf16.msra.mxu0 0
    %1656 = vmatprep.mubr.bf16.mxu0 0
    %1657 = vmatmul.mubr.bf16.gmra.mrb[0].mxu0 %v1476
    %v1658 = vpop.f32.mrb[0].mxu0
    %v1659 = vadd.f32 0.0, %v1658
    %v1660 = vpop.f32.mrb[0].mxu0
    %v1661 = vadd.f32 0.0, %v1660
    %v1662 = vpop.f32.mrb[0].mxu0
    %v1663 = vpop.f32.mrb[0].mxu0
    %1664 = vdwg.mxu0
    %v1665 = vadd.f32 %v1579, %v1618
    %v1666 = vadd.f32 %v1580, %v1620
    %v1667 = vadd.f32 %v1581, %v1659
    %v1668 = vadd.f32 %v1582, %v1661
    %v1669 = vmul.f32 %v1665, 0.5
    %v1670 = vmul.f32 %v1666, 0.5
    %v1671 = vmul.f32 %v1667, 0.5
    %v1672 = vtanh.pop %v1669
    %v1673 = vtanh.pop %v1670
    %v1674 = vtanh.pop %v1671
    %v1675 = vmul.f32 %v1672, 0.5
    %v1676 = vmul.f32 %v1673, 0.5
    %v1677 = vmul.f32 %v1674, 0.5
    %v1678 = vadd.f32 %v1675, 0.5
    %v1679 = vadd.f32 %v1676, 0.5
    %v1680 = vadd.f32 %v1677, 0.5
    %v1681 = vtanh.pop %v1668
    %v1682 = vmul.f32 %v1679, %v1473
    %v1683 = vmul.f32 %v1678, %v1681
    %v1684 = vadd.f32 %v1682, %v1683
    %v1685 = vtanh.pop %v1684
    %v1686 = vmul.f32 %v1680, %v1685
    %v1687 = vpack.c.bf16 %v1686, %v1686
    %v1688 = vpack.c.bf16 %v1577, %v1577
    %1689 = vmatprep.subr.bf16.mxu0 %v929
    %1690 = vmatpush1.bf16.msra.mxu0 %v928
    %1691 = vmatprep.subr.bf16.mxu0 %v933
    %1692 = vmatpush1.bf16.msra.mxu0 %v932
    %1693 = vmatprep.subr.bf16.mxu0 %v937
    %1694 = vmatpush1.bf16.msra.mxu0 %v936
    %1695 = vmatprep.subr.bf16.mxu0 %v941
    %1696 = vmatpush1.bf16.msra.mxu0 %v940
    %1697 = vmatprep.subr.bf16.mxu0 %v945
    %1698 = vmatpush1.bf16.msra.mxu0 %v944
    %1699 = vmatprep.subr.bf16.mxu0 %v949
    %1700 = vmatpush1.bf16.msra.mxu0 %v948
    %1701 = vmatprep.subr.bf16.mxu0 %v953
    %1702 = vmatpush1.bf16.msra.mxu0 %v952
    %1703 = vmatprep.subr.bf16.mxu0 %v957
    %1704 = vmatpush1.bf16.msra.mxu0 %v956
    %1705 = vmatprep.subr.bf16.mxu0 %v961
    %1706 = vmatpush1.bf16.msra.mxu0 %v960
    %1707 = vmatprep.subr.bf16.mxu0 %v965
    %1708 = vmatpush1.bf16.msra.mxu0 %v964
    %1709 = vmatprep.subr.bf16.mxu0 %v969
    %1710 = vmatpush1.bf16.msra.mxu0 %v968
    %1711 = vmatprep.subr.bf16.mxu0 %v973
    %1712 = vmatpush1.bf16.msra.mxu0 %v972
    %1713 = vmatprep.subr.bf16.mxu0 %v977
    %1714 = vmatpush1.bf16.msra.mxu0 %v976
    %1715 = vmatprep.subr.bf16.mxu0 %v981
    %1716 = vmatpush1.bf16.msra.mxu0 %v980
    %1717 = vmatprep.subr.bf16.mxu0 %v985
    %1718 = vmatpush1.bf16.msra.mxu0 %v984
    %1719 = vmatprep.subr.bf16.mxu0 %v989
    %1720 = vmatpush1.bf16.msra.mxu0 %v988
    %1721 = vmatprep.mubr.bf16.mxu0 %v1688
    %1722 = vmatmul.mubr.bf16.gmra.mrb[0].mxu0 %v1687
    %v1723 = vpop.f32.mrb[0].mxu0
    %v1724 = vadd.f32 %v719, %v1723
    %v1725 = vpop.f32.mrb[0].mxu0
    %v1726 = vadd.f32 %v723, %v1725
    %v1727 = vpop.f32.mrb[0].mxu0
    %v1728 = vpop.f32.mrb[0].mxu0
    %1729 = vdwg.mxu0
    %1730 = vmatprep.subr.bf16.mxu0 %v931
    %1731 = vmatpush1.bf16.msra.mxu0 %v930
    %1732 = vmatprep.subr.bf16.mxu0 %v935
    %1733 = vmatpush1.bf16.msra.mxu0 %v934
    %1734 = vmatprep.subr.bf16.mxu0 %v939
    %1735 = vmatpush1.bf16.msra.mxu0 %v938
    %1736 = vmatprep.subr.bf16.mxu0 %v943
    %1737 = vmatpush1.bf16.msra.mxu0 %v942
    %1738 = vmatprep.subr.bf16.mxu0 %v947
    %1739 = vmatpush1.bf16.msra.mxu0 %v946
    %1740 = vmatprep.subr.bf16.mxu0 %v951
    %1741 = vmatpush1.bf16.msra.mxu0 %v950
    %1742 = vmatprep.subr.bf16.mxu0 %v955
    %1743 = vmatpush1.bf16.msra.mxu0 %v954
    %1744 = vmatprep.subr.bf16.mxu0 %v959
    %1745 = vmatpush1.bf16.msra.mxu0 %v958
    %1746 = vmatprep.subr.bf16.mxu0 %v963
    %1747 = vmatpush1.bf16.msra.mxu0 %v962
    %1748 = vmatprep.subr.bf16.mxu0 %v967
    %1749 = vmatpush1.bf16.msra.mxu0 %v966
    %1750 = vmatprep.subr.bf16.mxu0 %v971
    %1751 = vmatpush1.bf16.msra.mxu0 %v970
    %1752 = vmatprep.subr.bf16.mxu0 %v975
    %1753 = vmatpush1.bf16.msra.mxu0 %v974
    %1754 = vmatprep.subr.bf16.mxu0 %v979
    %1755 = vmatpush1.bf16.msra.mxu0 %v978
    %1756 = vmatprep.subr.bf16.mxu0 %v983
    %1757 = vmatpush1.bf16.msra.mxu0 %v982
    %1758 = vmatprep.subr.bf16.mxu0 %v987
    %1759 = vmatpush1.bf16.msra.mxu0 %v986
    %1760 = vmatprep.subr.bf16.mxu0 %v991
    %1761 = vmatpush1.bf16.msra.mxu0 %v990
    %1762 = vmatprep.mubr.bf16.mxu0 %v1688
    %1763 = vmatmul.mubr.bf16.gmra.mrb[0].mxu0 %v1687
    %v1764 = vpop.f32.mrb[0].mxu0
    %v1765 = vadd.f32 %v727, %v1764
    %v1766 = vpop.f32.mrb[0].mxu0
    %v1767 = vadd.f32 %v731, %v1766
    %v1768 = vpop.f32.mrb[0].mxu0
    %v1769 = vpop.f32.mrb[0].mxu0
    %1770 = vdwg.mxu0
    %v1771 = vmul.f32 %v1724, 0.5
    %v1772 = vmul.f32 %v1726, 0.5
    %v1773 = vmul.f32 %v1765, 0.5
    %v1774 = vtanh.pop %v1771
    %v1775 = vtanh.pop %v1772
    %v1776 = vtanh.pop %v1773
    %v1777 = vmul.f32 %v1774, 0.5
    %v1778 = vmul.f32 %v1775, 0.5
    %v1779 = vmul.f32 %v1776, 0.5
    %v1780 = vadd.f32 %v1777, 0.5
    %v1781 = vadd.f32 %v1778, 0.5
    %v1782 = vadd.f32 %v1779, 0.5
    %v1783 = vtanh.pop %v1767
    %v1784 = vmul.f32 %v1781, %v1575
    %v1785 = vmul.f32 %v1780, %v1783
    %v1786 = vadd.f32 %v1784, %v1785
    %v1787 = vtanh.pop %v1786
    %v1788 = vmul.f32 %v1782, %v1787
    %s1789 = scalar_lea.vmem [#allocation3], 128
    %v1790 = vld [vmem:[%s1789] sm:$0xff]
    %v1791 = vld [vmem:[%s1789 + $0x8] sm:$0xff]
    %v1792 = vld [vmem:[%s1789 + $0x10] sm:$0xff]
    %v1793 = vld [vmem:[%s1789 + $0x18] sm:$0xff]
    %1794 = vmatprep.subr.bf16.mxu0 %v546
    %1795 = vmatpush1.bf16.msra.mxu0 %v545
    %1796 = vmatprep.subr.bf16.mxu0 %v550
    %1797 = vmatpush1.bf16.msra.mxu0 %v549
    %1798 = vmatprep.subr.bf16.mxu0 %v554
    %1799 = vmatpush1.bf16.msra.mxu0 %v553
    %1800 = vmatprep.subr.bf16.mxu0 %v558
    %1801 = vmatpush1.bf16.msra.mxu0 %v557
    %1802 = vmatprep.subr.bf16.mxu0 %v562
    %1803 = vmatpush1.bf16.msra.mxu0 %v561
    %1804 = vmatprep.subr.bf16.mxu0 %v566
    %1805 = vmatpush1.bf16.msra.mxu0 %v565
    %1806 = vmatprep.subr.bf16.mxu0 %v570
    %1807 = vmatpush1.bf16.msra.mxu0 %v569
    %1808 = vmatprep.subr.bf16.mxu0 %v574
    %1809 = vmatpush1.bf16.msra.mxu0 %v573
    %1810 = vmatprep.subr.bf16.mxu0 0
    %1811 = vmatpush1.bf16.msra.mxu0 0
    %1812 = vmatprep.subr.bf16.mxu0 0
    %1813 = vmatpush1.bf16.msra.mxu0 0
    %1814 = vmatprep.subr.bf16.mxu0 0
    %1815 = vmatpush1.bf16.msra.mxu0 0
    %1816 = vmatprep.subr.bf16.mxu0 0
    %1817 = vmatpush1.bf16.msra.mxu0 0
    %1818 = vmatprep.subr.bf16.mxu0 0
    %1819 = vmatpush1.bf16.msra.mxu0 0
    %1820 = vmatprep.subr.bf16.mxu0 0
    %1821 = vmatpush1.bf16.msra.mxu0 0
    %1822 = vmatprep.subr.bf16.mxu0 0
    %1823 = vmatpush1.bf16.msra.mxu0 0
    %1824 = vmatprep.subr.bf16.mxu0 0
    %1825 = vmatpush1.bf16.msra.mxu0 0
    %1826 = vmatprep.mubr.bf16.mxu0 0
    %1827 = vmatmul.mubr.bf16.gmra.mrb[0].mxu0 %v1687
    %v1828 = vpop.f32.mrb[0].mxu0
    %v1829 = vadd.f32 0.0, %v1828
    %v1830 = vpop.f32.mrb[0].mxu0
    %v1831 = vadd.f32 0.0, %v1830
    %v1832 = vpop.f32.mrb[0].mxu0
    %v1833 = vpop.f32.mrb[0].mxu0
    %1834 = vdwg.mxu0
    %1835 = vmatprep.subr.bf16.mxu0 %v548
    %1836 = vmatpush1.bf16.msra.mxu0 %v547
    %1837 = vmatprep.subr.bf16.mxu0 %v552
    %1838 = vmatpush1.bf16.msra.mxu0 %v551
    %1839 = vmatprep.subr.bf16.mxu0 %v556
    %1840 = vmatpush1.bf16.msra.mxu0 %v555
    %1841 = vmatprep.subr.bf16.mxu0 %v560
    %1842 = vmatpush1.bf16.msra.mxu0 %v559
    %1843 = vmatprep.subr.bf16.mxu0 %v564
    %1844 = vmatpush1.bf16.msra.mxu0 %v563
    %1845 = vmatprep.subr.bf16.mxu0 %v568
    %1846 = vmatpush1.bf16.msra.mxu0 %v567
    %1847 = vmatprep.subr.bf16.mxu0 %v572
    %1848 = vmatpush1.bf16.msra.mxu0 %v571
    %1849 = vmatprep.subr.bf16.mxu0 %v576
    %1850 = vmatpush1.bf16.msra.mxu0 %v575
    %1851 = vmatprep.subr.bf16.mxu0 0
    %1852 = vmatpush1.bf16.msra.mxu0 0
    %1853 = vmatprep.subr.bf16.mxu0 0
    %1854 = vmatpush1.bf16.msra.mxu0 0
    %1855 = vmatprep.subr.bf16.mxu0 0
    %1856 = vmatpush1.bf16.msra.mxu0 0
    %1857 = vmatprep.subr.bf16.mxu0 0
    %1858 = vmatpush1.bf16.msra.mxu0 0
    %1859 = vmatprep.subr.bf16.mxu0 0
    %1860 = vmatpush1.bf16.msra.mxu0 0
    %1861 = vmatprep.subr.bf16.mxu0 0
    %1862 = vmatpush1.bf16.msra.mxu0 0
    %1863 = vmatprep.subr.bf16.mxu0 0
    %1864 = vmatpush1.bf16.msra.mxu0 0
    %1865 = vmatprep.subr.bf16.mxu0 0
    %1866 = vmatpush1.bf16.msra.mxu0 0
    %1867 = vmatprep.mubr.bf16.mxu0 0
    %1868 = vmatmul.mubr.bf16.gmra.mrb[0].mxu0 %v1687
    %v1869 = vpop.f32.mrb[0].mxu0
    %v1870 = vadd.f32 0.0, %v1869
    %v1871 = vpop.f32.mrb[0].mxu0
    %v1872 = vadd.f32 0.0, %v1871
    %v1873 = vpop.f32.mrb[0].mxu0
    %v1874 = vpop.f32.mrb[0].mxu0
    %1875 = vdwg.mxu0
    %v1876 = vadd.f32 %v1790, %v1829
    %v1877 = vadd.f32 %v1791, %v1831
    %v1878 = vadd.f32 %v1792, %v1870
    %v1879 = vadd.f32 %v1793, %v1872
    %v1880 = vmul.f32 %v1876, 0.5
    %v1881 = vmul.f32 %v1877, 0.5
    %v1882 = vmul.f32 %v1878, 0.5
    %v1883 = vtanh.pop %v1880
    %v1884 = vtanh.pop %v1881
    %v1885 = vtanh.pop %v1882
    %v1886 = vmul.f32 %v1883, 0.5
    %v1887 = vmul.f32 %v1884, 0.5
    %v1888 = vmul.f32 %v1885, 0.5
    %v1889 = vadd.f32 %v1886, 0.5
    %v1890 = vadd.f32 %v1887, 0.5
    %v1891 = vadd.f32 %v1888, 0.5
    %v1892 = vtanh.pop %v1879
    %v1893 = vmul.f32 %v1890, %v1684
    %v1894 = vmul.f32 %v1889, %v1892
    %v1895 = vadd.f32 %v1893, %v1894
    %v1896 = vtanh.pop %v1895
    %v1897 = vmul.f32 %v1891, %v1896
    %v1898 = vpack.c.bf16 %v1897, %v1897
    %v1899 = vpack.c.bf16 %v1788, %v1788
    %1900 = vmatprep.subr.bf16.mxu0 %v929
    %1901 = vmatpush1.bf16.msra.mxu0 %v928
    %1902 = vmatprep.subr.bf16.mxu0 %v933
    %1903 = vmatpush1.bf16.msra.mxu0 %v932
    %1904 = vmatprep.subr.bf16.mxu0 %v937
    %1905 = vmatpush1.bf16.msra.mxu0 %v936
    %1906 = vmatprep.subr.bf16.mxu0 %v941
    %1907 = vmatpush1.bf16.msra.mxu0 %v940
    %1908 = vmatprep.subr.bf16.mxu0 %v945
    %1909 = vmatpush1.bf16.msra.mxu0 %v944
    %1910 = vmatprep.subr.bf16.mxu0 %v949
    %1911 = vmatpush1.bf16.msra.mxu0 %v948
    %1912 = vmatprep.subr.bf16.mxu0 %v953
    %1913 = vmatpush1.bf16.msra.mxu0 %v952
    %1914 = vmatprep.subr.bf16.mxu0 %v957
    %1915 = vmatpush1.bf16.msra.mxu0 %v956
    %1916 = vmatprep.subr.bf16.mxu0 %v961
    %1917 = vmatpush1.bf16.msra.mxu0 %v960
    %1918 = vmatprep.subr.bf16.mxu0 %v965
    %1919 = vmatpush1.bf16.msra.mxu0 %v964
    %1920 = vmatprep.subr.bf16.mxu0 %v969
    %1921 = vmatpush1.bf16.msra.mxu0 %v968
    %1922 = vmatprep.subr.bf16.mxu0 %v973
    %1923 = vmatpush1.bf16.msra.mxu0 %v972
    %1924 = vmatprep.subr.bf16.mxu0 %v977
    %1925 = vmatpush1.bf16.msra.mxu0 %v976
    %1926 = vmatprep.subr.bf16.mxu0 %v981
    %1927 = vmatpush1.bf16.msra.mxu0 %v980
    %1928 = vmatprep.subr.bf16.mxu0 %v985
    %1929 = vmatpush1.bf16.msra.mxu0 %v984
    %1930 = vmatprep.subr.bf16.mxu0 %v989
    %1931 = vmatpush1.bf16.msra.mxu0 %v988
    %1932 = vmatprep.mubr.bf16.mxu0 %v1899
    %1933 = vmatmul.mubr.bf16.gmra.mrb[0].mxu0 %v1898
    %v1934 = vpop.f32.mrb[0].mxu0
    %v1935 = vadd.f32 %v719, %v1934
    %v1936 = vpop.f32.mrb[0].mxu0
    %v1937 = vadd.f32 %v723, %v1936
    %v1938 = vpop.f32.mrb[0].mxu0
    %v1939 = vpop.f32.mrb[0].mxu0
    %1940 = vdwg.mxu0
    %1941 = vmatprep.subr.bf16.mxu0 %v931
    %1942 = vmatpush1.bf16.msra.mxu0 %v930
    %1943 = vmatprep.subr.bf16.mxu0 %v935
    %1944 = vmatpush1.bf16.msra.mxu0 %v934
    %1945 = vmatprep.subr.bf16.mxu0 %v939
    %1946 = vmatpush1.bf16.msra.mxu0 %v938
    %1947 = vmatprep.subr.bf16.mxu0 %v943
    %1948 = vmatpush1.bf16.msra.mxu0 %v942
    %1949 = vmatprep.subr.bf16.mxu0 %v947
    %1950 = vmatpush1.bf16.msra.mxu0 %v946
    %1951 = vmatprep.subr.bf16.mxu0 %v951
    %1952 = vmatpush1.bf16.msra.mxu0 %v950
    %1953 = vmatprep.subr.bf16.mxu0 %v955
    %1954 = vmatpush1.bf16.msra.mxu0 %v954
    %1955 = vmatprep.subr.bf16.mxu0 %v959
    %1956 = vmatpush1.bf16.msra.mxu0 %v958
    %1957 = vmatprep.subr.bf16.mxu0 %v963
    %1958 = vmatpush1.bf16.msra.mxu0 %v962
    %1959 = vmatprep.subr.bf16.mxu0 %v967
    %1960 = vmatpush1.bf16.msra.mxu0 %v966
    %1961 = vmatprep.subr.bf16.mxu0 %v971
    %1962 = vmatpush1.bf16.msra.mxu0 %v970
    %1963 = vmatprep.subr.bf16.mxu0 %v975
    %1964 = vmatpush1.bf16.msra.mxu0 %v974
    %1965 = vmatprep.subr.bf16.mxu0 %v979
    %1966 = vmatpush1.bf16.msra.mxu0 %v978
    %1967 = vmatprep.subr.bf16.mxu0 %v983
    %1968 = vmatpush1.bf16.msra.mxu0 %v982
    %1969 = vmatprep.subr.bf16.mxu0 %v987
    %1970 = vmatpush1.bf16.msra.mxu0 %v986
    %1971 = vmatprep.subr.bf16.mxu0 %v991
    %1972 = vmatpush1.bf16.msra.mxu0 %v990
    %1973 = vmatprep.mubr.bf16.mxu0 %v1899
    %1974 = vmatmul.mubr.bf16.gmra.mrb[0].mxu0 %v1898
    %v1975 = vpop.f32.mrb[0].mxu0
    %v1976 = vadd.f32 %v727, %v1975
    %v1977 = vpop.f32.mrb[0].mxu0
    %v1978 = vadd.f32 %v731, %v1977
    %v1979 = vpop.f32.mrb[0].mxu0
    %v1980 = vpop.f32.mrb[0].mxu0
    %1981 = vdwg.mxu0
    %v1982 = vmul.f32 %v1935, 0.5
    %v1983 = vmul.f32 %v1937, 0.5
    %v1984 = vmul.f32 %v1976, 0.5
    %v1985 = vtanh.pop %v1982
    %v1986 = vtanh.pop %v1983
    %v1987 = vtanh.pop %v1984
    %v1988 = vmul.f32 %v1985, 0.5
    %v1989 = vmul.f32 %v1986, 0.5
    %v1990 = vmul.f32 %v1987, 0.5
    %v1991 = vadd.f32 %v1988, 0.5
    %v1992 = vadd.f32 %v1989, 0.5
    %v1993 = vadd.f32 %v1990, 0.5
    %v1994 = vtanh.pop %v1978
    %v1995 = vmul.f32 %v1992, %v1786
    %v1996 = vmul.f32 %v1991, %v1994
    %v1997 = vadd.f32 %v1995, %v1996
    %v1998 = vtanh.pop %v1997
    %v1999 = vmul.f32 %v1993, %v1998
    %s2000 = scalar_lea.vmem [#allocation3], 160
    %v2001 = vld [vmem:[%s2000] sm:$0xff]
    %v2002 = vld [vmem:[%s2000 + $0x8] sm:$0xff]
    %v2003 = vld [vmem:[%s2000 + $0x10] sm:$0xff]
    %v2004 = vld [vmem:[%s2000 + $0x18] sm:$0xff]
    %2005 = vmatprep.subr.bf16.mxu0 %v546
    %2006 = vmatpush1.bf16.msra.mxu0 %v545
    %2007 = vmatprep.subr.bf16.mxu0 %v550
    %2008 = vmatpush1.bf16.msra.mxu0 %v549
    %2009 = vmatprep.subr.bf16.mxu0 %v554
    %2010 = vmatpush1.bf16.msra.mxu0 %v553
    %2011 = vmatprep.subr.bf16.mxu0 %v558
    %2012 = vmatpush1.bf16.msra.mxu0 %v557
    %2013 = vmatprep.subr.bf16.mxu0 %v562
    %2014 = vmatpush1.bf16.msra.mxu0 %v561
    %2015 = vmatprep.subr.bf16.mxu0 %v566
    %2016 = vmatpush1.bf16.msra.mxu0 %v565
    %2017 = vmatprep.subr.bf16.mxu0 %v570
    %2018 = vmatpush1.bf16.msra.mxu0 %v569
    %2019 = vmatprep.subr.bf16.mxu0 %v574
    %2020 = vmatpush1.bf16.msra.mxu0 %v573
    %2021 = vmatprep.subr.bf16.mxu0 0
    %2022 = vmatpush1.bf16.msra.mxu0 0
    %2023 = vmatprep.subr.bf16.mxu0 0
    %2024 = vmatpush1.bf16.msra.mxu0 0
    %2025 = vmatprep.subr.bf16.mxu0 0
    %2026 = vmatpush1.bf16.msra.mxu0 0
    %2027 = vmatprep.subr.bf16.mxu0 0
    %2028 = vmatpush1.bf16.msra.mxu0 0
    %2029 = vmatprep.subr.bf16.mxu0 0
    %2030 = vmatpush1.bf16.msra.mxu0 0
    %2031 = vmatprep.subr.bf16.mxu0 0
    %2032 = vmatpush1.bf16.msra.mxu0 0
    %2033 = vmatprep.subr.bf16.mxu0 0
    %2034 = vmatpush1.bf16.msra.mxu0 0
    %2035 = vmatprep.subr.bf16.mxu0 0
    %2036 = vmatpush1.bf16.msra.mxu0 0
    %2037 = vmatprep.mubr.bf16.mxu0 0
    %2038 = vmatmul.mubr.bf16.gmra.mrb[0].mxu0 %v1898
    %v2039 = vpop.f32.mrb[0].mxu0
    %v2040 = vadd.f32 0.0, %v2039
    %v2041 = vpop.f32.mrb[0].mxu0
    %v2042 = vadd.f32 0.0, %v2041
    %v2043 = vpop.f32.mrb[0].mxu0
    %v2044 = vpop.f32.mrb[0].mxu0
    %2045 = vdwg.mxu0
    %2046 = vmatprep.subr.bf16.mxu0 %v548
    %2047 = vmatpush1.bf16.msra.mxu0 %v547
    %2048 = vmatprep.subr.bf16.mxu0 %v552
    %2049 = vmatpush1.bf16.msra.mxu0 %v551
    %2050 = vmatprep.subr.bf16.mxu0 %v556
    %2051 = vmatpush1.bf16.msra.mxu0 %v555
    %2052 = vmatprep.subr.bf16.mxu0 %v560
    %2053 = vmatpush1.bf16.msra.mxu0 %v559
    %2054 = vmatprep.subr.bf16.mxu0 %v564
    %2055 = vmatpush1.bf16.msra.mxu0 %v563
    %2056 = vmatprep.subr.bf16.mxu0 %v568
    %2057 = vmatpush1.bf16.msra.mxu0 %v567
    %2058 = vmatprep.subr.bf16.mxu0 %v572
    %2059 = vmatpush1.bf16.msra.mxu0 %v571
    %2060 = vmatprep.subr.bf16.mxu0 %v576
    %2061 = vmatpush1.bf16.msra.mxu0 %v575
    %2062 = vmatprep.subr.bf16.mxu0 0
    %2063 = vmatpush1.bf16.msra.mxu0 0
    %2064 = vmatprep.subr.bf16.mxu0 0
    %2065 = vmatpush1.bf16.msra.mxu0 0
    %2066 = vmatprep.subr.bf16.mxu0 0
    %2067 = vmatpush1.bf16.msra.mxu0 0
    %2068 = vmatprep.subr.bf16.mxu0 0
    %2069 = vmatpush1.bf16.msra.mxu0 0
    %2070 = vmatprep.subr.bf16.mxu0 0
    %2071 = vmatpush1.bf16.msra.mxu0 0
    %2072 = vmatprep.subr.bf16.mxu0 0
    %2073 = vmatpush1.bf16.msra.mxu0 0
    %2074 = vmatprep.subr.bf16.mxu0 0
    %2075 = vmatpush1.bf16.msra.mxu0 0
    %2076 = vmatprep.subr.bf16.mxu0 0
    %2077 = vmatpush1.bf16.msra.mxu0 0
    %2078 = vmatprep.mubr.bf16.mxu0 0
    %2079 = vmatmul.mubr.bf16.gmra.mrb[0].mxu0 %v1898
    %v2080 = vpop.f32.mrb[0].mxu0
    %v2081 = vadd.f32 0.0, %v2080
    %v2082 = vpop.f32.mrb[0].mxu0
    %v2083 = vadd.f32 0.0, %v2082
    %v2084 = vpop.f32.mrb[0].mxu0
    %v2085 = vpop.f32.mrb[0].mxu0
    %2086 = vdwg.mxu0
    %v2087 = vadd.f32 %v2001, %v2040
    %v2088 = vadd.f32 %v2002, %v2042
    %v2089 = vadd.f32 %v2003, %v2081
    %v2090 = vadd.f32 %v2004, %v2083
    %v2091 = vmul.f32 %v2087, 0.5
    %v2092 = vmul.f32 %v2088, 0.5
    %v2093 = vmul.f32 %v2089, 0.5
    %v2094 = vtanh.pop %v2091
    %v2095 = vtanh.pop %v2092
    %v2096 = vtanh.pop %v2093
    %v2097 = vmul.f32 %v2094, 0.5
    %v2098 = vmul.f32 %v2095, 0.5
    %v2099 = vmul.f32 %v2096, 0.5
    %v2100 = vadd.f32 %v2097, 0.5
    %v2101 = vadd.f32 %v2098, 0.5
    %v2102 = vadd.f32 %v2099, 0.5
    %v2103 = vtanh.pop %v2090
    %v2104 = vmul.f32 %v2101, %v1895
    %v2105 = vmul.f32 %v2100, %v2103
    %v2106 = vadd.f32 %v2104, %v2105
    %v2107 = vtanh.pop %v2106
    %v2108 = vmul.f32 %v2102, %v2107
    %v2109 = vpack.c.bf16 %v2108, %v2108
    %v2110 = vpack.c.bf16 %v1999, %v1999
    %2111 = vmatprep.subr.bf16.mxu0 %v929
    %2112 = vmatpush1.bf16.msra.mxu0 %v928
    %2113 = vmatprep.subr.bf16.mxu0 %v933
    %2114 = vmatpush1.bf16.msra.mxu0 %v932
    %2115 = vmatprep.subr.bf16.mxu0 %v937
    %2116 = vmatpush1.bf16.msra.mxu0 %v936
    %2117 = vmatprep.subr.bf16.mxu0 %v941
    %2118 = vmatpush1.bf16.msra.mxu0 %v940
    %2119 = vmatprep.subr.bf16.mxu0 %v945
    %2120 = vmatpush1.bf16.msra.mxu0 %v944
    %2121 = vmatprep.subr.bf16.mxu0 %v949
    %2122 = vmatpush1.bf16.msra.mxu0 %v948
    %2123 = vmatprep.subr.bf16.mxu0 %v953
    %2124 = vmatpush1.bf16.msra.mxu0 %v952
    %2125 = vmatprep.subr.bf16.mxu0 %v957
    %2126 = vmatpush1.bf16.msra.mxu0 %v956
    %2127 = vmatprep.subr.bf16.mxu0 %v961
    %2128 = vmatpush1.bf16.msra.mxu0 %v960
    %2129 = vmatprep.subr.bf16.mxu0 %v965
    %2130 = vmatpush1.bf16.msra.mxu0 %v964
    %2131 = vmatprep.subr.bf16.mxu0 %v969
    %2132 = vmatpush1.bf16.msra.mxu0 %v968
    %2133 = vmatprep.subr.bf16.mxu0 %v973
    %2134 = vmatpush1.bf16.msra.mxu0 %v972
    %2135 = vmatprep.subr.bf16.mxu0 %v977
    %2136 = vmatpush1.bf16.msra.mxu0 %v976
    %2137 = vmatprep.subr.bf16.mxu0 %v981
    %2138 = vmatpush1.bf16.msra.mxu0 %v980
    %2139 = vmatprep.subr.bf16.mxu0 %v985
    %2140 = vmatpush1.bf16.msra.mxu0 %v984
    %2141 = vmatprep.subr.bf16.mxu0 %v989
    %2142 = vmatpush1.bf16.msra.mxu0 %v988
    %2143 = vmatprep.mubr.bf16.mxu0 %v2110
    %2144 = vmatmul.mubr.bf16.gmra.mrb[0].mxu0 %v2109
    %v2145 = vpop.f32.mrb[0].mxu0
    %v2146 = vadd.f32 %v719, %v2145
    %v2147 = vpop.f32.mrb[0].mxu0
    %v2148 = vadd.f32 %v723, %v2147
    %v2149 = vpop.f32.mrb[0].mxu0
    %v2150 = vpop.f32.mrb[0].mxu0
    %2151 = vdwg.mxu0
    %2152 = vmatprep.subr.bf16.mxu0 %v931
    %2153 = vmatpush1.bf16.msra.mxu0 %v930
    %2154 = vmatprep.subr.bf16.mxu0 %v935
    %2155 = vmatpush1.bf16.msra.mxu0 %v934
    %2156 = vmatprep.subr.bf16.mxu0 %v939
    %2157 = vmatpush1.bf16.msra.mxu0 %v938
    %2158 = vmatprep.subr.bf16.mxu0 %v943
    %2159 = vmatpush1.bf16.msra.mxu0 %v942
    %2160 = vmatprep.subr.bf16.mxu0 %v947
    %2161 = vmatpush1.bf16.msra.mxu0 %v946
    %2162 = vmatprep.subr.bf16.mxu0 %v951
    %2163 = vmatpush1.bf16.msra.mxu0 %v950
    %2164 = vmatprep.subr.bf16.mxu0 %v955
    %2165 = vmatpush1.bf16.msra.mxu0 %v954
    %2166 = vmatprep.subr.bf16.mxu0 %v959
    %2167 = vmatpush1.bf16.msra.mxu0 %v958
    %2168 = vmatprep.subr.bf16.mxu0 %v963
    %2169 = vmatpush1.bf16.msra.mxu0 %v962
    %2170 = vmatprep.subr.bf16.mxu0 %v967
    %2171 = vmatpush1.bf16.msra.mxu0 %v966
    %2172 = vmatprep.subr.bf16.mxu0 %v971
    %2173 = vmatpush1.bf16.msra.mxu0 %v970
    %2174 = vmatprep.subr.bf16.mxu0 %v975
    %2175 = vmatpush1.bf16.msra.mxu0 %v974
    %2176 = vmatprep.subr.bf16.mxu0 %v979
    %2177 = vmatpush1.bf16.msra.mxu0 %v978
    %2178 = vmatprep.subr.bf16.mxu0 %v983
    %2179 = vmatpush1.bf16.msra.mxu0 %v982
    %2180 = vmatprep.subr.bf16.mxu0 %v987
    %2181 = vmatpush1.bf16.msra.mxu0 %v986
    %2182 = vmatprep.subr.bf16.mxu0 %v991
    %2183 = vmatpush1.bf16.msra.mxu0 %v990
    %2184 = vmatprep.mubr.bf16.mxu0 %v2110
    %2185 = vmatmul.mubr.bf16.gmra.mrb[0].mxu0 %v2109
    %v2186 = vpop.f32.mrb[0].mxu0
    %v2187 = vadd.f32 %v727, %v2186
    %v2188 = vpop.f32.mrb[0].mxu0
    %v2189 = vadd.f32 %v731, %v2188
    %v2190 = vpop.f32.mrb[0].mxu0
    %v2191 = vpop.f32.mrb[0].mxu0
    %2192 = vdwg.mxu0
    %v2193 = vmul.f32 %v2146, 0.5
    %v2194 = vmul.f32 %v2148, 0.5
    %v2195 = vmul.f32 %v2187, 0.5
    %v2196 = vtanh.pop %v2193
    %v2197 = vtanh.pop %v2194
    %v2198 = vtanh.pop %v2195
    %v2199 = vmul.f32 %v2196, 0.5
    %v2200 = vmul.f32 %v2197, 0.5
    %v2201 = vmul.f32 %v2198, 0.5
    %v2202 = vadd.f32 %v2199, 0.5
    %v2203 = vadd.f32 %v2200, 0.5
    %v2204 = vadd.f32 %v2201, 0.5
    %v2205 = vtanh.pop %v2189
    %v2206 = vmul.f32 %v2203, %v1997
    %v2207 = vmul.f32 %v2202, %v2205
    %v2208 = vadd.f32 %v2206, %v2207
    %v2209 = vtanh.pop %v2208
    %v2210 = vmul.f32 %v2204, %v2209
    %s2211 = scalar_lea.vmem [#allocation3], 192
    %v2212 = vld [vmem:[%s2211] sm:$0xff]
    %v2213 = vld [vmem:[%s2211 + $0x8] sm:$0xff]
    %v2214 = vld [vmem:[%s2211 + $0x10] sm:$0xff]
    %v2215 = vld [vmem:[%s2211 + $0x18] sm:$0xff]
    %2216 = vmatprep.subr.bf16.mxu0 %v546
    %2217 = vmatpush1.bf16.msra.mxu0 %v545
    %2218 = vmatprep.subr.bf16.mxu0 %v550
    %2219 = vmatpush1.bf16.msra.mxu0 %v549
    %2220 = vmatprep.subr.bf16.mxu0 %v554
    %2221 = vmatpush1.bf16.msra.mxu0 %v553
    %2222 = vmatprep.subr.bf16.mxu0 %v558
    %2223 = vmatpush1.bf16.msra.mxu0 %v557
    %2224 = vmatprep.subr.bf16.mxu0 %v562
    %2225 = vmatpush1.bf16.msra.mxu0 %v561
    %2226 = vmatprep.subr.bf16.mxu0 %v566
    %2227 = vmatpush1.bf16.msra.mxu0 %v565
    %2228 = vmatprep.subr.bf16.mxu0 %v570
    %2229 = vmatpush1.bf16.msra.mxu0 %v569
    %2230 = vmatprep.subr.bf16.mxu0 %v574
    %2231 = vmatpush1.bf16.msra.mxu0 %v573
    %2232 = vmatprep.subr.bf16.mxu0 0
    %2233 = vmatpush1.bf16.msra.mxu0 0
    %2234 = vmatprep.subr.bf16.mxu0 0
    %2235 = vmatpush1.bf16.msra.mxu0 0
    %2236 = vmatprep.subr.bf16.mxu0 0
    %2237 = vmatpush1.bf16.msra.mxu0 0
    %2238 = vmatprep.subr.bf16.mxu0 0
    %2239 = vmatpush1.bf16.msra.mxu0 0
    %2240 = vmatprep.subr.bf16.mxu0 0
    %2241 = vmatpush1.bf16.msra.mxu0 0
    %2242 = vmatprep.subr.bf16.mxu0 0
    %2243 = vmatpush1.bf16.msra.mxu0 0
    %2244 = vmatprep.subr.bf16.mxu0 0
    %2245 = vmatpush1.bf16.msra.mxu0 0
    %2246 = vmatprep.subr.bf16.mxu0 0
    %2247 = vmatpush1.bf16.msra.mxu0 0
    %2248 = vmatprep.mubr.bf16.mxu0 0
    %2249 = vmatmul.mubr.bf16.gmra.mrb[0].mxu0 %v2109
    %v2250 = vpop.f32.mrb[0].mxu0
    %v2251 = vadd.f32 0.0, %v2250
    %v2252 = vpop.f32.mrb[0].mxu0
    %v2253 = vadd.f32 0.0, %v2252
    %v2254 = vpop.f32.mrb[0].mxu0
    %v2255 = vpop.f32.mrb[0].mxu0
    %2256 = vdwg.mxu0
    %2257 = vmatprep.subr.bf16.mxu0 %v548
    %2258 = vmatpush1.bf16.msra.mxu0 %v547
    %2259 = vmatprep.subr.bf16.mxu0 %v552
    %2260 = vmatpush1.bf16.msra.mxu0 %v551
    %2261 = vmatprep.subr.bf16.mxu0 %v556
    %2262 = vmatpush1.bf16.msra.mxu0 %v555
    %2263 = vmatprep.subr.bf16.mxu0 %v560
    %2264 = vmatpush1.bf16.msra.mxu0 %v559
    %2265 = vmatprep.subr.bf16.mxu0 %v564
    %2266 = vmatpush1.bf16.msra.mxu0 %v563
    %2267 = vmatprep.subr.bf16.mxu0 %v568
    %2268 = vmatpush1.bf16.msra.mxu0 %v567
    %2269 = vmatprep.subr.bf16.mxu0 %v572
    %2270 = vmatpush1.bf16.msra.mxu0 %v571
    %2271 = vmatprep.subr.bf16.mxu0 %v576
    %2272 = vmatpush1.bf16.msra.mxu0 %v575
    %2273 = vmatprep.subr.bf16.mxu0 0
    %2274 = vmatpush1.bf16.msra.mxu0 0
    %2275 = vmatprep.subr.bf16.mxu0 0
    %2276 = vmatpush1.bf16.msra.mxu0 0
    %2277 = vmatprep.subr.bf16.mxu0 0
    %2278 = vmatpush1.bf16.msra.mxu0 0
    %2279 = vmatprep.subr.bf16.mxu0 0
    %2280 = vmatpush1.bf16.msra.mxu0 0
    %2281 = vmatprep.subr.bf16.mxu0 0
    %2282 = vmatpush1.bf16.msra.mxu0 0
    %2283 = vmatprep.subr.bf16.mxu0 0
    %2284 = vmatpush1.bf16.msra.mxu0 0
    %2285 = vmatprep.subr.bf16.mxu0 0
    %2286 = vmatpush1.bf16.msra.mxu0 0
    %2287 = vmatprep.subr.bf16.mxu0 0
    %2288 = vmatpush1.bf16.msra.mxu0 0
    %2289 = vmatprep.mubr.bf16.mxu0 0
    %2290 = vmatmul.mubr.bf16.gmra.mrb[0].mxu0 %v2109
    %v2291 = vpop.f32.mrb[0].mxu0
    %v2292 = vadd.f32 0.0, %v2291
    %v2293 = vpop.f32.mrb[0].mxu0
    %v2294 = vadd.f32 0.0, %v2293
    %v2295 = vpop.f32.mrb[0].mxu0
    %v2296 = vpop.f32.mrb[0].mxu0
    %2297 = vdwg.mxu0
    %v2298 = vadd.f32 %v2212, %v2251
    %v2299 = vadd.f32 %v2213, %v2253
    %v2300 = vadd.f32 %v2214, %v2292
    %v2301 = vadd.f32 %v2215, %v2294
    %v2302 = vmul.f32 %v2298, 0.5
    %v2303 = vmul.f32 %v2299, 0.5
    %v2304 = vmul.f32 %v2300, 0.5
    %v2305 = vtanh.pop %v2302
    %v2306 = vtanh.pop %v2303
    %v2307 = vtanh.pop %v2304
    %v2308 = vmul.f32 %v2305, 0.5
    %v2309 = vmul.f32 %v2306, 0.5
    %v2310 = vmul.f32 %v2307, 0.5
    %v2311 = vadd.f32 %v2308, 0.5
    %v2312 = vadd.f32 %v2309, 0.5
    %v2313 = vadd.f32 %v2310, 0.5
    %v2314 = vtanh.pop %v2301
    %v2315 = vmul.f32 %v2312, %v2106
    %v2316 = vmul.f32 %v2311, %v2314
    %v2317 = vadd.f32 %v2315, %v2316
    %v2318 = vtanh.pop %v2317
    %v2319 = vmul.f32 %v2313, %v2318
    %v2320 = vpack.c.bf16 %v2319, %v2319
    %v2321 = vpack.c.bf16 %v2210, %v2210
    %2322 = vmatprep.subr.bf16.mxu0 %v929
    %2323 = vmatpush1.bf16.msra.mxu0 %v928
    %2324 = vmatprep.subr.bf16.mxu0 %v933
    %2325 = vmatpush1.bf16.msra.mxu0 %v932
    %2326 = vmatprep.subr.bf16.mxu0 %v937
    %2327 = vmatpush1.bf16.msra.mxu0 %v936
    %2328 = vmatprep.subr.bf16.mxu0 %v941
    %2329 = vmatpush1.bf16.msra.mxu0 %v940
    %2330 = vmatprep.subr.bf16.mxu0 %v945
    %2331 = vmatpush1.bf16.msra.mxu0 %v944
    %2332 = vmatprep.subr.bf16.mxu0 %v949
    %2333 = vmatpush1.bf16.msra.mxu0 %v948
    %2334 = vmatprep.subr.bf16.mxu0 %v953
    %2335 = vmatpush1.bf16.msra.mxu0 %v952
    %2336 = vmatprep.subr.bf16.mxu0 %v957
    %2337 = vmatpush1.bf16.msra.mxu0 %v956
    %2338 = vmatprep.subr.bf16.mxu0 %v961
    %2339 = vmatpush1.bf16.msra.mxu0 %v960
    %2340 = vmatprep.subr.bf16.mxu0 %v965
    %2341 = vmatpush1.bf16.msra.mxu0 %v964
    %2342 = vmatprep.subr.bf16.mxu0 %v969
    %2343 = vmatpush1.bf16.msra.mxu0 %v968
    %2344 = vmatprep.subr.bf16.mxu0 %v973
    %2345 = vmatpush1.bf16.msra.mxu0 %v972
    %2346 = vmatprep.subr.bf16.mxu0 %v977
    %2347 = vmatpush1.bf16.msra.mxu0 %v976
    %2348 = vmatprep.subr.bf16.mxu0 %v981
    %2349 = vmatpush1.bf16.msra.mxu0 %v980
    %2350 = vmatprep.subr.bf16.mxu0 %v985
    %2351 = vmatpush1.bf16.msra.mxu0 %v984
    %2352 = vmatprep.subr.bf16.mxu0 %v989
    %2353 = vmatpush1.bf16.msra.mxu0 %v988
    %2354 = vmatprep.mubr.bf16.mxu0 %v2321
    %2355 = vmatmul.mubr.bf16.gmra.mrb[0].mxu0 %v2320
    %v2356 = vpop.f32.mrb[0].mxu0
    %v2357 = vadd.f32 %v719, %v2356
    %v2358 = vpop.f32.mrb[0].mxu0
    %v2359 = vadd.f32 %v723, %v2358
    %v2360 = vpop.f32.mrb[0].mxu0
    %v2361 = vpop.f32.mrb[0].mxu0
    %2362 = vdwg.mxu0
    %2363 = vmatprep.subr.bf16.mxu0 %v931
    %2364 = vmatpush1.bf16.msra.mxu0 %v930
    %2365 = vmatprep.subr.bf16.mxu0 %v935
    %2366 = vmatpush1.bf16.msra.mxu0 %v934
    %2367 = vmatprep.subr.bf16.mxu0 %v939
    %2368 = vmatpush1.bf16.msra.mxu0 %v938
    %2369 = vmatprep.subr.bf16.mxu0 %v943
    %2370 = vmatpush1.bf16.msra.mxu0 %v942
    %2371 = vmatprep.subr.bf16.mxu0 %v947
    %2372 = vmatpush1.bf16.msra.mxu0 %v946
    %2373 = vmatprep.subr.bf16.mxu0 %v951
    %2374 = vmatpush1.bf16.msra.mxu0 %v950
    %2375 = vmatprep.subr.bf16.mxu0 %v955
    %2376 = vmatpush1.bf16.msra.mxu0 %v954
    %2377 = vmatprep.subr.bf16.mxu0 %v959
    %2378 = vmatpush1.bf16.msra.mxu0 %v958
    %2379 = vmatprep.subr.bf16.mxu0 %v963
    %2380 = vmatpush1.bf16.msra.mxu0 %v962
    %2381 = vmatprep.subr.bf16.mxu0 %v967
    %2382 = vmatpush1.bf16.msra.mxu0 %v966
    %2383 = vmatprep.subr.bf16.mxu0 %v971
    %2384 = vmatpush1.bf16.msra.mxu0 %v970
    %2385 = vmatprep.subr.bf16.mxu0 %v975
    %2386 = vmatpush1.bf16.msra.mxu0 %v974
    %2387 = vmatprep.subr.bf16.mxu0 %v979
    %2388 = vmatpush1.bf16.msra.mxu0 %v978
    %2389 = vmatprep.subr.bf16.mxu0 %v983
    %2390 = vmatpush1.bf16.msra.mxu0 %v982
    %2391 = vmatprep.subr.bf16.mxu0 %v987
    %2392 = vmatpush1.bf16.msra.mxu0 %v986
    %2393 = vmatprep.subr.bf16.mxu0 %v991
    %2394 = vmatpush1.bf16.msra.mxu0 %v990
    %2395 = vmatprep.mubr.bf16.mxu0 %v2321
    %2396 = vmatmul.mubr.bf16.gmra.mrb[0].mxu0 %v2320
    %v2397 = vpop.f32.mrb[0].mxu0
    %v2398 = vadd.f32 %v727, %v2397
    %v2399 = vpop.f32.mrb[0].mxu0
    %v2400 = vadd.f32 %v731, %v2399
    %v2401 = vpop.f32.mrb[0].mxu0
    %v2402 = vpop.f32.mrb[0].mxu0
    %2403 = vdwg.mxu0
    %v2404 = vmul.f32 %v2357, 0.5
    %v2405 = vmul.f32 %v2359, 0.5
    %v2406 = vmul.f32 %v2398, 0.5
    %v2407 = vtanh.pop %v2404
    %v2408 = vtanh.pop %v2405
    %v2409 = vtanh.pop %v2406
    %v2410 = vmul.f32 %v2407, 0.5
    %v2411 = vmul.f32 %v2408, 0.5
    %v2412 = vmul.f32 %v2409, 0.5
    %v2413 = vadd.f32 %v2410, 0.5
    %v2414 = vadd.f32 %v2411, 0.5
    %v2415 = vadd.f32 %v2412, 0.5
    %v2416 = vtanh.pop %v2400
    %v2417 = vmul.f32 %v2414, %v2208
    %v2418 = vmul.f32 %v2413, %v2416
    %v2419 = vadd.f32 %v2417, %v2418
    %v2420 = vtanh.pop %v2419
    %v2421 = vmul.f32 %v2415, %v2420
    %s2422 = scalar_lea.vmem [#allocation3], 224
    %v2423 = vld [vmem:[%s2422] sm:$0xff]
    %v2424 = vld [vmem:[%s2422 + $0x8] sm:$0xff]
    %v2425 = vld [vmem:[%s2422 + $0x10] sm:$0xff]
    %v2426 = vld [vmem:[%s2422 + $0x18] sm:$0xff]
    %2427 = vmatprep.subr.bf16.mxu0 %v546
    %2428 = vmatpush1.bf16.msra.mxu0 %v545
    %2429 = vmatprep.subr.bf16.mxu0 %v550
    %2430 = vmatpush1.bf16.msra.mxu0 %v549
    %2431 = vmatprep.subr.bf16.mxu0 %v554
    %2432 = vmatpush1.bf16.msra.mxu0 %v553
    %2433 = vmatprep.subr.bf16.mxu0 %v558
    %2434 = vmatpush1.bf16.msra.mxu0 %v557
    %2435 = vmatprep.subr.bf16.mxu0 %v562
    %2436 = vmatpush1.bf16.msra.mxu0 %v561
    %2437 = vmatprep.subr.bf16.mxu0 %v566
    %2438 = vmatpush1.bf16.msra.mxu0 %v565
    %2439 = vmatprep.subr.bf16.mxu0 %v570
    %2440 = vmatpush1.bf16.msra.mxu0 %v569
    %2441 = vmatprep.subr.bf16.mxu0 %v574
    %2442 = vmatpush1.bf16.msra.mxu0 %v573
    %2443 = vmatprep.subr.bf16.mxu0 0
    %2444 = vmatpush1.bf16.msra.mxu0 0
    %2445 = vmatprep.subr.bf16.mxu0 0
    %2446 = vmatpush1.bf16.msra.mxu0 0
    %2447 = vmatprep.subr.bf16.mxu0 0
    %2448 = vmatpush1.bf16.msra.mxu0 0
    %2449 = vmatprep.subr.bf16.mxu0 0
    %2450 = vmatpush1.bf16.msra.mxu0 0
    %2451 = vmatprep.subr.bf16.mxu0 0
    %2452 = vmatpush1.bf16.msra.mxu0 0
    %2453 = vmatprep.subr.bf16.mxu0 0
    %2454 = vmatpush1.bf16.msra.mxu0 0
    %2455 = vmatprep.subr.bf16.mxu0 0
    %2456 = vmatpush1.bf16.msra.mxu0 0
    %2457 = vmatprep.subr.bf16.mxu0 0
    %2458 = vmatpush1.bf16.msra.mxu0 0
    %2459 = vmatprep.mubr.bf16.mxu0 0
    %2460 = vmatmul.mubr.bf16.gmra.mrb[0].mxu0 %v2320
    %v2461 = vpop.f32.mrb[0].mxu0
    %v2462 = vadd.f32 0.0, %v2461
    %v2463 = vpop.f32.mrb[0].mxu0
    %v2464 = vadd.f32 0.0, %v2463
    %v2465 = vpop.f32.mrb[0].mxu0
    %v2466 = vpop.f32.mrb[0].mxu0
    %2467 = vdwg.mxu0
    %2468 = vmatprep.subr.bf16.mxu0 %v548
    %2469 = vmatpush1.bf16.msra.mxu0 %v547
    %2470 = vmatprep.subr.bf16.mxu0 %v552
    %2471 = vmatpush1.bf16.msra.mxu0 %v551
    %2472 = vmatprep.subr.bf16.mxu0 %v556
    %2473 = vmatpush1.bf16.msra.mxu0 %v555
    %2474 = vmatprep.subr.bf16.mxu0 %v560
    %2475 = vmatpush1.bf16.msra.mxu0 %v559
    %2476 = vmatprep.subr.bf16.mxu0 %v564
    %2477 = vmatpush1.bf16.msra.mxu0 %v563
    %2478 = vmatprep.subr.bf16.mxu0 %v568
    %2479 = vmatpush1.bf16.msra.mxu0 %v567
    %2480 = vmatprep.subr.bf16.mxu0 %v572
    %2481 = vmatpush1.bf16.msra.mxu0 %v571
    %2482 = vmatprep.subr.bf16.mxu0 %v576
    %2483 = vmatpush1.bf16.msra.mxu0 %v575
    %2484 = vmatprep.subr.bf16.mxu0 0
    %2485 = vmatpush1.bf16.msra.mxu0 0
    %2486 = vmatprep.subr.bf16.mxu0 0
    %2487 = vmatpush1.bf16.msra.mxu0 0
    %2488 = vmatprep.subr.bf16.mxu0 0
    %2489 = vmatpush1.bf16.msra.mxu0 0
    %2490 = vmatprep.subr.bf16.mxu0 0
    %2491 = vmatpush1.bf16.msra.mxu0 0
    %2492 = vmatprep.subr.bf16.mxu0 0
    %2493 = vmatpush1.bf16.msra.mxu0 0
    %2494 = vmatprep.subr.bf16.mxu0 0
    %2495 = vmatpush1.bf16.msra.mxu0 0
    %2496 = vmatprep.subr.bf16.mxu0 0
    %2497 = vmatpush1.bf16.msra.mxu0 0
    %2498 = vmatprep.subr.bf16.mxu0 0
    %2499 = vmatpush1.bf16.msra.mxu0 0
    %2500 = vmatprep.mubr.bf16.mxu0 0
    %2501 = vmatmul.mubr.bf16.gmra.mrb[0].mxu0 %v2320
    %v2502 = vpop.f32.mrb[0].mxu0
    %v2503 = vadd.f32 0.0, %v2502
    %v2504 = vpop.f32.mrb[0].mxu0
    %v2505 = vadd.f32 0.0, %v2504
    %v2506 = vpop.f32.mrb[0].mxu0
    %v2507 = vpop.f32.mrb[0].mxu0
    %2508 = vdwg.mxu0
    %v2509 = vadd.f32 %v2423, %v2462
    %v2510 = vadd.f32 %v2424, %v2464
    %v2511 = vadd.f32 %v2425, %v2503
    %v2512 = vadd.f32 %v2426, %v2505
    %v2513 = vmul.f32 %v2509, 0.5
    %v2514 = vmul.f32 %v2510, 0.5
    %v2515 = vmul.f32 %v2511, 0.5
    %v2516 = vtanh.pop %v2513
    %v2517 = vtanh.pop %v2514
    %v2518 = vtanh.pop %v2515
    %v2519 = vmul.f32 %v2516, 0.5
    %v2520 = vmul.f32 %v2517, 0.5
    %v2521 = vmul.f32 %v2518, 0.5
    %v2522 = vadd.f32 %v2519, 0.5
    %v2523 = vadd.f32 %v2520, 0.5
    %v2524 = vadd.f32 %v2521, 0.5
    %v2525 = vtanh.pop %v2512
    %v2526 = vmul.f32 %v2523, %v2317
    %v2527 = vmul.f32 %v2522, %v2525
    %v2528 = vadd.f32 %v2526, %v2527
    %v2529 = vtanh.pop %v2528
    %v2530 = vmul.f32 %v2524, %v2529
    %v2531 = vpack.c.bf16 %v2530, %v2530
    %v2532 = vpack.c.bf16 %v2421, %v2421
    %2533 = vmatprep.subr.bf16.mxu0 %v929
    %2534 = vmatpush1.bf16.msra.mxu0 %v928
    %2535 = vmatprep.subr.bf16.mxu0 %v933
    %2536 = vmatpush1.bf16.msra.mxu0 %v932
    %2537 = vmatprep.subr.bf16.mxu0 %v937
    %2538 = vmatpush1.bf16.msra.mxu0 %v936
    %2539 = vmatprep.subr.bf16.mxu0 %v941
    %2540 = vmatpush1.bf16.msra.mxu0 %v940
    %2541 = vmatprep.subr.bf16.mxu0 %v945
    %2542 = vmatpush1.bf16.msra.mxu0 %v944
    %2543 = vmatprep.subr.bf16.mxu0 %v949
    %2544 = vmatpush1.bf16.msra.mxu0 %v948
    %2545 = vmatprep.subr.bf16.mxu0 %v953
    %2546 = vmatpush1.bf16.msra.mxu0 %v952
    %2547 = vmatprep.subr.bf16.mxu0 %v957
    %2548 = vmatpush1.bf16.msra.mxu0 %v956
    %2549 = vmatprep.subr.bf16.mxu0 %v961
    %2550 = vmatpush1.bf16.msra.mxu0 %v960
    %2551 = vmatprep.subr.bf16.mxu0 %v965
    %2552 = vmatpush1.bf16.msra.mxu0 %v964
    %2553 = vmatprep.subr.bf16.mxu0 %v969
    %2554 = vmatpush1.bf16.msra.mxu0 %v968
    %2555 = vmatprep.subr.bf16.mxu0 %v973
    %2556 = vmatpush1.bf16.msra.mxu0 %v972
    %2557 = vmatprep.subr.bf16.mxu0 %v977
    %2558 = vmatpush1.bf16.msra.mxu0 %v976
    %2559 = vmatprep.subr.bf16.mxu0 %v981
    %2560 = vmatpush1.bf16.msra.mxu0 %v980
    %2561 = vmatprep.subr.bf16.mxu0 %v985
    %2562 = vmatpush1.bf16.msra.mxu0 %v984
    %2563 = vmatprep.subr.bf16.mxu0 %v989
    %2564 = vmatpush1.bf16.msra.mxu0 %v988
    %2565 = vmatprep.mubr.bf16.mxu0 %v2532
    %2566 = vmatmul.mubr.bf16.gmra.mrb[0].mxu0 %v2531
    %v2567 = vpop.f32.mrb[0].mxu0
    %v2568 = vadd.f32 %v719, %v2567
    %v2569 = vpop.f32.mrb[0].mxu0
    %v2570 = vadd.f32 %v723, %v2569
    %v2571 = vpop.f32.mrb[0].mxu0
    %v2572 = vpop.f32.mrb[0].mxu0
    %2573 = vdwg.mxu0
    %2574 = vmatprep.subr.bf16.mxu0 %v931
    %2575 = vmatpush1.bf16.msra.mxu0 %v930
    %2576 = vmatprep.subr.bf16.mxu0 %v935
    %2577 = vmatpush1.bf16.msra.mxu0 %v934
    %2578 = vmatprep.subr.bf16.mxu0 %v939
    %2579 = vmatpush1.bf16.msra.mxu0 %v938
    %2580 = vmatprep.subr.bf16.mxu0 %v943
    %2581 = vmatpush1.bf16.msra.mxu0 %v942
    %2582 = vmatprep.subr.bf16.mxu0 %v947
    %2583 = vmatpush1.bf16.msra.mxu0 %v946
    %2584 = vmatprep.subr.bf16.mxu0 %v951
    %2585 = vmatpush1.bf16.msra.mxu0 %v950
    %2586 = vmatprep.subr.bf16.mxu0 %v955
    %2587 = vmatpush1.bf16.msra.mxu0 %v954
    %2588 = vmatprep.subr.bf16.mxu0 %v959
    %2589 = vmatpush1.bf16.msra.mxu0 %v958
    %2590 = vmatprep.subr.bf16.mxu0 %v963
    %2591 = vmatpush1.bf16.msra.mxu0 %v962
    %2592 = vmatprep.subr.bf16.mxu0 %v967
    %2593 = vmatpush1.bf16.msra.mxu0 %v966
    %2594 = vmatprep.subr.bf16.mxu0 %v971
    %2595 = vmatpush1.bf16.msra.mxu0 %v970
    %2596 = vmatprep.subr.bf16.mxu0 %v975
    %2597 = vmatpush1.bf16.msra.mxu0 %v974
    %2598 = vmatprep.subr.bf16.mxu0 %v979
    %2599 = vmatpush1.bf16.msra.mxu0 %v978
    %2600 = vmatprep.subr.bf16.mxu0 %v983
    %2601 = vmatpush1.bf16.msra.mxu0 %v982
    %2602 = vmatprep.subr.bf16.mxu0 %v987
    %2603 = vmatpush1.bf16.msra.mxu0 %v986
    %2604 = vmatprep.subr.bf16.mxu0 %v991
    %2605 = vmatpush1.bf16.msra.mxu0 %v990
    %2606 = vmatprep.mubr.bf16.mxu0 %v2532
    %2607 = vmatmul.mubr.bf16.gmra.mrb[0].mxu0 %v2531
    %v2608 = vpop.f32.mrb[0].mxu0
    %v2609 = vadd.f32 %v727, %v2608
    %v2610 = vpop.f32.mrb[0].mxu0
    %v2611 = vadd.f32 %v731, %v2610
    %v2612 = vpop.f32.mrb[0].mxu0
    %v2613 = vpop.f32.mrb[0].mxu0
    %2614 = vdwg.mxu0
    %v2615 = vmul.f32 %v2568, 0.5
    %v2616 = vmul.f32 %v2570, 0.5
    %v2617 = vmul.f32 %v2609, 0.5
    %v2618 = vtanh.pop %v2615
    %v2619 = vtanh.pop %v2616
    %v2620 = vtanh.pop %v2617
    %v2621 = vmul.f32 %v2618, 0.5
    %v2622 = vmul.f32 %v2619, 0.5
    %v2623 = vmul.f32 %v2620, 0.5
    %v2624 = vadd.f32 %v2621, 0.5
    %v2625 = vadd.f32 %v2622, 0.5
    %v2626 = vadd.f32 %v2623, 0.5
    %v2627 = vtanh.pop %v2611
    %v2628 = vmul.f32 %v2625, %v2419
    %v2629 = vmul.f32 %v2624, %v2627
    %v2630 = vadd.f32 %v2628, %v2629
    %v2631 = vtanh.pop %v2630
    %v2632 = vmul.f32 %v2626, %v2631
    %2633 = vst [vmem:[#allocation2] sm:$0xff] %v2530
    %2634 = vst [vmem:[%s438] sm:$0xff] %v2528
    %2635 = vst [vmem:[%s440] sm:$0xff] %v2632
    %2636 = vst [vmem:[%s442] sm:$0xff] %v2630
    // Predicated region
    $region46: #{tpu_custom_call.1} parent=1 // pred_check
      %p2637 = pneg %p83
    $region47: #{tpu_custom_call.1} parent=1 // pred_check_branch
      %2639 = sbr.rel (%p2637) target = $region49
    $region48: #{tpu_custom_call.1} parent=1 // pred_region
      %2640 = vst [vmem:[#allocation12] sm:$0xff] %v2530
      %s2641 = scalar_lea.vmem [#allocation12], 8
      %2642 = vst [vmem:[%s2641] sm:$0xff] %v2632
      %2643 = vst [vmem:[#allocation13] sm:$0xff] %v2528
      %s2644 = scalar_lea.vmem [#allocation13], 8
      %2645 = vst [vmem:[%s2644] sm:$0xff] %v2630
    $region49: #{tpu_custom_call.1} parent=1 // pred_fallthru
      _
    // Predicated region
    $region50: #{tpu_custom_call.1} parent=1 // pred_check
      _
    $region51: #{tpu_custom_call.1} parent=1 // pred_check_branch
      %2647 = sbr.rel (0) target = $region53
    $region52: #{tpu_custom_call.1} parent=1 // pred_region
      %s2649 = ssub.s32 256, 256
      %2650 = vsyncadd [#allocation6], %s2649
      %s2651 = sshll.u32 [#allocation12], 4
      %s2652 = int_to_ptr.vmem [resolvable:$true] %s2651
      %2657 = dma.vmem_to_hbm [thread:$0]  %s2652, 256, %s6, [#allocation6], 128, 128, 8
    $region53: #{tpu_custom_call.1} parent=1 // pred_fallthru
      _
    // Predicated region
    $region54: #{tpu_custom_call.1} parent=1 // pred_check
      _
    $region55: #{tpu_custom_call.1} parent=1 // pred_check_branch
      %2659 = sbr.rel (0) target = $region57
    $region56: #{tpu_custom_call.1} parent=1 // pred_region
      %s2661 = ssub.s32 256, 256
      %2662 = vsyncadd [#allocation14], %s2661
      %s2663 = sshll.u32 [#allocation13], 4
      %s2664 = int_to_ptr.vmem [resolvable:$true] %s2663
      %2669 = dma.vmem_to_hbm [thread:$0]  %s2664, 256, %s7, [#allocation14], 128, 128, 8
    $region57: #{tpu_custom_call.1} parent=1 // pred_fallthru
      _
    // Predicated region
    $region58: #{tpu_custom_call.1} parent=1 // pred_check
      _
    $region59: #{tpu_custom_call.1} parent=1 // pred_check_branch
      %2671 = sbr.rel (0) target = $region61
    $region60: #{tpu_custom_call.1} parent=1 // pred_region
      %2672 = dma.done [#allocation6], 256
    $region61: #{tpu_custom_call.1} parent=1 // pred_fallthru
      _
    // Predicated region
    $region62: #{tpu_custom_call.1} parent=1 // pred_check
      _
    $region63: #{tpu_custom_call.1} parent=1 // pred_check_branch
      %2674 = sbr.rel (0) target = $region65
    $region64: #{tpu_custom_call.1} parent=1 // pred_region
      %2675 = dma.done [#allocation14], 256
    $region65: #{tpu_custom_call.1} parent=1 // pred_fallthru
      _
    %2676 = vsyncpa [#allocation5], 1
    %2677 = vsyncpa [#allocation8], 1
    %2678 = vsyncpa [#allocation11], 1
    %2679 = vsyncpa [#allocation6], 1
    %2680 = vsyncpa [#allocation14], 1

</llo_original>
